<compile_context>
chip_gen: v7x
topology: tpu7x:2x2x1
jax: 0.10.0
libtpu: 0.0.40
codegen_flags: <defaults>
</compile_context>

<pallas_src>
import math

import jax
import jax.numpy as jnp
from jax import lax
from jax.experimental import pallas as pl
from jax.experimental.pallas import tpu as pltpu

GP = 128  # lane-aligned gate pitch: each LSTM gate owns its own 128-lane slot


def _sigmoid(x):
    # Exact identity sigmoid(x) = 0.5*tanh(0.5x)+0.5: one EUP tanh per gate.
    return 0.5 * jnp.tanh(0.5 * x) + 0.5


def _make_kernel(unroll):
    def kernel(inp_ref, h0_ref, c0_ref, h1_ref, c1_ref,
               wih0_ref, whh0_ref, b0_ref, whx1_ref, b1_ref,
               wout_ref, bout_ref,
               out_ref, h0o_ref, c0o_ref, h1o_ref, c1o_ref):
        T = inp_ref.shape[0]
        H = h0_ref.shape[-1]

        def gate_act(gates, c):
            # gate g occupies lanes [g*GP, g*GP+H) -> vreg-aligned slice starts
            i = _sigmoid(gates[:, 0 * GP:0 * GP + H])
            f = _sigmoid(gates[:, 1 * GP:1 * GP + H])
            g = jnp.tanh(gates[:, 2 * GP:2 * GP + H])
            o = _sigmoid(gates[:, 3 * GP:3 * GP + H])
            c_new = f * c + i * g
            return o * jnp.tanh(c_new), c_new

        def step(t, carry):
            h0, c0, h1, c1 = carry
            x_t = inp_ref[t]                                  # (bn, 1)

            # ---- cell 0: input_sz == 1, so x @ W_ih0^T is a VPU broadcast
            #      multiply; only one MXU push (hidden->hidden) per step.
            gates0 = (x_t * wih0_ref[...]
                      + jnp.dot(h0, whh0_ref[...],
                                preferred_element_type=jnp.float32)
                      + b0_ref[...])
            h0n, c0n = gate_act(gates0, c0)

            # ---- cell 1: single fused K=2H MXU push (W_ih1 and W_hh1 stacked).
            x1 = jnp.concatenate([h0n, h1], axis=-1)          # (bn, 2H)
            gates1 = (jnp.dot(x1, whx1_ref[...],
                              preferred_element_type=jnp.float32)
                      + b1_ref[...])
            h1n, c1n = gate_act(gates1, c1)

            # ---- output head: VPU multiply + XLU lane-sum (no MXU push).
            out_t = (jnp.sum(h1n * wout_ref[...], axis=-1, keepdims=True)
                     + bout_ref[...])                          # (bn, 1)
            out_ref[t] = out_t                                 # leading-dim dyn store
            return (h0n, c0n, h1n, c1n)

        init = (h0_ref[...], c0_ref[...], h1_ref[...], c1_ref[...])
        h0f, c0f, h1f, c1f = lax.fori_loop(0, T, step, init, unroll=unroll)
        h0o_ref[...] = h0f
        c0o_ref[...] = c0f
        h1o_ref[...] = h1f
        c1o_ref[...] = c1f

    return kernel


def grid_unit_generator_seq(inp_seq, states, kparams, *, batch_block=None):
    """Run T optimizer timesteps in one fused kernel call.

    inp_seq: (T, N, 1) float32; states = ((h0, c0), (h1, c1)), each (N, H).
    Returns (out_seq (T, N, 1), new_states).
    """
    (h0, c0), (h1, c1) = states
    T, N, _ = inp_seq.shape
    H = h0.shape[1]

    # Batch tiling: a "parallel" grid axis over independent rows so v7x's two
    # TensorCores split the work; collapses to a single block on small N.
    if batch_block is None:
        batch_block = N if (N <= 128 or N % 128 != 0) else 128
    bn = batch_block if (batch_block > 0 and N % batch_block == 0) else N
    nb = N // bn

    in_specs = [
        pl.BlockSpec((T, bn, 1), lambda i: (0, i, 0)),      # inp_seq
        pl.BlockSpec((bn, H), lambda i: (i, 0)),            # h0
        pl.BlockSpec((bn, H), lambda i: (i, 0)),            # c0
        pl.BlockSpec((bn, H), lambda i: (i, 0)),            # h1
        pl.BlockSpec((bn, H), lambda i: (i, 0)),            # c1
        pl.BlockSpec((1, 4 * GP), lambda i: (0, 0)),        # wih0_row
        pl.BlockSpec((H, 4 * GP), lambda i: (0, 0)),        # whh0
        pl.BlockSpec((1, 4 * GP), lambda i: (0, 0)),        # b0
        pl.BlockSpec((2 * H, 4 * GP), lambda i: (0, 0)),    # whx1 (fused ih1+hh1)
        pl.BlockSpec((1, 4 * GP), lambda i: (0, 0)),        # b1
        pl.BlockSpec((1, H), lambda i: (0, 0)),             # wout_row
        pl.BlockSpec((1, 1), lambda i: (0, 0)),             # bout
    ]
    out_specs = (
        pl.BlockSpec((T, bn, 1), lambda i: (0, i, 0)),
        pl.BlockSpec((bn, H), lambda i: (i, 0)),
        pl.BlockSpec((bn, H), lambda i: (i, 0)),
        pl.BlockSpec((bn, H), lambda i: (i, 0)),
        pl.BlockSpec((bn, H), lambda i: (i, 0)),
    )
    out_shapes = (
        jax.ShapeDtypeStruct((T, N, 1), jnp.float32),  # per-step scalar outputs
        jax.ShapeDtypeStruct((N, H), jnp.float32),     # h0'
        jax.ShapeDtypeStruct((N, H), jnp.float32),     # c0'
        jax.ShapeDtypeStruct((N, H), jnp.float32),     # h1'
        jax.ShapeDtypeStruct((N, H), jnp.float32),     # c1'
    )

    unroll = min(T, 8)  # short fixed trip counts: give the LLO scheduler visibility
    outs = pl.pallas_call(
        _make_kernel(unroll),
        out_shape=out_shapes,
        grid=(nb,),
        in_specs=in_specs,
        out_specs=out_specs,
        compiler_params=pltpu.CompilerParams(dimension_semantics=("parallel",)),
    )(inp_seq, h0, c0, h1, c1,
      kparams["wih0_row"], kparams["whh0"], kparams["b0"],
      kparams["whx1"], kparams["b1"],
      kparams["wout_row"], kparams["bout"])

    out_seq, h0n, c0n, h1n, c1n = outs
    return out_seq, ((h0n, c0n), (h1n, c1n))


def grid_unit_generator(inp, states, kparams):
    """Single-step forward (the module's forward()).  inp: (N, 1)."""
    out_seq, new_states = grid_unit_generator_seq(inp[None], states, kparams)
    return out_seq[0], new_states


# ----------------------------------------------------------------------------
# Parameter init (PyTorch layout) + host-side repack into the kernel layout.
# ----------------------------------------------------------------------------
def init_params(key, hidden_sz=20, input_sz=1):
    """PyTorch-style uniform(-1/sqrt(H), 1/sqrt(H)) init, torch tensor layouts."""
    H = hidden_sz
    k = 1.0 / math.sqrt(H)
    keys = jax.random.split(key, 10)

    def u(kk, shape):
        return jax.random.uniform(kk, shape, jnp.float32, -k, k)

    # nn.LSTMCell: weight_ih (4H, in), weight_hh (4H, H), bias_ih/hh (4H,)
    # nn.Linear(H, 1): weight (1, H), bias (1,)
    return dict(
        w_ih0=u(keys[0], (4 * H, input_sz)),
        w_hh0=u(keys[1], (4 * H, H)),
        b_ih0=u(keys[2], (4 * H,)),
        b_hh0=u(keys[3], (4 * H,)),
        w_ih1=u(keys[4], (4 * H, H)),
        w_hh1=u(keys[5], (4 * H, H)),
        b_ih1=u(keys[6], (4 * H,)),
        b_hh1=u(keys[7], (4 * H,)),
        w_out=u(keys[8], (1, H)),
        b_out=u(keys[9], (1,)),
    )


def _pad_gate_cols(w_t, H):
    """(in, 4H) -> (in, 4*GP) with gate g in lanes [g*GP, g*GP+H), zeros elsewhere."""
    out = jnp.zeros((w_t.shape[0], 4 * GP), jnp.float32)
    for g in range(4):
        out = out.at[:, g * GP:g * GP + H].set(w_t[:, g * H:(g + 1) * H])
    return out


def pack_kernel_params(p, hidden_sz=20):
    """Transpose, fuse biases, lane-align gates, and stack cell-1's weights."""
    H = hidden_sz
    b0 = (p["b_ih0"] + p["b_hh0"])[None, :]                       # (1, 4H)
    b1 = (p["b_ih1"] + p["b_hh1"])[None, :]                       # (1, 4H)
    whx1_t = jnp.concatenate([p["w_ih1"].T, p["w_hh1"].T], 0)     # (2H, 4H)
    return dict(
        wih0_row=_pad_gate_cols(p["w_ih0"].T, H),                 # (1, 4*GP)
        whh0=_pad_gate_cols(p["w_hh0"].T, H),                     # (H, 4*GP)
        b0=_pad_gate_cols(b0, H),                                 # (1, 4*GP)
        whx1=_pad_gate_cols(whx1_t, H),                           # (2H, 4*GP)
        b1=_pad_gate_cols(b1, H),                                 # (1, 4*GP)
        wout_row=p["w_out"].astype(jnp.float32),                  # (1, H)
        bout=p["b_out"].reshape(1, 1).astype(jnp.float32),        # (1, 1)
    )


# ----------------------------------------------------------------------------
# Pure-JAX reference (mirrors torch.nn.LSTMCell + nn.Linear semantics).
# ----------------------------------------------------------------------------
def _reference(inp, states, p):
    (h0, c0), (h1, c1) = states
    H = h0.shape[1]

    def cell(x, h, c, w_ih, w_hh, b_ih, b_hh):
        g = x @ w_ih.T + h @ w_hh.T + b_ih + b_hh
        i = jax.nn.sigmoid(g[:, 0 * H:1 * H])
        f = jax.nn.sigmoid(g[:, 1 * H:2 * H])
        gg = jnp.tanh(g[:, 2 * H:3 * H])
        o = jax.nn.sigmoid(g[:, 3 * H:4 * H])
        cn = f * c + i * gg
        return o * jnp.tanh(cn), cn

    h0n, c0n = cell(inp, h0, c0, p["w_ih0"], p["w_hh0"], p["b_ih0"], p["b_hh0"])
    h1n, c1n = cell(h0n, h1, c1, p["w_ih1"], p["w_hh1"], p["b_ih1"], p["b_hh1"])
    out = h1n @ p["w_out"].T + p["b_out"]
    return out, ((h0n, c0n), (h1n, c1n))


def _reference_seq(inp_seq, states, p):
    def step(carry, x):
        out, new_states = _reference(x, carry, p)
        return new_states, out

    final_states, outs = lax.scan(step, states, inp_seq)
    return outs, final_states


if __name__ == "__main__":
    T, N, H = 8, 8, 20  # 8 timesteps, 8 optimized coordinates, hidden_sz=20 (default)
    key = jax.random.PRNGKey(0)
    kp, ki, k0, k1, k2, k3 = jax.random.split(key, 6)

    raw_params = init_params(kp, hidden_sz=H, input_sz=1)
    kparams = pack_kernel_params(raw_params, hidden_sz=H)

    inp_seq = jax.random.normal(ki, (T, N, 1), jnp.float32)
    states = (
        (jax.random.normal(k0, (N, H), jnp.float32) * 0.1,
         jax.random.normal(k1, (N, H), jnp.float32) * 0.1),
        (jax.random.normal(k2, (N, H), jnp.float32) * 0.1,
         jax.random.normal(k3, (N, H), jnp.float32) * 0.1),
    )

    # ---- fused multi-step kernel (T steps in one call) ----
    out_seq, new_states = grid_unit_generator_seq(inp_seq, states, kparams)
    out_seq = jax.block_until_ready(out_seq)
    jax.block_until_ready(new_states)

    ref_out_seq, ref_states = _reference_seq(inp_seq, states, raw_params)
    # f32 with MXU passes / EUP approximations; real bugs give O(1e-1) errors.
    assert jnp.allclose(out_seq, ref_out_seq, atol=1e-4, rtol=1e-4)
    for (a, b), (ra, rb) in zip(new_states, ref_states):
        assert jnp.allclose(a, ra, atol=1e-4, rtol=1e-4)
        assert jnp.allclose(b, rb, atol=1e-4, rtol=1e-4)

    # ---- single-step API (module forward semantics) ----
    out1, st1 = grid_unit_generator(inp_seq[0], states, kparams)
    out1 = jax.block_until_ready(out1)
    ref_out1, ref_st1 = _reference(inp_seq[0], states, raw_params)
    assert jnp.allclose(out1, ref_out1, atol=1e-4, rtol=1e-4)
    for (a, b), (ra, rb) in zip(st1, ref_st1):
        assert jnp.allclose(a, ra, atol=1e-4, rtol=1e-4)
        assert jnp.allclose(b, rb, atol=1e-4, rtol=1e-4)

    print("KERNEL_OK")
</pallas_src>

<mosaic_0001>
module attributes {stable_mosaic.version = 11 : i64} {
  func.func @kernel(%arg0: i32, %arg1: memref<8x8x1xf32, #tpu.memory_space<vmem>>, %arg2: memref<8x20xf32, #tpu.memory_space<vmem>>, %arg3: memref<8x20xf32, #tpu.memory_space<vmem>>, %arg4: memref<8x20xf32, #tpu.memory_space<vmem>>, %arg5: memref<8x20xf32, #tpu.memory_space<vmem>>, %arg6: memref<1x512xf32, #tpu.memory_space<vmem>>, %arg7: memref<20x512xf32, #tpu.memory_space<vmem>>, %arg8: memref<1x512xf32, #tpu.memory_space<vmem>>, %arg9: memref<40x512xf32, #tpu.memory_space<vmem>>, %arg10: memref<1x512xf32, #tpu.memory_space<vmem>>, %arg11: memref<1x20xf32, #tpu.memory_space<vmem>>, %arg12: memref<1x1xf32, #tpu.memory_space<vmem>>, %arg13: memref<8x8x1xf32, #tpu.memory_space<vmem>>, %arg14: memref<8x20xf32, #tpu.memory_space<vmem>>, %arg15: memref<8x20xf32, #tpu.memory_space<vmem>>, %arg16: memref<8x20xf32, #tpu.memory_space<vmem>>, %arg17: memref<8x20xf32, #tpu.memory_space<vmem>>) attributes {dimension_semantics = [#tpu.dimension_semantics<parallel>], iteration_bounds = array<i64: 1>, scalar_prefetch = 0 : i64, scratch_operands = 0 : i64, tpu.core_type = #tpu.core_type<tc>, window_params = [{transform_indices = @transform_0, window_bounds = array<i64: 8, 8, 1>}, {transform_indices = @transform_1, window_bounds = array<i64: 8, 20>}, {transform_indices = @transform_2, window_bounds = array<i64: 8, 20>}, {transform_indices = @transform_3, window_bounds = array<i64: 8, 20>}, {transform_indices = @transform_4, window_bounds = array<i64: 8, 20>}, {pipeline_mode = #tpu.pipeline_mode<synchronous>, transform_indices = @transform_5, window_bounds = array<i64: 1, 512>}, {pipeline_mode = #tpu.pipeline_mode<synchronous>, transform_indices = @transform_6, window_bounds = array<i64: 20, 512>}, {pipeline_mode = #tpu.pipeline_mode<synchronous>, transform_indices = @transform_7, window_bounds = array<i64: 1, 512>}, {pipeline_mode = #tpu.pipeline_mode<synchronous>, transform_indices = @transform_8, window_bounds = array<i64: 40, 512>}, {pipeline_mode = #tpu.pipeline_mode<synchronous>, transform_indices = @transform_9, window_bounds = array<i64: 1, 512>}, {pipeline_mode = #tpu.pipeline_mode<synchronous>, transform_indices = @transform_10, window_bounds = array<i64: 1, 20>}, {pipeline_mode = #tpu.pipeline_mode<synchronous>, transform_indices = @transform_11, window_bounds = array<i64: 1, 1>}, {transform_indices = @transform_12, window_bounds = array<i64: 8, 8, 1>}, {transform_indices = @transform_13, window_bounds = array<i64: 8, 20>}, {transform_indices = @transform_14, window_bounds = array<i64: 8, 20>}, {transform_indices = @transform_15, window_bounds = array<i64: 8, 20>}, {transform_indices = @transform_16, window_bounds = array<i64: 8, 20>}]} {
    %c0 = arith.constant 0 : index
    %c0_0 = arith.constant 0 : index
    %0 = vector.load %arg2[%c0, %c0_0] : memref<8x20xf32, #tpu.memory_space<vmem>>, vector<8x20xf32>
    %c0_1 = arith.constant 0 : index
    %c0_2 = arith.constant 0 : index
    %1 = vector.load %arg3[%c0_1, %c0_2] : memref<8x20xf32, #tpu.memory_space<vmem>>, vector<8x20xf32>
    %c0_3 = arith.constant 0 : index
    %c0_4 = arith.constant 0 : index
    %2 = vector.load %arg4[%c0_3, %c0_4] : memref<8x20xf32, #tpu.memory_space<vmem>>, vector<8x20xf32>
    %c0_5 = arith.constant 0 : index
    %c0_6 = arith.constant 0 : index
    %3 = vector.load %arg5[%c0_5, %c0_6] : memref<8x20xf32, #tpu.memory_space<vmem>>, vector<8x20xf32>
    %c0_i32 = arith.constant 0 : i32
    %4 = arith.index_cast %c0_i32 : i32 to index
    %c0_7 = arith.constant 0 : index
    %c0_8 = arith.constant 0 : index
    %5 = vector.load %arg1[%4, %c0_7, %c0_8] : memref<8x8x1xf32, #tpu.memory_space<vmem>>, vector<1x8x1xf32>
    %6 = vector.shape_cast %5 : vector<1x8x1xf32> to vector<8x1xf32>
    %c0_9 = arith.constant 0 : index
    %c0_10 = arith.constant 0 : index
    %7 = vector.load %arg6[%c0_9, %c0_10] : memref<1x512xf32, #tpu.memory_space<vmem>>, vector<1x512xf32>
    %8 = vector.broadcast %6 : vector<8x1xf32> to vector<8x512xf32>
    %9 = vector.broadcast %7 : vector<1x512xf32> to vector<8x512xf32>
    %10 = arith.mulf %8, %9 : vector<8x512xf32>
    %c0_11 = arith.constant 0 : index
    %c0_12 = arith.constant 0 : index
    %11 = vector.load %arg7[%c0_11, %c0_12] : memref<20x512xf32, #tpu.memory_space<vmem>>, vector<20x512xf32>
    %cst = arith.constant dense<0.000000e+00> : vector<8x512xf32>
    %12 = tpu.matmul %0, %11, %cst {dimension_numbers = #tpu.dot_dimension_numbers<[1], [0], [0], [1], [0, 0, 1, 1], [], []>} : vector<8x20xf32>, vector<20x512xf32>, vector<8x512xf32> -> vector<8x512xf32>
    %13 = arith.addf %10, %12 : vector<8x512xf32>
    %c0_13 = arith.constant 0 : index
    %c0_14 = arith.constant 0 : index
    %14 = vector.load %arg8[%c0_13, %c0_14] : memref<1x512xf32, #tpu.memory_space<vmem>>, vector<1x512xf32>
    %15 = vector.broadcast %14 : vector<1x512xf32> to vector<8x512xf32>
    %16 = arith.addf %13, %15 : vector<8x512xf32>
    %17 = vector.extract_strided_slice %16 {offsets = [0, 0], sizes = [8, 20], strides = [1, 1]} : vector<8x512xf32> to vector<8x20xf32>
    %cst_15 = arith.constant 5.000000e-01 : f32
    %18 = vector.broadcast %cst_15 : f32 to vector<8x20xf32>
    %19 = arith.mulf %18, %17 : vector<8x20xf32>
    %20 = math.tanh %19 : vector<8x20xf32>
    %cst_16 = arith.constant 5.000000e-01 : f32
    %21 = vector.broadcast %cst_16 : f32 to vector<8x20xf32>
    %22 = arith.mulf %21, %20 : vector<8x20xf32>
    %cst_17 = arith.constant 5.000000e-01 : f32
    %23 = vector.broadcast %cst_17 : f32 to vector<8x20xf32>
    %24 = arith.addf %22, %23 : vector<8x20xf32>
    %25 = vector.extract_strided_slice %16 {offsets = [0, 128], sizes = [8, 20], strides = [1, 1]} : vector<8x512xf32> to vector<8x20xf32>
    %cst_18 = arith.constant 5.000000e-01 : f32
    %26 = vector.broadcast %cst_18 : f32 to vector<8x20xf32>
    %27 = arith.mulf %26, %25 : vector<8x20xf32>
    %28 = math.tanh %27 : vector<8x20xf32>
    %cst_19 = arith.constant 5.000000e-01 : f32
    %29 = vector.broadcast %cst_19 : f32 to vector<8x20xf32>
    %30 = arith.mulf %29, %28 : vector<8x20xf32>
    %cst_20 = arith.constant 5.000000e-01 : f32
    %31 = vector.broadcast %cst_20 : f32 to vector<8x20xf32>
    %32 = arith.addf %30, %31 : vector<8x20xf32>
    %33 = vector.extract_strided_slice %16 {offsets = [0, 256], sizes = [8, 20], strides = [1, 1]} : vector<8x512xf32> to vector<8x20xf32>
    %34 = math.tanh %33 : vector<8x20xf32>
    %35 = vector.extract_strided_slice %16 {offsets = [0, 384], sizes = [8, 20], strides = [1, 1]} : vector<8x512xf32> to vector<8x20xf32>
    %cst_21 = arith.constant 5.000000e-01 : f32
    %36 = vector.broadcast %cst_21 : f32 to vector<8x20xf32>
    %37 = arith.mulf %36, %35 : vector<8x20xf32>
    %38 = math.tanh %37 : vector<8x20xf32>
    %cst_22 = arith.constant 5.000000e-01 : f32
    %39 = vector.broadcast %cst_22 : f32 to vector<8x20xf32>
    %40 = arith.mulf %39, %38 : vector<8x20xf32>
    %cst_23 = arith.constant 5.000000e-01 : f32
    %41 = vector.broadcast %cst_23 : f32 to vector<8x20xf32>
    %42 = arith.addf %40, %41 : vector<8x20xf32>
    %43 = arith.mulf %32, %1 : vector<8x20xf32>
    %44 = arith.mulf %24, %34 : vector<8x20xf32>
    %45 = arith.addf %43, %44 : vector<8x20xf32>
    %46 = math.tanh %45 : vector<8x20xf32>
    %47 = arith.mulf %42, %46 : vector<8x20xf32>
    %48 = tpu.concatenate %47, %2 in 1 : vector<8x20xf32>, vector<8x20xf32> -> vector<8x40xf32>
    %c0_24 = arith.constant 0 : index
    %c0_25 = arith.constant 0 : index
    %49 = vector.load %arg9[%c0_24, %c0_25] : memref<40x512xf32, #tpu.memory_space<vmem>>, vector<40x512xf32>
    %cst_26 = arith.constant dense<0.000000e+00> : vector<8x512xf32>
    %50 = tpu.matmul %48, %49, %cst_26 {dimension_numbers = #tpu.dot_dimension_numbers<[1], [0], [0], [1], [0, 0, 1, 1], [], []>} : vector<8x40xf32>, vector<40x512xf32>, vector<8x512xf32> -> vector<8x512xf32>
    %c0_27 = arith.constant 0 : index
    %c0_28 = arith.constant 0 : index
    %51 = vector.load %arg10[%c0_27, %c0_28] : memref<1x512xf32, #tpu.memory_space<vmem>>, vector<1x512xf32>
    %52 = vector.broadcast %51 : vector<1x512xf32> to vector<8x512xf32>
    %53 = arith.addf %50, %52 : vector<8x512xf32>
    %54 = vector.extract_strided_slice %53 {offsets = [0, 0], sizes = [8, 20], strides = [1, 1]} : vector<8x512xf32> to vector<8x20xf32>
    %cst_29 = arith.constant 5.000000e-01 : f32
    %55 = vector.broadcast %cst_29 : f32 to vector<8x20xf32>
    %56 = arith.mulf %55, %54 : vector<8x20xf32>
    %57 = math.tanh %56 : vector<8x20xf32>
    %cst_30 = arith.constant 5.000000e-01 : f32
    %58 = vector.broadcast %cst_30 : f32 to vector<8x20xf32>
    %59 = arith.mulf %58, %57 : vector<8x20xf32>
    %cst_31 = arith.constant 5.000000e-01 : f32
    %60 = vector.broadcast %cst_31 : f32 to vector<8x20xf32>
    %61 = arith.addf %59, %60 : vector<8x20xf32>
    %62 = vector.extract_strided_slice %53 {offsets = [0, 128], sizes = [8, 20], strides = [1, 1]} : vector<8x512xf32> to vector<8x20xf32>
    %cst_32 = arith.constant 5.000000e-01 : f32
    %63 = vector.broadcast %cst_32 : f32 to vector<8x20xf32>
    %64 = arith.mulf %63, %62 : vector<8x20xf32>
    %65 = math.tanh %64 : vector<8x20xf32>
    %cst_33 = arith.constant 5.000000e-01 : f32
    %66 = vector.broadcast %cst_33 : f32 to vector<8x20xf32>
    %67 = arith.mulf %66, %65 : vector<8x20xf32>
    %cst_34 = arith.constant 5.000000e-01 : f32
    %68 = vector.broadcast %cst_34 : f32 to vector<8x20xf32>
    %69 = arith.addf %67, %68 : vector<8x20xf32>
    %70 = vector.extract_strided_slice %53 {offsets = [0, 256], sizes = [8, 20], strides = [1, 1]} : vector<8x512xf32> to vector<8x20xf32>
    %71 = math.tanh %70 : vector<8x20xf32>
    %72 = vector.extract_strided_slice %53 {offsets = [0, 384], sizes = [8, 20], strides = [1, 1]} : vector<8x512xf32> to vector<8x20xf32>
    %cst_35 = arith.constant 5.000000e-01 : f32
    %73 = vector.broadcast %cst_35 : f32 to vector<8x20xf32>
    %74 = arith.mulf %73, %72 : vector<8x20xf32>
    %75 = math.tanh %74 : vector<8x20xf32>
    %cst_36 = arith.constant 5.000000e-01 : f32
    %76 = vector.broadcast %cst_36 : f32 to vector<8x20xf32>
    %77 = arith.mulf %76, %75 : vector<8x20xf32>
    %cst_37 = arith.constant 5.000000e-01 : f32
    %78 = vector.broadcast %cst_37 : f32 to vector<8x20xf32>
    %79 = arith.addf %77, %78 : vector<8x20xf32>
    %80 = arith.mulf %69, %3 : vector<8x20xf32>
    %81 = arith.mulf %61, %71 : vector<8x20xf32>
    %82 = arith.addf %80, %81 : vector<8x20xf32>
    %83 = math.tanh %82 : vector<8x20xf32>
    %84 = arith.mulf %79, %83 : vector<8x20xf32>
    %c0_38 = arith.constant 0 : index
    %c0_39 = arith.constant 0 : index
    %85 = vector.load %arg11[%c0_38, %c0_39] : memref<1x20xf32, #tpu.memory_space<vmem>>, vector<1x20xf32>
    %86 = vector.broadcast %85 : vector<1x20xf32> to vector<8x20xf32>
    %87 = arith.mulf %84, %86 : vector<8x20xf32>
    %cst_40 = arith.constant dense<0.000000e+00> : vector<8xf32>
    %88 = vector.multi_reduction <add>, %87, %cst_40 [1] : vector<8x20xf32> to vector<8xf32>
    %89 = vector.shape_cast %88 : vector<8xf32> to vector<8x1xf32>
    %c0_41 = arith.constant 0 : index
    %c0_42 = arith.constant 0 : index
    %90 = vector.load %arg12[%c0_41, %c0_42] : memref<1x1xf32, #tpu.memory_space<vmem>>, vector<1x1xf32>
    %91 = vector.broadcast %90 : vector<1x1xf32> to vector<8x1xf32>
    %92 = arith.addf %89, %91 : vector<8x1xf32>
    %93 = arith.index_cast %c0_i32 : i32 to index
    %c0_43 = arith.constant 0 : index
    %c0_44 = arith.constant 0 : index
    %94 = vector.load %arg13[%93, %c0_43, %c0_44] : memref<8x8x1xf32, #tpu.memory_space<vmem>>, vector<1x8x1xf32>
    %95 = vector.shape_cast %94 : vector<1x8x1xf32> to vector<8x1xf32>
    %96 = vector.shape_cast %92 : vector<8x1xf32> to vector<1x8x1xf32>
    tpu.vector_store %arg13[%93, %c0_43, %c0_44], %96 {strides = array<i32>} : memref<8x8x1xf32, #tpu.memory_space<vmem>>, vector<1x8x1xf32>,
    %c1_i32 = arith.constant 1 : i32
    %97 = arith.index_cast %c1_i32 : i32 to index
    %c0_45 = arith.constant 0 : index
    %c0_46 = arith.constant 0 : index
    %98 = vector.load %arg1[%97, %c0_45, %c0_46] : memref<8x8x1xf32, #tpu.memory_space<vmem>>, vector<1x8x1xf32>
    %99 = vector.shape_cast %98 : vector<1x8x1xf32> to vector<8x1xf32>
    %c0_47 = arith.constant 0 : index
    %c0_48 = arith.constant 0 : index
    %100 = vector.load %arg6[%c0_47, %c0_48] : memref<1x512xf32, #tpu.memory_space<vmem>>, vector<1x512xf32>
    %101 = vector.broadcast %99 : vector<8x1xf32> to vector<8x512xf32>
    %102 = vector.broadcast %100 : vector<1x512xf32> to vector<8x512xf32>
    %103 = arith.mulf %101, %102 : vector<8x512xf32>
    %c0_49 = arith.constant 0 : index
    %c0_50 = arith.constant 0 : index
    %104 = vector.load %arg7[%c0_49, %c0_50] : memref<20x512xf32, #tpu.memory_space<vmem>>, vector<20x512xf32>
    %cst_51 = arith.constant dense<0.000000e+00> : vector<8x512xf32>
    %105 = tpu.matmul %47, %104, %cst_51 {dimension_numbers = #tpu.dot_dimension_numbers<[1], [0], [0], [1], [0, 0, 1, 1], [], []>} : vector<8x20xf32>, vector<20x512xf32>, vector<8x512xf32> -> vector<8x512xf32>
    %106 = arith.addf %103, %105 : vector<8x512xf32>
    %c0_52 = arith.constant 0 : index
    %c0_53 = arith.constant 0 : index
    %107 = vector.load %arg8[%c0_52, %c0_53] : memref<1x512xf32, #tpu.memory_space<vmem>>, vector<1x512xf32>
    %108 = vector.broadcast %107 : vector<1x512xf32> to vector<8x512xf32>
    %109 = arith.addf %106, %108 : vector<8x512xf32>
    %110 = vector.extract_strided_slice %109 {offsets = [0, 0], sizes = [8, 20], strides = [1, 1]} : vector<8x512xf32> to vector<8x20xf32>
    %cst_54 = arith.constant 5.000000e-01 : f32
    %111 = vector.broadcast %cst_54 : f32 to vector<8x20xf32>
    %112 = arith.mulf %111, %110 : vector<8x20xf32>
    %113 = math.tanh %112 : vector<8x20xf32>
    %cst_55 = arith.constant 5.000000e-01 : f32
    %114 = vector.broadcast %cst_55 : f32 to vector<8x20xf32>
    %115 = arith.mulf %114, %113 : vector<8x20xf32>
    %cst_56 = arith.constant 5.000000e-01 : f32
    %116 = vector.broadcast %cst_56 : f32 to vector<8x20xf32>
    %117 = arith.addf %115, %116 : vector<8x20xf32>
    %118 = vector.extract_strided_slice %109 {offsets = [0, 128], sizes = [8, 20], strides = [1, 1]} : vector<8x512xf32> to vector<8x20xf32>
    %cst_57 = arith.constant 5.000000e-01 : f32
    %119 = vector.broadcast %cst_57 : f32 to vector<8x20xf32>
    %120 = arith.mulf %119, %118 : vector<8x20xf32>
    %121 = math.tanh %120 : vector<8x20xf32>
    %cst_58 = arith.constant 5.000000e-01 : f32
    %122 = vector.broadcast %cst_58 : f32 to vector<8x20xf32>
    %123 = arith.mulf %122, %121 : vector<8x20xf32>
    %cst_59 = arith.constant 5.000000e-01 : f32
    %124 = vector.broadcast %cst_59 : f32 to vector<8x20xf32>
    %125 = arith.addf %123, %124 : vector<8x20xf32>
    %126 = vector.extract_strided_slice %109 {offsets = [0, 256], sizes = [8, 20], strides = [1, 1]} : vector<8x512xf32> to vector<8x20xf32>
    %127 = math.tanh %126 : vector<8x20xf32>
    %128 = vector.extract_strided_slice %109 {offsets = [0, 384], sizes = [8, 20], strides = [1, 1]} : vector<8x512xf32> to vector<8x20xf32>
    %cst_60 = arith.constant 5.000000e-01 : f32
    %129 = vector.broadcast %cst_60 : f32 to vector<8x20xf32>
    %130 = arith.mulf %129, %128 : vector<8x20xf32>
    %131 = math.tanh %130 : vector<8x20xf32>
    %cst_61 = arith.constant 5.000000e-01 : f32
    %132 = vector.broadcast %cst_61 : f32 to vector<8x20xf32>
    %133 = arith.mulf %132, %131 : vector<8x20xf32>
    %cst_62 = arith.constant 5.000000e-01 : f32
    %134 = vector.broadcast %cst_62 : f32 to vector<8x20xf32>
    %135 = arith.addf %133, %134 : vector<8x20xf32>
    %136 = arith.mulf %125, %45 : vector<8x20xf32>
    %137 = arith.mulf %117, %127 : vector<8x20xf32>
    %138 = arith.addf %136, %137 : vector<8x20xf32>
    %139 = math.tanh %138 : vector<8x20xf32>
    %140 = arith.mulf %135, %139 : vector<8x20xf32>
    %141 = tpu.concatenate %140, %84 in 1 : vector<8x20xf32>, vector<8x20xf32> -> vector<8x40xf32>
    %c0_63 = arith.constant 0 : index
    %c0_64 = arith.constant 0 : index
    %142 = vector.load %arg9[%c0_63, %c0_64] : memref<40x512xf32, #tpu.memory_space<vmem>>, vector<40x512xf32>
    %cst_65 = arith.constant dense<0.000000e+00> : vector<8x512xf32>
    %143 = tpu.matmul %141, %142, %cst_65 {dimension_numbers = #tpu.dot_dimension_numbers<[1], [0], [0], [1], [0, 0, 1, 1], [], []>} : vector<8x40xf32>, vector<40x512xf32>, vector<8x512xf32> -> vector<8x512xf32>
    %c0_66 = arith.constant 0 : index
    %c0_67 = arith.constant 0 : index
    %144 = vector.load %arg10[%c0_66, %c0_67] : memref<1x512xf32, #tpu.memory_space<vmem>>, vector<1x512xf32>
    %145 = vector.broadcast %144 : vector<1x512xf32> to vector<8x512xf32>
    %146 = arith.addf %143, %145 : vector<8x512xf32>
    %147 = vector.extract_strided_slice %146 {offsets = [0, 0], sizes = [8, 20], strides = [1, 1]} : vector<8x512xf32> to vector<8x20xf32>
    %cst_68 = arith.constant 5.000000e-01 : f32
    %148 = vector.broadcast %cst_68 : f32 to vector<8x20xf32>
    %149 = arith.mulf %148, %147 : vector<8x20xf32>
    %150 = math.tanh %149 : vector<8x20xf32>
    %cst_69 = arith.constant 5.000000e-01 : f32
    %151 = vector.broadcast %cst_69 : f32 to vector<8x20xf32>
    %152 = arith.mulf %151, %150 : vector<8x20xf32>
    %cst_70 = arith.constant 5.000000e-01 : f32
    %153 = vector.broadcast %cst_70 : f32 to vector<8x20xf32>
    %154 = arith.addf %152, %153 : vector<8x20xf32>
    %155 = vector.extract_strided_slice %146 {offsets = [0, 128], sizes = [8, 20], strides = [1, 1]} : vector<8x512xf32> to vector<8x20xf32>
    %cst_71 = arith.constant 5.000000e-01 : f32
    %156 = vector.broadcast %cst_71 : f32 to vector<8x20xf32>
    %157 = arith.mulf %156, %155 : vector<8x20xf32>
    %158 = math.tanh %157 : vector<8x20xf32>
    %cst_72 = arith.constant 5.000000e-01 : f32
    %159 = vector.broadcast %cst_72 : f32 to vector<8x20xf32>
    %160 = arith.mulf %159, %158 : vector<8x20xf32>
    %cst_73 = arith.constant 5.000000e-01 : f32
    %161 = vector.broadcast %cst_73 : f32 to vector<8x20xf32>
    %162 = arith.addf %160, %161 : vector<8x20xf32>
    %163 = vector.extract_strided_slice %146 {offsets = [0, 256], sizes = [8, 20], strides = [1, 1]} : vector<8x512xf32> to vector<8x20xf32>
    %164 = math.tanh %163 : vector<8x20xf32>
    %165 = vector.extract_strided_slice %146 {offsets = [0, 384], sizes = [8, 20], strides = [1, 1]} : vector<8x512xf32> to vector<8x20xf32>
    %cst_74 = arith.constant 5.000000e-01 : f32
    %166 = vector.broadcast %cst_74 : f32 to vector<8x20xf32>
    %167 = arith.mulf %166, %165 : vector<8x20xf32>
    %168 = math.tanh %167 : vector<8x20xf32>
    %cst_75 = arith.constant 5.000000e-01 : f32
    %169 = vector.broadcast %cst_75 : f32 to vector<8x20xf32>
    %170 = arith.mulf %169, %168 : vector<8x20xf32>
    %cst_76 = arith.constant 5.000000e-01 : f32
    %171 = vector.broadcast %cst_76 : f32 to vector<8x20xf32>
    %172 = arith.addf %170, %171 : vector<8x20xf32>
    %173 = arith.mulf %162, %82 : vector<8x20xf32>
    %174 = arith.mulf %154, %164 : vector<8x20xf32>
    %175 = arith.addf %173, %174 : vector<8x20xf32>
    %176 = math.tanh %175 : vector<8x20xf32>
    %177 = arith.mulf %172, %176 : vector<8x20xf32>
    %c0_77 = arith.constant 0 : index
    %c0_78 = arith.constant 0 : index
    %178 = vector.load %arg11[%c0_77, %c0_78] : memref<1x20xf32, #tpu.memory_space<vmem>>, vector<1x20xf32>
    %179 = vector.broadcast %178 : vector<1x20xf32> to vector<8x20xf32>
    %180 = arith.mulf %177, %179 : vector<8x20xf32>
    %cst_79 = arith.constant dense<0.000000e+00> : vector<8xf32>
    %181 = vector.multi_reduction <add>, %180, %cst_79 [1] : vector<8x20xf32> to vector<8xf32>
    %182 = vector.shape_cast %181 : vector<8xf32> to vector<8x1xf32>
    %c0_80 = arith.constant 0 : index
    %c0_81 = arith.constant 0 : index
    %183 = vector.load %arg12[%c0_80, %c0_81] : memref<1x1xf32, #tpu.memory_space<vmem>>, vector<1x1xf32>
    %184 = vector.broadcast %183 : vector<1x1xf32> to vector<8x1xf32>
    %185 = arith.addf %182, %184 : vector<8x1xf32>
    %186 = arith.index_cast %c1_i32 : i32 to index
    %c0_82 = arith.constant 0 : index
    %c0_83 = arith.constant 0 : index
    %187 = vector.load %arg13[%186, %c0_82, %c0_83] : memref<8x8x1xf32, #tpu.memory_space<vmem>>, vector<1x8x1xf32>
    %188 = vector.shape_cast %187 : vector<1x8x1xf32> to vector<8x1xf32>
    %189 = vector.shape_cast %185 : vector<8x1xf32> to vector<1x8x1xf32>
    tpu.vector_store %arg13[%186, %c0_82, %c0_83], %189 {strides = array<i32>} : memref<8x8x1xf32, #tpu.memory_space<vmem>>, vector<1x8x1xf32>,
    %c2_i32 = arith.constant 2 : i32
    %190 = arith.index_cast %c2_i32 : i32 to index
    %c0_84 = arith.constant 0 : index
    %c0_85 = arith.constant 0 : index
    %191 = vector.load %arg1[%190, %c0_84, %c0_85] : memref<8x8x1xf32, #tpu.memory_space<vmem>>, vector<1x8x1xf32>
    %192 = vector.shape_cast %191 : vector<1x8x1xf32> to vector<8x1xf32>
    %c0_86 = arith.constant 0 : index
    %c0_87 = arith.constant 0 : index
    %193 = vector.load %arg6[%c0_86, %c0_87] : memref<1x512xf32, #tpu.memory_space<vmem>>, vector<1x512xf32>
    %194 = vector.broadcast %192 : vector<8x1xf32> to vector<8x512xf32>
    %195 = vector.broadcast %193 : vector<1x512xf32> to vector<8x512xf32>
    %196 = arith.mulf %194, %195 : vector<8x512xf32>
    %c0_88 = arith.constant 0 : index
    %c0_89 = arith.constant 0 : index
    %197 = vector.load %arg7[%c0_88, %c0_89] : memref<20x512xf32, #tpu.memory_space<vmem>>, vector<20x512xf32>
    %cst_90 = arith.constant dense<0.000000e+00> : vector<8x512xf32>
    %198 = tpu.matmul %140, %197, %cst_90 {dimension_numbers = #tpu.dot_dimension_numbers<[1], [0], [0], [1], [0, 0, 1, 1], [], []>} : vector<8x20xf32>, vector<20x512xf32>, vector<8x512xf32> -> vector<8x512xf32>
    %199 = arith.addf %196, %198 : vector<8x512xf32>
    %c0_91 = arith.constant 0 : index
    %c0_92 = arith.constant 0 : index
    %200 = vector.load %arg8[%c0_91, %c0_92] : memref<1x512xf32, #tpu.memory_space<vmem>>, vector<1x512xf32>
    %201 = vector.broadcast %200 : vector<1x512xf32> to vector<8x512xf32>
    %202 = arith.addf %199, %201 : vector<8x512xf32>
    %203 = vector.extract_strided_slice %202 {offsets = [0, 0], sizes = [8, 20], strides = [1, 1]} : vector<8x512xf32> to vector<8x20xf32>
    %cst_93 = arith.constant 5.000000e-01 : f32
    %204 = vector.broadcast %cst_93 : f32 to vector<8x20xf32>
    %205 = arith.mulf %204, %203 : vector<8x20xf32>
    %206 = math.tanh %205 : vector<8x20xf32>
    %cst_94 = arith.constant 5.000000e-01 : f32
    %207 = vector.broadcast %cst_94 : f32 to vector<8x20xf32>
    %208 = arith.mulf %207, %206 : vector<8x20xf32>
    %cst_95 = arith.constant 5.000000e-01 : f32
    %209 = vector.broadcast %cst_95 : f32 to vector<8x20xf32>
    %210 = arith.addf %208, %209 : vector<8x20xf32>
    %211 = vector.extract_strided_slice %202 {offsets = [0, 128], sizes = [8, 20], strides = [1, 1]} : vector<8x512xf32> to vector<8x20xf32>
    %cst_96 = arith.constant 5.000000e-01 : f32
    %212 = vector.broadcast %cst_96 : f32 to vector<8x20xf32>
    %213 = arith.mulf %212, %211 : vector<8x20xf32>
    %214 = math.tanh %213 : vector<8x20xf32>
    %cst_97 = arith.constant 5.000000e-01 : f32
    %215 = vector.broadcast %cst_97 : f32 to vector<8x20xf32>
    %216 = arith.mulf %215, %214 : vector<8x20xf32>
    %cst_98 = arith.constant 5.000000e-01 : f32
    %217 = vector.broadcast %cst_98 : f32 to vector<8x20xf32>
    %218 = arith.addf %216, %217 : vector<8x20xf32>
    %219 = vector.extract_strided_slice %202 {offsets = [0, 256], sizes = [8, 20], strides = [1, 1]} : vector<8x512xf32> to vector<8x20xf32>
    %220 = math.tanh %219 : vector<8x20xf32>
    %221 = vector.extract_strided_slice %202 {offsets = [0, 384], sizes = [8, 20], strides = [1, 1]} : vector<8x512xf32> to vector<8x20xf32>
    %cst_99 = arith.constant 5.000000e-01 : f32
    %222 = vector.broadcast %cst_99 : f32 to vector<8x20xf32>
    %223 = arith.mulf %222, %221 : vector<8x20xf32>
    %224 = math.tanh %223 : vector<8x20xf32>
    %cst_100 = arith.constant 5.000000e-01 : f32
    %225 = vector.broadcast %cst_100 : f32 to vector<8x20xf32>
    %226 = arith.mulf %225, %224 : vector<8x20xf32>
    %cst_101 = arith.constant 5.000000e-01 : f32
    %227 = vector.broadcast %cst_101 : f32 to vector<8x20xf32>
    %228 = arith.addf %226, %227 : vector<8x20xf32>
    %229 = arith.mulf %218, %138 : vector<8x20xf32>
    %230 = arith.mulf %210, %220 : vector<8x20xf32>
    %231 = arith.addf %229, %230 : vector<8x20xf32>
    %232 = math.tanh %231 : vector<8x20xf32>
    %233 = arith.mulf %228, %232 : vector<8x20xf32>
    %234 = tpu.concatenate %233, %177 in 1 : vector<8x20xf32>, vector<8x20xf32> -> vector<8x40xf32>
    %c0_102 = arith.constant 0 : index
    %c0_103 = arith.constant 0 : index
    %235 = vector.load %arg9[%c0_102, %c0_103] : memref<40x512xf32, #tpu.memory_space<vmem>>, vector<40x512xf32>
    %cst_104 = arith.constant dense<0.000000e+00> : vector<8x512xf32>
    %236 = tpu.matmul %234, %235, %cst_104 {dimension_numbers = #tpu.dot_dimension_numbers<[1], [0], [0], [1], [0, 0, 1, 1], [], []>} : vector<8x40xf32>, vector<40x512xf32>, vector<8x512xf32> -> vector<8x512xf32>
    %c0_105 = arith.constant 0 : index
    %c0_106 = arith.constant 0 : index
    %237 = vector.load %arg10[%c0_105, %c0_106] : memref<1x512xf32, #tpu.memory_space<vmem>>, vector<1x512xf32>
    %238 = vector.broadcast %237 : vector<1x512xf32> to vector<8x512xf32>
    %239 = arith.addf %236, %238 : vector<8x512xf32>
    %240 = vector.extract_strided_slice %239 {offsets = [0, 0], sizes = [8, 20], strides = [1, 1]} : vector<8x512xf32> to vector<8x20xf32>
    %cst_107 = arith.constant 5.000000e-01 : f32
    %241 = vector.broadcast %cst_107 : f32 to vector<8x20xf32>
    %242 = arith.mulf %241, %240 : vector<8x20xf32>
    %243 = math.tanh %242 : vector<8x20xf32>
    %cst_108 = arith.constant 5.000000e-01 : f32
    %244 = vector.broadcast %cst_108 : f32 to vector<8x20xf32>
    %245 = arith.mulf %244, %243 : vector<8x20xf32>
    %cst_109 = arith.constant 5.000000e-01 : f32
    %246 = vector.broadcast %cst_109 : f32 to vector<8x20xf32>
    %247 = arith.addf %245, %246 : vector<8x20xf32>
    %248 = vector.extract_strided_slice %239 {offsets = [0, 128], sizes = [8, 20], strides = [1, 1]} : vector<8x512xf32> to vector<8x20xf32>
    %cst_110 = arith.constant 5.000000e-01 : f32
    %249 = vector.broadcast %cst_110 : f32 to vector<8x20xf32>
    %250 = arith.mulf %249, %248 : vector<8x20xf32>
    %251 = math.tanh %250 : vector<8x20xf32>
    %cst_111 = arith.constant 5.000000e-01 : f32
    %252 = vector.broadcast %cst_111 : f32 to vector<8x20xf32>
    %253 = arith.mulf %252, %251 : vector<8x20xf32>
    %cst_112 = arith.constant 5.000000e-01 : f32
    %254 = vector.broadcast %cst_112 : f32 to vector<8x20xf32>
    %255 = arith.addf %253, %254 : vector<8x20xf32>
    %256 = vector.extract_strided_slice %239 {offsets = [0, 256], sizes = [8, 20], strides = [1, 1]} : vector<8x512xf32> to vector<8x20xf32>
    %257 = math.tanh %256 : vector<8x20xf32>
    %258 = vector.extract_strided_slice %239 {offsets = [0, 384], sizes = [8, 20], strides = [1, 1]} : vector<8x512xf32> to vector<8x20xf32>
    %cst_113 = arith.constant 5.000000e-01 : f32
    %259 = vector.broadcast %cst_113 : f32 to vector<8x20xf32>
    %260 = arith.mulf %259, %258 : vector<8x20xf32>
    %261 = math.tanh %260 : vector<8x20xf32>
    %cst_114 = arith.constant 5.000000e-01 : f32
    %262 = vector.broadcast %cst_114 : f32 to vector<8x20xf32>
    %263 = arith.mulf %262, %261 : vector<8x20xf32>
    %cst_115 = arith.constant 5.000000e-01 : f32
    %264 = vector.broadcast %cst_115 : f32 to vector<8x20xf32>
    %265 = arith.addf %263, %264 : vector<8x20xf32>
    %266 = arith.mulf %255, %175 : vector<8x20xf32>
    %267 = arith.mulf %247, %257 : vector<8x20xf32>
    %268 = arith.addf %266, %267 : vector<8x20xf32>
    %269 = math.tanh %268 : vector<8x20xf32>
    %270 = arith.mulf %265, %269 : vector<8x20xf32>
    %c0_116 = arith.constant 0 : index
    %c0_117 = arith.constant 0 : index
    %271 = vector.load %arg11[%c0_116, %c0_117] : memref<1x20xf32, #tpu.memory_space<vmem>>, vector<1x20xf32>
    %272 = vector.broadcast %271 : vector<1x20xf32> to vector<8x20xf32>
    %273 = arith.mulf %270, %272 : vector<8x20xf32>
    %cst_118 = arith.constant dense<0.000000e+00> : vector<8xf32>
    %274 = vector.multi_reduction <add>, %273, %cst_118 [1] : vector<8x20xf32> to vector<8xf32>
    %275 = vector.shape_cast %274 : vector<8xf32> to vector<8x1xf32>
    %c0_119 = arith.constant 0 : index
    %c0_120 = arith.constant 0 : index
    %276 = vector.load %arg12[%c0_119, %c0_120] : memref<1x1xf32, #tpu.memory_space<vmem>>, vector<1x1xf32>
    %277 = vector.broadcast %276 : vector<1x1xf32> to vector<8x1xf32>
    %278 = arith.addf %275, %277 : vector<8x1xf32>
    %279 = arith.index_cast %c2_i32 : i32 to index
    %c0_121 = arith.constant 0 : index
    %c0_122 = arith.constant 0 : index
    %280 = vector.load %arg13[%279, %c0_121, %c0_122] : memref<8x8x1xf32, #tpu.memory_space<vmem>>, vector<1x8x1xf32>
    %281 = vector.shape_cast %280 : vector<1x8x1xf32> to vector<8x1xf32>
    %282 = vector.shape_cast %278 : vector<8x1xf32> to vector<1x8x1xf32>
    tpu.vector_store %arg13[%279, %c0_121, %c0_122], %282 {strides = array<i32>} : memref<8x8x1xf32, #tpu.memory_space<vmem>>, vector<1x8x1xf32>,
    %c3_i32 = arith.constant 3 : i32
    %283 = arith.index_cast %c3_i32 : i32 to index
    %c0_123 = arith.constant 0 : index
    %c0_124 = arith.constant 0 : index
    %284 = vector.load %arg1[%283, %c0_123, %c0_124] : memref<8x8x1xf32, #tpu.memory_space<vmem>>, vector<1x8x1xf32>
    %285 = vector.shape_cast %284 : vector<1x8x1xf32> to vector<8x1xf32>
    %c0_125 = arith.constant 0 : index
    %c0_126 = arith.constant 0 : index
    %286 = vector.load %arg6[%c0_125, %c0_126] : memref<1x512xf32, #tpu.memory_space<vmem>>, vector<1x512xf32>
    %287 = vector.broadcast %285 : vector<8x1xf32> to vector<8x512xf32>
    %288 = vector.broadcast %286 : vector<1x512xf32> to vector<8x512xf32>
    %289 = arith.mulf %287, %288 : vector<8x512xf32>
    %c0_127 = arith.constant 0 : index
    %c0_128 = arith.constant 0 : index
    %290 = vector.load %arg7[%c0_127, %c0_128] : memref<20x512xf32, #tpu.memory_space<vmem>>, vector<20x512xf32>
    %cst_129 = arith.constant dense<0.000000e+00> : vector<8x512xf32>
    %291 = tpu.matmul %233, %290, %cst_129 {dimension_numbers = #tpu.dot_dimension_numbers<[1], [0], [0], [1], [0, 0, 1, 1], [], []>} : vector<8x20xf32>, vector<20x512xf32>, vector<8x512xf32> -> vector<8x512xf32>
    %292 = arith.addf %289, %291 : vector<8x512xf32>
    %c0_130 = arith.constant 0 : index
    %c0_131 = arith.constant 0 : index
    %293 = vector.load %arg8[%c0_130, %c0_131] : memref<1x512xf32, #tpu.memory_space<vmem>>, vector<1x512xf32>
    %294 = vector.broadcast %293 : vector<1x512xf32> to vector<8x512xf32>
    %295 = arith.addf %292, %294 : vector<8x512xf32>
    %296 = vector.extract_strided_slice %295 {offsets = [0, 0], sizes = [8, 20], strides = [1, 1]} : vector<8x512xf32> to vector<8x20xf32>
    %cst_132 = arith.constant 5.000000e-01 : f32
    %297 = vector.broadcast %cst_132 : f32 to vector<8x20xf32>
    %298 = arith.mulf %297, %296 : vector<8x20xf32>
    %299 = math.tanh %298 : vector<8x20xf32>
    %cst_133 = arith.constant 5.000000e-01 : f32
    %300 = vector.broadcast %cst_133 : f32 to vector<8x20xf32>
    %301 = arith.mulf %300, %299 : vector<8x20xf32>
    %cst_134 = arith.constant 5.000000e-01 : f32
    %302 = vector.broadcast %cst_134 : f32 to vector<8x20xf32>
    %303 = arith.addf %301, %302 : vector<8x20xf32>
    %304 = vector.extract_strided_slice %295 {offsets = [0, 128], sizes = [8, 20], strides = [1, 1]} : vector<8x512xf32> to vector<8x20xf32>
    %cst_135 = arith.constant 5.000000e-01 : f32
    %305 = vector.broadcast %cst_135 : f32 to vector<8x20xf32>
    %306 = arith.mulf %305, %304 : vector<8x20xf32>
    %307 = math.tanh %306 : vector<8x20xf32>
    %cst_136 = arith.constant 5.000000e-01 : f32
    %308 = vector.broadcast %cst_136 : f32 to vector<8x20xf32>
    %309 = arith.mulf %308, %307 : vector<8x20xf32>
    %cst_137 = arith.constant 5.000000e-01 : f32
    %310 = vector.broadcast %cst_137 : f32 to vector<8x20xf32>
    %311 = arith.addf %309, %310 : vector<8x20xf32>
    %312 = vector.extract_strided_slice %295 {offsets = [0, 256], sizes = [8, 20], strides = [1, 1]} : vector<8x512xf32> to vector<8x20xf32>
    %313 = math.tanh %312 : vector<8x20xf32>
    %314 = vector.extract_strided_slice %295 {offsets = [0, 384], sizes = [8, 20], strides = [1, 1]} : vector<8x512xf32> to vector<8x20xf32>
    %cst_138 = arith.constant 5.000000e-01 : f32
    %315 = vector.broadcast %cst_138 : f32 to vector<8x20xf32>
    %316 = arith.mulf %315, %314 : vector<8x20xf32>
    %317 = math.tanh %316 : vector<8x20xf32>
    %cst_139 = arith.constant 5.000000e-01 : f32
    %318 = vector.broadcast %cst_139 : f32 to vector<8x20xf32>
    %319 = arith.mulf %318, %317 : vector<8x20xf32>
    %cst_140 = arith.constant 5.000000e-01 : f32
    %320 = vector.broadcast %cst_140 : f32 to vector<8x20xf32>
    %321 = arith.addf %319, %320 : vector<8x20xf32>
    %322 = arith.mulf %311, %231 : vector<8x20xf32>
    %323 = arith.mulf %303, %313 : vector<8x20xf32>
    %324 = arith.addf %322, %323 : vector<8x20xf32>
    %325 = math.tanh %324 : vector<8x20xf32>
    %326 = arith.mulf %321, %325 : vector<8x20xf32>
    %327 = tpu.concatenate %326, %270 in 1 : vector<8x20xf32>, vector<8x20xf32> -> vector<8x40xf32>
    %c0_141 = arith.constant 0 : index
    %c0_142 = arith.constant 0 : index
    %328 = vector.load %arg9[%c0_141, %c0_142] : memref<40x512xf32, #tpu.memory_space<vmem>>, vector<40x512xf32>
    %cst_143 = arith.constant dense<0.000000e+00> : vector<8x512xf32>
    %329 = tpu.matmul %327, %328, %cst_143 {dimension_numbers = #tpu.dot_dimension_numbers<[1], [0], [0], [1], [0, 0, 1, 1], [], []>} : vector<8x40xf32>, vector<40x512xf32>, vector<8x512xf32> -> vector<8x512xf32>
    %c0_144 = arith.constant 0 : index
    %c0_145 = arith.constant 0 : index
    %330 = vector.load %arg10[%c0_144, %c0_145] : memref<1x512xf32, #tpu.memory_space<vmem>>, vector<1x512xf32>
    %331 = vector.broadcast %330 : vector<1x512xf32> to vector<8x512xf32>
    %332 = arith.addf %329, %331 : vector<8x512xf32>
    %333 = vector.extract_strided_slice %332 {offsets = [0, 0], sizes = [8, 20], strides = [1, 1]} : vector<8x512xf32> to vector<8x20xf32>
    %cst_146 = arith.constant 5.000000e-01 : f32
    %334 = vector.broadcast %cst_146 : f32 to vector<8x20xf32>
    %335 = arith.mulf %334, %333 : vector<8x20xf32>
    %336 = math.tanh %335 : vector<8x20xf32>
    %cst_147 = arith.constant 5.000000e-01 : f32
    %337 = vector.broadcast %cst_147 : f32 to vector<8x20xf32>
    %338 = arith.mulf %337, %336 : vector<8x20xf32>
    %cst_148 = arith.constant 5.000000e-01 : f32
    %339 = vector.broadcast %cst_148 : f32 to vector<8x20xf32>
    %340 = arith.addf %338, %339 : vector<8x20xf32>
    %341 = vector.extract_strided_slice %332 {offsets = [0, 128], sizes = [8, 20], strides = [1, 1]} : vector<8x512xf32> to vector<8x20xf32>
    %cst_149 = arith.constant 5.000000e-01 : f32
    %342 = vector.broadcast %cst_149 : f32 to vector<8x20xf32>
    %343 = arith.mulf %342, %341 : vector<8x20xf32>
    %344 = math.tanh %343 : vector<8x20xf32>
    %cst_150 = arith.constant 5.000000e-01 : f32
    %345 = vector.broadcast %cst_150 : f32 to vector<8x20xf32>
    %346 = arith.mulf %345, %344 : vector<8x20xf32>
    %cst_151 = arith.constant 5.000000e-01 : f32
    %347 = vector.broadcast %cst_151 : f32 to vector<8x20xf32>
    %348 = arith.addf %346, %347 : vector<8x20xf32>
    %349 = vector.extract_strided_slice %332 {offsets = [0, 256], sizes = [8, 20], strides = [1, 1]} : vector<8x512xf32> to vector<8x20xf32>
    %350 = math.tanh %349 : vector<8x20xf32>
    %351 = vector.extract_strided_slice %332 {offsets = [0, 384], sizes = [8, 20], strides = [1, 1]} : vector<8x512xf32> to vector<8x20xf32>
    %cst_152 = arith.constant 5.000000e-01 : f32
    %352 = vector.broadcast %cst_152 : f32 to vector<8x20xf32>
    %353 = arith.mulf %352, %351 : vector<8x20xf32>
    %354 = math.tanh %353 : vector<8x20xf32>
    %cst_153 = arith.constant 5.000000e-01 : f32
    %355 = vector.broadcast %cst_153 : f32 to vector<8x20xf32>
    %356 = arith.mulf %355, %354 : vector<8x20xf32>
    %cst_154 = arith.constant 5.000000e-01 : f32
    %357 = vector.broadcast %cst_154 : f32 to vector<8x20xf32>
    %358 = arith.addf %356, %357 : vector<8x20xf32>
    %359 = arith.mulf %348, %268 : vector<8x20xf32>
    %360 = arith.mulf %340, %350 : vector<8x20xf32>
    %361 = arith.addf %359, %360 : vector<8x20xf32>
    %362 = math.tanh %361 : vector<8x20xf32>
    %363 = arith.mulf %358, %362 : vector<8x20xf32>
    %c0_155 = arith.constant 0 : index
    %c0_156 = arith.constant 0 : index
    %364 = vector.load %arg11[%c0_155, %c0_156] : memref<1x20xf32, #tpu.memory_space<vmem>>, vector<1x20xf32>
    %365 = vector.broadcast %364 : vector<1x20xf32> to vector<8x20xf32>
    %366 = arith.mulf %363, %365 : vector<8x20xf32>
    %cst_157 = arith.constant dense<0.000000e+00> : vector<8xf32>
    %367 = vector.multi_reduction <add>, %366, %cst_157 [1] : vector<8x20xf32> to vector<8xf32>
    %368 = vector.shape_cast %367 : vector<8xf32> to vector<8x1xf32>
    %c0_158 = arith.constant 0 : index
    %c0_159 = arith.constant 0 : index
    %369 = vector.load %arg12[%c0_158, %c0_159] : memref<1x1xf32, #tpu.memory_space<vmem>>, vector<1x1xf32>
    %370 = vector.broadcast %369 : vector<1x1xf32> to vector<8x1xf32>
    %371 = arith.addf %368, %370 : vector<8x1xf32>
    %372 = arith.index_cast %c3_i32 : i32 to index
    %c0_160 = arith.constant 0 : index
    %c0_161 = arith.constant 0 : index
    %373 = vector.load %arg13[%372, %c0_160, %c0_161] : memref<8x8x1xf32, #tpu.memory_space<vmem>>, vector<1x8x1xf32>
    %374 = vector.shape_cast %373 : vector<1x8x1xf32> to vector<8x1xf32>
    %375 = vector.shape_cast %371 : vector<8x1xf32> to vector<1x8x1xf32>
    tpu.vector_store %arg13[%372, %c0_160, %c0_161], %375 {strides = array<i32>} : memref<8x8x1xf32, #tpu.memory_space<vmem>>, vector<1x8x1xf32>,
    %c4_i32 = arith.constant 4 : i32
    %376 = arith.index_cast %c4_i32 : i32 to index
    %c0_162 = arith.constant 0 : index
    %c0_163 = arith.constant 0 : index
    %377 = vector.load %arg1[%376, %c0_162, %c0_163] : memref<8x8x1xf32, #tpu.memory_space<vmem>>, vector<1x8x1xf32>
    %378 = vector.shape_cast %377 : vector<1x8x1xf32> to vector<8x1xf32>
    %c0_164 = arith.constant 0 : index
    %c0_165 = arith.constant 0 : index
    %379 = vector.load %arg6[%c0_164, %c0_165] : memref<1x512xf32, #tpu.memory_space<vmem>>, vector<1x512xf32>
    %380 = vector.broadcast %378 : vector<8x1xf32> to vector<8x512xf32>
    %381 = vector.broadcast %379 : vector<1x512xf32> to vector<8x512xf32>
    %382 = arith.mulf %380, %381 : vector<8x512xf32>
    %c0_166 = arith.constant 0 : index
    %c0_167 = arith.constant 0 : index
    %383 = vector.load %arg7[%c0_166, %c0_167] : memref<20x512xf32, #tpu.memory_space<vmem>>, vector<20x512xf32>
    %cst_168 = arith.constant dense<0.000000e+00> : vector<8x512xf32>
    %384 = tpu.matmul %326, %383, %cst_168 {dimension_numbers = #tpu.dot_dimension_numbers<[1], [0], [0], [1], [0, 0, 1, 1], [], []>} : vector<8x20xf32>, vector<20x512xf32>, vector<8x512xf32> -> vector<8x512xf32>
    %385 = arith.addf %382, %384 : vector<8x512xf32>
    %c0_169 = arith.constant 0 : index
    %c0_170 = arith.constant 0 : index
    %386 = vector.load %arg8[%c0_169, %c0_170] : memref<1x512xf32, #tpu.memory_space<vmem>>, vector<1x512xf32>
    %387 = vector.broadcast %386 : vector<1x512xf32> to vector<8x512xf32>
    %388 = arith.addf %385, %387 : vector<8x512xf32>
    %389 = vector.extract_strided_slice %388 {offsets = [0, 0], sizes = [8, 20], strides = [1, 1]} : vector<8x512xf32> to vector<8x20xf32>
    %cst_171 = arith.constant 5.000000e-01 : f32
    %390 = vector.broadcast %cst_171 : f32 to vector<8x20xf32>
    %391 = arith.mulf %390, %389 : vector<8x20xf32>
    %392 = math.tanh %391 : vector<8x20xf32>
    %cst_172 = arith.constant 5.000000e-01 : f32
    %393 = vector.broadcast %cst_172 : f32 to vector<8x20xf32>
    %394 = arith.mulf %393, %392 : vector<8x20xf32>
    %cst_173 = arith.constant 5.000000e-01 : f32
    %395 = vector.broadcast %cst_173 : f32 to vector<8x20xf32>
    %396 = arith.addf %394, %395 : vector<8x20xf32>
    %397 = vector.extract_strided_slice %388 {offsets = [0, 128], sizes = [8, 20], strides = [1, 1]} : vector<8x512xf32> to vector<8x20xf32>
    %cst_174 = arith.constant 5.000000e-01 : f32
    %398 = vector.broadcast %cst_174 : f32 to vector<8x20xf32>
    %399 = arith.mulf %398, %397 : vector<8x20xf32>
    %400 = math.tanh %399 : vector<8x20xf32>
    %cst_175 = arith.constant 5.000000e-01 : f32
    %401 = vector.broadcast %cst_175 : f32 to vector<8x20xf32>
    %402 = arith.mulf %401, %400 : vector<8x20xf32>
    %cst_176 = arith.constant 5.000000e-01 : f32
    %403 = vector.broadcast %cst_176 : f32 to vector<8x20xf32>
    %404 = arith.addf %402, %403 : vector<8x20xf32>
    %405 = vector.extract_strided_slice %388 {offsets = [0, 256], sizes = [8, 20], strides = [1, 1]} : vector<8x512xf32> to vector<8x20xf32>
    %406 = math.tanh %405 : vector<8x20xf32>
    %407 = vector.extract_strided_slice %388 {offsets = [0, 384], sizes = [8, 20], strides = [1, 1]} : vector<8x512xf32> to vector<8x20xf32>
    %cst_177 = arith.constant 5.000000e-01 : f32
    %408 = vector.broadcast %cst_177 : f32 to vector<8x20xf32>
    %409 = arith.mulf %408, %407 : vector<8x20xf32>
    %410 = math.tanh %409 : vector<8x20xf32>
    %cst_178 = arith.constant 5.000000e-01 : f32
    %411 = vector.broadcast %cst_178 : f32 to vector<8x20xf32>
    %412 = arith.mulf %411, %410 : vector<8x20xf32>
    %cst_179 = arith.constant 5.000000e-01 : f32
    %413 = vector.broadcast %cst_179 : f32 to vector<8x20xf32>
    %414 = arith.addf %412, %413 : vector<8x20xf32>
    %415 = arith.mulf %404, %324 : vector<8x20xf32>
    %416 = arith.mulf %396, %406 : vector<8x20xf32>
    %417 = arith.addf %415, %416 : vector<8x20xf32>
    %418 = math.tanh %417 : vector<8x20xf32>
    %419 = arith.mulf %414, %418 : vector<8x20xf32>
    %420 = tpu.concatenate %419, %363 in 1 : vector<8x20xf32>, vector<8x20xf32> -> vector<8x40xf32>
    %c0_180 = arith.constant 0 : index
    %c0_181 = arith.constant 0 : index
    %421 = vector.load %arg9[%c0_180, %c0_181] : memref<40x512xf32, #tpu.memory_space<vmem>>, vector<40x512xf32>
    %cst_182 = arith.constant dense<0.000000e+00> : vector<8x512xf32>
    %422 = tpu.matmul %420, %421, %cst_182 {dimension_numbers = #tpu.dot_dimension_numbers<[1], [0], [0], [1], [0, 0, 1, 1], [], []>} : vector<8x40xf32>, vector<40x512xf32>, vector<8x512xf32> -> vector<8x512xf32>
    %c0_183 = arith.constant 0 : index
    %c0_184 = arith.constant 0 : index
    %423 = vector.load %arg10[%c0_183, %c0_184] : memref<1x512xf32, #tpu.memory_space<vmem>>, vector<1x512xf32>
    %424 = vector.broadcast %423 : vector<1x512xf32> to vector<8x512xf32>
    %425 = arith.addf %422, %424 : vector<8x512xf32>
    %426 = vector.extract_strided_slice %425 {offsets = [0, 0], sizes = [8, 20], strides = [1, 1]} : vector<8x512xf32> to vector<8x20xf32>
    %cst_185 = arith.constant 5.000000e-01 : f32
    %427 = vector.broadcast %cst_185 : f32 to vector<8x20xf32>
    %428 = arith.mulf %427, %426 : vector<8x20xf32>
    %429 = math.tanh %428 : vector<8x20xf32>
    %cst_186 = arith.constant 5.000000e-01 : f32
    %430 = vector.broadcast %cst_186 : f32 to vector<8x20xf32>
    %431 = arith.mulf %430, %429 : vector<8x20xf32>
    %cst_187 = arith.constant 5.000000e-01 : f32
    %432 = vector.broadcast %cst_187 : f32 to vector<8x20xf32>
    %433 = arith.addf %431, %432 : vector<8x20xf32>
    %434 = vector.extract_strided_slice %425 {offsets = [0, 128], sizes = [8, 20], strides = [1, 1]} : vector<8x512xf32> to vector<8x20xf32>
    %cst_188 = arith.constant 5.000000e-01 : f32
    %435 = vector.broadcast %cst_188 : f32 to vector<8x20xf32>
    %436 = arith.mulf %435, %434 : vector<8x20xf32>
    %437 = math.tanh %436 : vector<8x20xf32>
    %cst_189 = arith.constant 5.000000e-01 : f32
    %438 = vector.broadcast %cst_189 : f32 to vector<8x20xf32>
    %439 = arith.mulf %438, %437 : vector<8x20xf32>
    %cst_190 = arith.constant 5.000000e-01 : f32
    %440 = vector.broadcast %cst_190 : f32 to vector<8x20xf32>
    %441 = arith.addf %439, %440 : vector<8x20xf32>
    %442 = vector.extract_strided_slice %425 {offsets = [0, 256], sizes = [8, 20], strides = [1, 1]} : vector<8x512xf32> to vector<8x20xf32>
    %443 = math.tanh %442 : vector<8x20xf32>
    %444 = vector.extract_strided_slice %425 {offsets = [0, 384], sizes = [8, 20], strides = [1, 1]} : vector<8x512xf32> to vector<8x20xf32>
    %cst_191 = arith.constant 5.000000e-01 : f32
    %445 = vector.broadcast %cst_191 : f32 to vector<8x20xf32>
    %446 = arith.mulf %445, %444 : vector<8x20xf32>
    %447 = math.tanh %446 : vector<8x20xf32>
    %cst_192 = arith.constant 5.000000e-01 : f32
    %448 = vector.broadcast %cst_192 : f32 to vector<8x20xf32>
    %449 = arith.mulf %448, %447 : vector<8x20xf32>
    %cst_193 = arith.constant 5.000000e-01 : f32
    %450 = vector.broadcast %cst_193 : f32 to vector<8x20xf32>
    %451 = arith.addf %449, %450 : vector<8x20xf32>
    %452 = arith.mulf %441, %361 : vector<8x20xf32>
    %453 = arith.mulf %433, %443 : vector<8x20xf32>
    %454 = arith.addf %452, %453 : vector<8x20xf32>
    %455 = math.tanh %454 : vector<8x20xf32>
    %456 = arith.mulf %451, %455 : vector<8x20xf32>
    %c0_194 = arith.constant 0 : index
    %c0_195 = arith.constant 0 : index
    %457 = vector.load %arg11[%c0_194, %c0_195] : memref<1x20xf32, #tpu.memory_space<vmem>>, vector<1x20xf32>
    %458 = vector.broadcast %457 : vector<1x20xf32> to vector<8x20xf32>
    %459 = arith.mulf %456, %458 : vector<8x20xf32>
    %cst_196 = arith.constant dense<0.000000e+00> : vector<8xf32>
    %460 = vector.multi_reduction <add>, %459, %cst_196 [1] : vector<8x20xf32> to vector<8xf32>
    %461 = vector.shape_cast %460 : vector<8xf32> to vector<8x1xf32>
    %c0_197 = arith.constant 0 : index
    %c0_198 = arith.constant 0 : index
    %462 = vector.load %arg12[%c0_197, %c0_198] : memref<1x1xf32, #tpu.memory_space<vmem>>, vector<1x1xf32>
    %463 = vector.broadcast %462 : vector<1x1xf32> to vector<8x1xf32>
    %464 = arith.addf %461, %463 : vector<8x1xf32>
    %465 = arith.index_cast %c4_i32 : i32 to index
    %c0_199 = arith.constant 0 : index
    %c0_200 = arith.constant 0 : index
    %466 = vector.load %arg13[%465, %c0_199, %c0_200] : memref<8x8x1xf32, #tpu.memory_space<vmem>>, vector<1x8x1xf32>
    %467 = vector.shape_cast %466 : vector<1x8x1xf32> to vector<8x1xf32>
    %468 = vector.shape_cast %464 : vector<8x1xf32> to vector<1x8x1xf32>
    tpu.vector_store %arg13[%465, %c0_199, %c0_200], %468 {strides = array<i32>} : memref<8x8x1xf32, #tpu.memory_space<vmem>>, vector<1x8x1xf32>,
    %c5_i32 = arith.constant 5 : i32
    %469 = arith.index_cast %c5_i32 : i32 to index
    %c0_201 = arith.constant 0 : index
    %c0_202 = arith.constant 0 : index
    %470 = vector.load %arg1[%469, %c0_201, %c0_202] : memref<8x8x1xf32, #tpu.memory_space<vmem>>, vector<1x8x1xf32>
    %471 = vector.shape_cast %470 : vector<1x8x1xf32> to vector<8x1xf32>
    %c0_203 = arith.constant 0 : index
    %c0_204 = arith.constant 0 : index
    %472 = vector.load %arg6[%c0_203, %c0_204] : memref<1x512xf32, #tpu.memory_space<vmem>>, vector<1x512xf32>
    %473 = vector.broadcast %471 : vector<8x1xf32> to vector<8x512xf32>
    %474 = vector.broadcast %472 : vector<1x512xf32> to vector<8x512xf32>
    %475 = arith.mulf %473, %474 : vector<8x512xf32>
    %c0_205 = arith.constant 0 : index
    %c0_206 = arith.constant 0 : index
    %476 = vector.load %arg7[%c0_205, %c0_206] : memref<20x512xf32, #tpu.memory_space<vmem>>, vector<20x512xf32>
    %cst_207 = arith.constant dense<0.000000e+00> : vector<8x512xf32>
    %477 = tpu.matmul %419, %476, %cst_207 {dimension_numbers = #tpu.dot_dimension_numbers<[1], [0], [0], [1], [0, 0, 1, 1], [], []>} : vector<8x20xf32>, vector<20x512xf32>, vector<8x512xf32> -> vector<8x512xf32>
    %478 = arith.addf %475, %477 : vector<8x512xf32>
    %c0_208 = arith.constant 0 : index
    %c0_209 = arith.constant 0 : index
    %479 = vector.load %arg8[%c0_208, %c0_209] : memref<1x512xf32, #tpu.memory_space<vmem>>, vector<1x512xf32>
    %480 = vector.broadcast %479 : vector<1x512xf32> to vector<8x512xf32>
    %481 = arith.addf %478, %480 : vector<8x512xf32>
    %482 = vector.extract_strided_slice %481 {offsets = [0, 0], sizes = [8, 20], strides = [1, 1]} : vector<8x512xf32> to vector<8x20xf32>
    %cst_210 = arith.constant 5.000000e-01 : f32
    %483 = vector.broadcast %cst_210 : f32 to vector<8x20xf32>
    %484 = arith.mulf %483, %482 : vector<8x20xf32>
    %485 = math.tanh %484 : vector<8x20xf32>
    %cst_211 = arith.constant 5.000000e-01 : f32
    %486 = vector.broadcast %cst_211 : f32 to vector<8x20xf32>
    %487 = arith.mulf %486, %485 : vector<8x20xf32>
    %cst_212 = arith.constant 5.000000e-01 : f32
    %488 = vector.broadcast %cst_212 : f32 to vector<8x20xf32>
    %489 = arith.addf %487, %488 : vector<8x20xf32>
    %490 = vector.extract_strided_slice %481 {offsets = [0, 128], sizes = [8, 20], strides = [1, 1]} : vector<8x512xf32> to vector<8x20xf32>
    %cst_213 = arith.constant 5.000000e-01 : f32
    %491 = vector.broadcast %cst_213 : f32 to vector<8x20xf32>
    %492 = arith.mulf %491, %490 : vector<8x20xf32>
    %493 = math.tanh %492 : vector<8x20xf32>
    %cst_214 = arith.constant 5.000000e-01 : f32
    %494 = vector.broadcast %cst_214 : f32 to vector<8x20xf32>
    %495 = arith.mulf %494, %493 : vector<8x20xf32>
    %cst_215 = arith.constant 5.000000e-01 : f32
    %496 = vector.broadcast %cst_215 : f32 to vector<8x20xf32>
    %497 = arith.addf %495, %496 : vector<8x20xf32>
    %498 = vector.extract_strided_slice %481 {offsets = [0, 256], sizes = [8, 20], strides = [1, 1]} : vector<8x512xf32> to vector<8x20xf32>
    %499 = math.tanh %498 : vector<8x20xf32>
    %500 = vector.extract_strided_slice %481 {offsets = [0, 384], sizes = [8, 20], strides = [1, 1]} : vector<8x512xf32> to vector<8x20xf32>
    %cst_216 = arith.constant 5.000000e-01 : f32
    %501 = vector.broadcast %cst_216 : f32 to vector<8x20xf32>
    %502 = arith.mulf %501, %500 : vector<8x20xf32>
    %503 = math.tanh %502 : vector<8x20xf32>
    %cst_217 = arith.constant 5.000000e-01 : f32
    %504 = vector.broadcast %cst_217 : f32 to vector<8x20xf32>
    %505 = arith.mulf %504, %503 : vector<8x20xf32>
    %cst_218 = arith.constant 5.000000e-01 : f32
    %506 = vector.broadcast %cst_218 : f32 to vector<8x20xf32>
    %507 = arith.addf %505, %506 : vector<8x20xf32>
    %508 = arith.mulf %497, %417 : vector<8x20xf32>
    %509 = arith.mulf %489, %499 : vector<8x20xf32>
    %510 = arith.addf %508, %509 : vector<8x20xf32>
    %511 = math.tanh %510 : vector<8x20xf32>
    %512 = arith.mulf %507, %511 : vector<8x20xf32>
    %513 = tpu.concatenate %512, %456 in 1 : vector<8x20xf32>, vector<8x20xf32> -> vector<8x40xf32>
    %c0_219 = arith.constant 0 : index
    %c0_220 = arith.constant 0 : index
    %514 = vector.load %arg9[%c0_219, %c0_220] : memref<40x512xf32, #tpu.memory_space<vmem>>, vector<40x512xf32>
    %cst_221 = arith.constant dense<0.000000e+00> : vector<8x512xf32>
    %515 = tpu.matmul %513, %514, %cst_221 {dimension_numbers = #tpu.dot_dimension_numbers<[1], [0], [0], [1], [0, 0, 1, 1], [], []>} : vector<8x40xf32>, vector<40x512xf32>, vector<8x512xf32> -> vector<8x512xf32>
    %c0_222 = arith.constant 0 : index
    %c0_223 = arith.constant 0 : index
    %516 = vector.load %arg10[%c0_222, %c0_223] : memref<1x512xf32, #tpu.memory_space<vmem>>, vector<1x512xf32>
    %517 = vector.broadcast %516 : vector<1x512xf32> to vector<8x512xf32>
    %518 = arith.addf %515, %517 : vector<8x512xf32>
    %519 = vector.extract_strided_slice %518 {offsets = [0, 0], sizes = [8, 20], strides = [1, 1]} : vector<8x512xf32> to vector<8x20xf32>
    %cst_224 = arith.constant 5.000000e-01 : f32
    %520 = vector.broadcast %cst_224 : f32 to vector<8x20xf32>
    %521 = arith.mulf %520, %519 : vector<8x20xf32>
    %522 = math.tanh %521 : vector<8x20xf32>
    %cst_225 = arith.constant 5.000000e-01 : f32
    %523 = vector.broadcast %cst_225 : f32 to vector<8x20xf32>
    %524 = arith.mulf %523, %522 : vector<8x20xf32>
    %cst_226 = arith.constant 5.000000e-01 : f32
    %525 = vector.broadcast %cst_226 : f32 to vector<8x20xf32>
    %526 = arith.addf %524, %525 : vector<8x20xf32>
    %527 = vector.extract_strided_slice %518 {offsets = [0, 128], sizes = [8, 20], strides = [1, 1]} : vector<8x512xf32> to vector<8x20xf32>
    %cst_227 = arith.constant 5.000000e-01 : f32
    %528 = vector.broadcast %cst_227 : f32 to vector<8x20xf32>
    %529 = arith.mulf %528, %527 : vector<8x20xf32>
    %530 = math.tanh %529 : vector<8x20xf32>
    %cst_228 = arith.constant 5.000000e-01 : f32
    %531 = vector.broadcast %cst_228 : f32 to vector<8x20xf32>
    %532 = arith.mulf %531, %530 : vector<8x20xf32>
    %cst_229 = arith.constant 5.000000e-01 : f32
    %533 = vector.broadcast %cst_229 : f32 to vector<8x20xf32>
    %534 = arith.addf %532, %533 : vector<8x20xf32>
    %535 = vector.extract_strided_slice %518 {offsets = [0, 256], sizes = [8, 20], strides = [1, 1]} : vector<8x512xf32> to vector<8x20xf32>
    %536 = math.tanh %535 : vector<8x20xf32>
    %537 = vector.extract_strided_slice %518 {offsets = [0, 384], sizes = [8, 20], strides = [1, 1]} : vector<8x512xf32> to vector<8x20xf32>
    %cst_230 = arith.constant 5.000000e-01 : f32
    %538 = vector.broadcast %cst_230 : f32 to vector<8x20xf32>
    %539 = arith.mulf %538, %537 : vector<8x20xf32>
    %540 = math.tanh %539 : vector<8x20xf32>
    %cst_231 = arith.constant 5.000000e-01 : f32
    %541 = vector.broadcast %cst_231 : f32 to vector<8x20xf32>
    %542 = arith.mulf %541, %540 : vector<8x20xf32>
    %cst_232 = arith.constant 5.000000e-01 : f32
    %543 = vector.broadcast %cst_232 : f32 to vector<8x20xf32>
    %544 = arith.addf %542, %543 : vector<8x20xf32>
    %545 = arith.mulf %534, %454 : vector<8x20xf32>
    %546 = arith.mulf %526, %536 : vector<8x20xf32>
    %547 = arith.addf %545, %546 : vector<8x20xf32>
    %548 = math.tanh %547 : vector<8x20xf32>
    %549 = arith.mulf %544, %548 : vector<8x20xf32>
    %c0_233 = arith.constant 0 : index
    %c0_234 = arith.constant 0 : index
    %550 = vector.load %arg11[%c0_233, %c0_234] : memref<1x20xf32, #tpu.memory_space<vmem>>, vector<1x20xf32>
    %551 = vector.broadcast %550 : vector<1x20xf32> to vector<8x20xf32>
    %552 = arith.mulf %549, %551 : vector<8x20xf32>
    %cst_235 = arith.constant dense<0.000000e+00> : vector<8xf32>
    %553 = vector.multi_reduction <add>, %552, %cst_235 [1] : vector<8x20xf32> to vector<8xf32>
    %554 = vector.shape_cast %553 : vector<8xf32> to vector<8x1xf32>
    %c0_236 = arith.constant 0 : index
    %c0_237 = arith.constant 0 : index
    %555 = vector.load %arg12[%c0_236, %c0_237] : memref<1x1xf32, #tpu.memory_space<vmem>>, vector<1x1xf32>
    %556 = vector.broadcast %555 : vector<1x1xf32> to vector<8x1xf32>
    %557 = arith.addf %554, %556 : vector<8x1xf32>
    %558 = arith.index_cast %c5_i32 : i32 to index
    %c0_238 = arith.constant 0 : index
    %c0_239 = arith.constant 0 : index
    %559 = vector.load %arg13[%558, %c0_238, %c0_239] : memref<8x8x1xf32, #tpu.memory_space<vmem>>, vector<1x8x1xf32>
    %560 = vector.shape_cast %559 : vector<1x8x1xf32> to vector<8x1xf32>
    %561 = vector.shape_cast %557 : vector<8x1xf32> to vector<1x8x1xf32>
    tpu.vector_store %arg13[%558, %c0_238, %c0_239], %561 {strides = array<i32>} : memref<8x8x1xf32, #tpu.memory_space<vmem>>, vector<1x8x1xf32>,
    %c6_i32 = arith.constant 6 : i32
    %562 = arith.index_cast %c6_i32 : i32 to index
    %c0_240 = arith.constant 0 : index
    %c0_241 = arith.constant 0 : index
    %563 = vector.load %arg1[%562, %c0_240, %c0_241] : memref<8x8x1xf32, #tpu.memory_space<vmem>>, vector<1x8x1xf32>
    %564 = vector.shape_cast %563 : vector<1x8x1xf32> to vector<8x1xf32>
    %c0_242 = arith.constant 0 : index
    %c0_243 = arith.constant 0 : index
    %565 = vector.load %arg6[%c0_242, %c0_243] : memref<1x512xf32, #tpu.memory_space<vmem>>, vector<1x512xf32>
    %566 = vector.broadcast %564 : vector<8x1xf32> to vector<8x512xf32>
    %567 = vector.broadcast %565 : vector<1x512xf32> to vector<8x512xf32>
    %568 = arith.mulf %566, %567 : vector<8x512xf32>
    %c0_244 = arith.constant 0 : index
    %c0_245 = arith.constant 0 : index
    %569 = vector.load %arg7[%c0_244, %c0_245] : memref<20x512xf32, #tpu.memory_space<vmem>>, vector<20x512xf32>
    %cst_246 = arith.constant dense<0.000000e+00> : vector<8x512xf32>
    %570 = tpu.matmul %512, %569, %cst_246 {dimension_numbers = #tpu.dot_dimension_numbers<[1], [0], [0], [1], [0, 0, 1, 1], [], []>} : vector<8x20xf32>, vector<20x512xf32>, vector<8x512xf32> -> vector<8x512xf32>
    %571 = arith.addf %568, %570 : vector<8x512xf32>
    %c0_247 = arith.constant 0 : index
    %c0_248 = arith.constant 0 : index
    %572 = vector.load %arg8[%c0_247, %c0_248] : memref<1x512xf32, #tpu.memory_space<vmem>>, vector<1x512xf32>
    %573 = vector.broadcast %572 : vector<1x512xf32> to vector<8x512xf32>
    %574 = arith.addf %571, %573 : vector<8x512xf32>
    %575 = vector.extract_strided_slice %574 {offsets = [0, 0], sizes = [8, 20], strides = [1, 1]} : vector<8x512xf32> to vector<8x20xf32>
    %cst_249 = arith.constant 5.000000e-01 : f32
    %576 = vector.broadcast %cst_249 : f32 to vector<8x20xf32>
    %577 = arith.mulf %576, %575 : vector<8x20xf32>
    %578 = math.tanh %577 : vector<8x20xf32>
    %cst_250 = arith.constant 5.000000e-01 : f32
    %579 = vector.broadcast %cst_250 : f32 to vector<8x20xf32>
    %580 = arith.mulf %579, %578 : vector<8x20xf32>
    %cst_251 = arith.constant 5.000000e-01 : f32
    %581 = vector.broadcast %cst_251 : f32 to vector<8x20xf32>
    %582 = arith.addf %580, %581 : vector<8x20xf32>
    %583 = vector.extract_strided_slice %574 {offsets = [0, 128], sizes = [8, 20], strides = [1, 1]} : vector<8x512xf32> to vector<8x20xf32>
    %cst_252 = arith.constant 5.000000e-01 : f32
    %584 = vector.broadcast %cst_252 : f32 to vector<8x20xf32>
    %585 = arith.mulf %584, %583 : vector<8x20xf32>
    %586 = math.tanh %585 : vector<8x20xf32>
    %cst_253 = arith.constant 5.000000e-01 : f32
    %587 = vector.broadcast %cst_253 : f32 to vector<8x20xf32>
    %588 = arith.mulf %587, %586 : vector<8x20xf32>
    %cst_254 = arith.constant 5.000000e-01 : f32
    %589 = vector.broadcast %cst_254 : f32 to vector<8x20xf32>
    %590 = arith.addf %588, %589 : vector<8x20xf32>
    %591 = vector.extract_strided_slice %574 {offsets = [0, 256], sizes = [8, 20], strides = [1, 1]} : vector<8x512xf32> to vector<8x20xf32>
    %592 = math.tanh %591 : vector<8x20xf32>
    %593 = vector.extract_strided_slice %574 {offsets = [0, 384], sizes = [8, 20], strides = [1, 1]} : vector<8x512xf32> to vector<8x20xf32>
    %cst_255 = arith.constant 5.000000e-01 : f32
    %594 = vector.broadcast %cst_255 : f32 to vector<8x20xf32>
    %595 = arith.mulf %594, %593 : vector<8x20xf32>
    %596 = math.tanh %595 : vector<8x20xf32>
    %cst_256 = arith.constant 5.000000e-01 : f32
    %597 = vector.broadcast %cst_256 : f32 to vector<8x20xf32>
    %598 = arith.mulf %597, %596 : vector<8x20xf32>
    %cst_257 = arith.constant 5.000000e-01 : f32
    %599 = vector.broadcast %cst_257 : f32 to vector<8x20xf32>
    %600 = arith.addf %598, %599 : vector<8x20xf32>
    %601 = arith.mulf %590, %510 : vector<8x20xf32>
    %602 = arith.mulf %582, %592 : vector<8x20xf32>
    %603 = arith.addf %601, %602 : vector<8x20xf32>
    %604 = math.tanh %603 : vector<8x20xf32>
    %605 = arith.mulf %600, %604 : vector<8x20xf32>
    %606 = tpu.concatenate %605, %549 in 1 : vector<8x20xf32>, vector<8x20xf32> -> vector<8x40xf32>
    %c0_258 = arith.constant 0 : index
    %c0_259 = arith.constant 0 : index
    %607 = vector.load %arg9[%c0_258, %c0_259] : memref<40x512xf32, #tpu.memory_space<vmem>>, vector<40x512xf32>
    %cst_260 = arith.constant dense<0.000000e+00> : vector<8x512xf32>
    %608 = tpu.matmul %606, %607, %cst_260 {dimension_numbers = #tpu.dot_dimension_numbers<[1], [0], [0], [1], [0, 0, 1, 1], [], []>} : vector<8x40xf32>, vector<40x512xf32>, vector<8x512xf32> -> vector<8x512xf32>
    %c0_261 = arith.constant 0 : index
    %c0_262 = arith.constant 0 : index
    %609 = vector.load %arg10[%c0_261, %c0_262] : memref<1x512xf32, #tpu.memory_space<vmem>>, vector<1x512xf32>
    %610 = vector.broadcast %609 : vector<1x512xf32> to vector<8x512xf32>
    %611 = arith.addf %608, %610 : vector<8x512xf32>
    %612 = vector.extract_strided_slice %611 {offsets = [0, 0], sizes = [8, 20], strides = [1, 1]} : vector<8x512xf32> to vector<8x20xf32>
    %cst_263 = arith.constant 5.000000e-01 : f32
    %613 = vector.broadcast %cst_263 : f32 to vector<8x20xf32>
    %614 = arith.mulf %613, %612 : vector<8x20xf32>
    %615 = math.tanh %614 : vector<8x20xf32>
    %cst_264 = arith.constant 5.000000e-01 : f32
    %616 = vector.broadcast %cst_264 : f32 to vector<8x20xf32>
    %617 = arith.mulf %616, %615 : vector<8x20xf32>
    %cst_265 = arith.constant 5.000000e-01 : f32
    %618 = vector.broadcast %cst_265 : f32 to vector<8x20xf32>
    %619 = arith.addf %617, %618 : vector<8x20xf32>
    %620 = vector.extract_strided_slice %611 {offsets = [0, 128], sizes = [8, 20], strides = [1, 1]} : vector<8x512xf32> to vector<8x20xf32>
    %cst_266 = arith.constant 5.000000e-01 : f32
    %621 = vector.broadcast %cst_266 : f32 to vector<8x20xf32>
    %622 = arith.mulf %621, %620 : vector<8x20xf32>
    %623 = math.tanh %622 : vector<8x20xf32>
    %cst_267 = arith.constant 5.000000e-01 : f32
    %624 = vector.broadcast %cst_267 : f32 to vector<8x20xf32>
    %625 = arith.mulf %624, %623 : vector<8x20xf32>
    %cst_268 = arith.constant 5.000000e-01 : f32
    %626 = vector.broadcast %cst_268 : f32 to vector<8x20xf32>
    %627 = arith.addf %625, %626 : vector<8x20xf32>
    %628 = vector.extract_strided_slice %611 {offsets = [0, 256], sizes = [8, 20], strides = [1, 1]} : vector<8x512xf32> to vector<8x20xf32>
    %629 = math.tanh %628 : vector<8x20xf32>
    %630 = vector.extract_strided_slice %611 {offsets = [0, 384], sizes = [8, 20], strides = [1, 1]} : vector<8x512xf32> to vector<8x20xf32>
    %cst_269 = arith.constant 5.000000e-01 : f32
    %631 = vector.broadcast %cst_269 : f32 to vector<8x20xf32>
    %632 = arith.mulf %631, %630 : vector<8x20xf32>
    %633 = math.tanh %632 : vector<8x20xf32>
    %cst_270 = arith.constant 5.000000e-01 : f32
    %634 = vector.broadcast %cst_270 : f32 to vector<8x20xf32>
    %635 = arith.mulf %634, %633 : vector<8x20xf32>
    %cst_271 = arith.constant 5.000000e-01 : f32
    %636 = vector.broadcast %cst_271 : f32 to vector<8x20xf32>
    %637 = arith.addf %635, %636 : vector<8x20xf32>
    %638 = arith.mulf %627, %547 : vector<8x20xf32>
    %639 = arith.mulf %619, %629 : vector<8x20xf32>
    %640 = arith.addf %638, %639 : vector<8x20xf32>
    %641 = math.tanh %640 : vector<8x20xf32>
    %642 = arith.mulf %637, %641 : vector<8x20xf32>
    %c0_272 = arith.constant 0 : index
    %c0_273 = arith.constant 0 : index
    %643 = vector.load %arg11[%c0_272, %c0_273] : memref<1x20xf32, #tpu.memory_space<vmem>>, vector<1x20xf32>
    %644 = vector.broadcast %643 : vector<1x20xf32> to vector<8x20xf32>
    %645 = arith.mulf %642, %644 : vector<8x20xf32>
    %cst_274 = arith.constant dense<0.000000e+00> : vector<8xf32>
    %646 = vector.multi_reduction <add>, %645, %cst_274 [1] : vector<8x20xf32> to vector<8xf32>
    %647 = vector.shape_cast %646 : vector<8xf32> to vector<8x1xf32>
    %c0_275 = arith.constant 0 : index
    %c0_276 = arith.constant 0 : index
    %648 = vector.load %arg12[%c0_275, %c0_276] : memref<1x1xf32, #tpu.memory_space<vmem>>, vector<1x1xf32>
    %649 = vector.broadcast %648 : vector<1x1xf32> to vector<8x1xf32>
    %650 = arith.addf %647, %649 : vector<8x1xf32>
    %651 = arith.index_cast %c6_i32 : i32 to index
    %c0_277 = arith.constant 0 : index
    %c0_278 = arith.constant 0 : index
    %652 = vector.load %arg13[%651, %c0_277, %c0_278] : memref<8x8x1xf32, #tpu.memory_space<vmem>>, vector<1x8x1xf32>
    %653 = vector.shape_cast %652 : vector<1x8x1xf32> to vector<8x1xf32>
    %654 = vector.shape_cast %650 : vector<8x1xf32> to vector<1x8x1xf32>
    tpu.vector_store %arg13[%651, %c0_277, %c0_278], %654 {strides = array<i32>} : memref<8x8x1xf32, #tpu.memory_space<vmem>>, vector<1x8x1xf32>,
    %c7_i32 = arith.constant 7 : i32
    %655 = arith.index_cast %c7_i32 : i32 to index
    %c0_279 = arith.constant 0 : index
    %c0_280 = arith.constant 0 : index
    %656 = vector.load %arg1[%655, %c0_279, %c0_280] : memref<8x8x1xf32, #tpu.memory_space<vmem>>, vector<1x8x1xf32>
    %657 = vector.shape_cast %656 : vector<1x8x1xf32> to vector<8x1xf32>
    %c0_281 = arith.constant 0 : index
    %c0_282 = arith.constant 0 : index
    %658 = vector.load %arg6[%c0_281, %c0_282] : memref<1x512xf32, #tpu.memory_space<vmem>>, vector<1x512xf32>
    %659 = vector.broadcast %657 : vector<8x1xf32> to vector<8x512xf32>
    %660 = vector.broadcast %658 : vector<1x512xf32> to vector<8x512xf32>
    %661 = arith.mulf %659, %660 : vector<8x512xf32>
    %c0_283 = arith.constant 0 : index
    %c0_284 = arith.constant 0 : index
    %662 = vector.load %arg7[%c0_283, %c0_284] : memref<20x512xf32, #tpu.memory_space<vmem>>, vector<20x512xf32>
    %cst_285 = arith.constant dense<0.000000e+00> : vector<8x512xf32>
    %663 = tpu.matmul %605, %662, %cst_285 {dimension_numbers = #tpu.dot_dimension_numbers<[1], [0], [0], [1], [0, 0, 1, 1], [], []>} : vector<8x20xf32>, vector<20x512xf32>, vector<8x512xf32> -> vector<8x512xf32>
    %664 = arith.addf %661, %663 : vector<8x512xf32>
    %c0_286 = arith.constant 0 : index
    %c0_287 = arith.constant 0 : index
    %665 = vector.load %arg8[%c0_286, %c0_287] : memref<1x512xf32, #tpu.memory_space<vmem>>, vector<1x512xf32>
    %666 = vector.broadcast %665 : vector<1x512xf32> to vector<8x512xf32>
    %667 = arith.addf %664, %666 : vector<8x512xf32>
    %668 = vector.extract_strided_slice %667 {offsets = [0, 0], sizes = [8, 20], strides = [1, 1]} : vector<8x512xf32> to vector<8x20xf32>
    %cst_288 = arith.constant 5.000000e-01 : f32
    %669 = vector.broadcast %cst_288 : f32 to vector<8x20xf32>
    %670 = arith.mulf %669, %668 : vector<8x20xf32>
    %671 = math.tanh %670 : vector<8x20xf32>
    %cst_289 = arith.constant 5.000000e-01 : f32
    %672 = vector.broadcast %cst_289 : f32 to vector<8x20xf32>
    %673 = arith.mulf %672, %671 : vector<8x20xf32>
    %cst_290 = arith.constant 5.000000e-01 : f32
    %674 = vector.broadcast %cst_290 : f32 to vector<8x20xf32>
    %675 = arith.addf %673, %674 : vector<8x20xf32>
    %676 = vector.extract_strided_slice %667 {offsets = [0, 128], sizes = [8, 20], strides = [1, 1]} : vector<8x512xf32> to vector<8x20xf32>
    %cst_291 = arith.constant 5.000000e-01 : f32
    %677 = vector.broadcast %cst_291 : f32 to vector<8x20xf32>
    %678 = arith.mulf %677, %676 : vector<8x20xf32>
    %679 = math.tanh %678 : vector<8x20xf32>
    %cst_292 = arith.constant 5.000000e-01 : f32
    %680 = vector.broadcast %cst_292 : f32 to vector<8x20xf32>
    %681 = arith.mulf %680, %679 : vector<8x20xf32>
    %cst_293 = arith.constant 5.000000e-01 : f32
    %682 = vector.broadcast %cst_293 : f32 to vector<8x20xf32>
    %683 = arith.addf %681, %682 : vector<8x20xf32>
    %684 = vector.extract_strided_slice %667 {offsets = [0, 256], sizes = [8, 20], strides = [1, 1]} : vector<8x512xf32> to vector<8x20xf32>
    %685 = math.tanh %684 : vector<8x20xf32>
    %686 = vector.extract_strided_slice %667 {offsets = [0, 384], sizes = [8, 20], strides = [1, 1]} : vector<8x512xf32> to vector<8x20xf32>
    %cst_294 = arith.constant 5.000000e-01 : f32
    %687 = vector.broadcast %cst_294 : f32 to vector<8x20xf32>
    %688 = arith.mulf %687, %686 : vector<8x20xf32>
    %689 = math.tanh %688 : vector<8x20xf32>
    %cst_295 = arith.constant 5.000000e-01 : f32
    %690 = vector.broadcast %cst_295 : f32 to vector<8x20xf32>
    %691 = arith.mulf %690, %689 : vector<8x20xf32>
    %cst_296 = arith.constant 5.000000e-01 : f32
    %692 = vector.broadcast %cst_296 : f32 to vector<8x20xf32>
    %693 = arith.addf %691, %692 : vector<8x20xf32>
    %694 = arith.mulf %683, %603 : vector<8x20xf32>
    %695 = arith.mulf %675, %685 : vector<8x20xf32>
    %696 = arith.addf %694, %695 : vector<8x20xf32>
    %697 = math.tanh %696 : vector<8x20xf32>
    %698 = arith.mulf %693, %697 : vector<8x20xf32>
    %699 = tpu.concatenate %698, %642 in 1 : vector<8x20xf32>, vector<8x20xf32> -> vector<8x40xf32>
    %c0_297 = arith.constant 0 : index
    %c0_298 = arith.constant 0 : index
    %700 = vector.load %arg9[%c0_297, %c0_298] : memref<40x512xf32, #tpu.memory_space<vmem>>, vector<40x512xf32>
    %cst_299 = arith.constant dense<0.000000e+00> : vector<8x512xf32>
    %701 = tpu.matmul %699, %700, %cst_299 {dimension_numbers = #tpu.dot_dimension_numbers<[1], [0], [0], [1], [0, 0, 1, 1], [], []>} : vector<8x40xf32>, vector<40x512xf32>, vector<8x512xf32> -> vector<8x512xf32>
    %c0_300 = arith.constant 0 : index
    %c0_301 = arith.constant 0 : index
    %702 = vector.load %arg10[%c0_300, %c0_301] : memref<1x512xf32, #tpu.memory_space<vmem>>, vector<1x512xf32>
    %703 = vector.broadcast %702 : vector<1x512xf32> to vector<8x512xf32>
    %704 = arith.addf %701, %703 : vector<8x512xf32>
    %705 = vector.extract_strided_slice %704 {offsets = [0, 0], sizes = [8, 20], strides = [1, 1]} : vector<8x512xf32> to vector<8x20xf32>
    %cst_302 = arith.constant 5.000000e-01 : f32
    %706 = vector.broadcast %cst_302 : f32 to vector<8x20xf32>
    %707 = arith.mulf %706, %705 : vector<8x20xf32>
    %708 = math.tanh %707 : vector<8x20xf32>
    %cst_303 = arith.constant 5.000000e-01 : f32
    %709 = vector.broadcast %cst_303 : f32 to vector<8x20xf32>
    %710 = arith.mulf %709, %708 : vector<8x20xf32>
    %cst_304 = arith.constant 5.000000e-01 : f32
    %711 = vector.broadcast %cst_304 : f32 to vector<8x20xf32>
    %712 = arith.addf %710, %711 : vector<8x20xf32>
    %713 = vector.extract_strided_slice %704 {offsets = [0, 128], sizes = [8, 20], strides = [1, 1]} : vector<8x512xf32> to vector<8x20xf32>
    %cst_305 = arith.constant 5.000000e-01 : f32
    %714 = vector.broadcast %cst_305 : f32 to vector<8x20xf32>
    %715 = arith.mulf %714, %713 : vector<8x20xf32>
    %716 = math.tanh %715 : vector<8x20xf32>
    %cst_306 = arith.constant 5.000000e-01 : f32
    %717 = vector.broadcast %cst_306 : f32 to vector<8x20xf32>
    %718 = arith.mulf %717, %716 : vector<8x20xf32>
    %cst_307 = arith.constant 5.000000e-01 : f32
    %719 = vector.broadcast %cst_307 : f32 to vector<8x20xf32>
    %720 = arith.addf %718, %719 : vector<8x20xf32>
    %721 = vector.extract_strided_slice %704 {offsets = [0, 256], sizes = [8, 20], strides = [1, 1]} : vector<8x512xf32> to vector<8x20xf32>
    %722 = math.tanh %721 : vector<8x20xf32>
    %723 = vector.extract_strided_slice %704 {offsets = [0, 384], sizes = [8, 20], strides = [1, 1]} : vector<8x512xf32> to vector<8x20xf32>
    %cst_308 = arith.constant 5.000000e-01 : f32
    %724 = vector.broadcast %cst_308 : f32 to vector<8x20xf32>
    %725 = arith.mulf %724, %723 : vector<8x20xf32>
    %726 = math.tanh %725 : vector<8x20xf32>
    %cst_309 = arith.constant 5.000000e-01 : f32
    %727 = vector.broadcast %cst_309 : f32 to vector<8x20xf32>
    %728 = arith.mulf %727, %726 : vector<8x20xf32>
    %cst_310 = arith.constant 5.000000e-01 : f32
    %729 = vector.broadcast %cst_310 : f32 to vector<8x20xf32>
    %730 = arith.addf %728, %729 : vector<8x20xf32>
    %731 = arith.mulf %720, %640 : vector<8x20xf32>
    %732 = arith.mulf %712, %722 : vector<8x20xf32>
    %733 = arith.addf %731, %732 : vector<8x20xf32>
    %734 = math.tanh %733 : vector<8x20xf32>
    %735 = arith.mulf %730, %734 : vector<8x20xf32>
    %c0_311 = arith.constant 0 : index
    %c0_312 = arith.constant 0 : index
    %736 = vector.load %arg11[%c0_311, %c0_312] : memref<1x20xf32, #tpu.memory_space<vmem>>, vector<1x20xf32>
    %737 = vector.broadcast %736 : vector<1x20xf32> to vector<8x20xf32>
    %738 = arith.mulf %735, %737 : vector<8x20xf32>
    %cst_313 = arith.constant dense<0.000000e+00> : vector<8xf32>
    %739 = vector.multi_reduction <add>, %738, %cst_313 [1] : vector<8x20xf32> to vector<8xf32>
    %740 = vector.shape_cast %739 : vector<8xf32> to vector<8x1xf32>
    %c0_314 = arith.constant 0 : index
    %c0_315 = arith.constant 0 : index
    %741 = vector.load %arg12[%c0_314, %c0_315] : memref<1x1xf32, #tpu.memory_space<vmem>>, vector<1x1xf32>
    %742 = vector.broadcast %741 : vector<1x1xf32> to vector<8x1xf32>
    %743 = arith.addf %740, %742 : vector<8x1xf32>
    %744 = arith.index_cast %c7_i32 : i32 to index
    %c0_316 = arith.constant 0 : index
    %c0_317 = arith.constant 0 : index
    %745 = vector.load %arg13[%744, %c0_316, %c0_317] : memref<8x8x1xf32, #tpu.memory_space<vmem>>, vector<1x8x1xf32>
    %746 = vector.shape_cast %745 : vector<1x8x1xf32> to vector<8x1xf32>
    %747 = vector.shape_cast %743 : vector<8x1xf32> to vector<1x8x1xf32>
    tpu.vector_store %arg13[%744, %c0_316, %c0_317], %747 {strides = array<i32>} : memref<8x8x1xf32, #tpu.memory_space<vmem>>, vector<1x8x1xf32>,
    %c8_i32 = arith.constant 8 : i32
    %c0_318 = arith.constant 0 : index
    %c0_319 = arith.constant 0 : index
    %748 = vector.load %arg14[%c0_318, %c0_319] : memref<8x20xf32, #tpu.memory_space<vmem>>, vector<8x20xf32>
    tpu.vector_store %arg14[%c0_318, %c0_319], %698 {strides = array<i32>} : memref<8x20xf32, #tpu.memory_space<vmem>>, vector<8x20xf32>,
    %c0_320 = arith.constant 0 : index
    %c0_321 = arith.constant 0 : index
    %749 = vector.load %arg15[%c0_320, %c0_321] : memref<8x20xf32, #tpu.memory_space<vmem>>, vector<8x20xf32>
    tpu.vector_store %arg15[%c0_320, %c0_321], %696 {strides = array<i32>} : memref<8x20xf32, #tpu.memory_space<vmem>>, vector<8x20xf32>,
    %c0_322 = arith.constant 0 : index
    %c0_323 = arith.constant 0 : index
    %750 = vector.load %arg16[%c0_322, %c0_323] : memref<8x20xf32, #tpu.memory_space<vmem>>, vector<8x20xf32>
    tpu.vector_store %arg16[%c0_322, %c0_323], %735 {strides = array<i32>} : memref<8x20xf32, #tpu.memory_space<vmem>>, vector<8x20xf32>,
    %c0_324 = arith.constant 0 : index
    %c0_325 = arith.constant 0 : index
    %751 = vector.load %arg17[%c0_324, %c0_325] : memref<8x20xf32, #tpu.memory_space<vmem>>, vector<8x20xf32>
    tpu.vector_store %arg17[%c0_324, %c0_325], %733 {strides = array<i32>} : memref<8x20xf32, #tpu.memory_space<vmem>>, vector<8x20xf32>,
    return
  }
  func.func @transform_0(%arg0: i32) -> (i32, i32, i32) {
    %c0_i32 = arith.constant 0 : i32
    %c0_i32_0 = arith.constant 0 : i32
    %c0_i32_1 = arith.constant 0 : i32
    return %c0_i32, %arg0, %c0_i32_0 : i32, i32, i32
  }
  func.func @transform_1(%arg0: i32) -> (i32, i32) {
    %c0_i32 = arith.constant 0 : i32
    %c0_i32_0 = arith.constant 0 : i32
    return %arg0, %c0_i32 : i32, i32
  }
  func.func @transform_2(%arg0: i32) -> (i32, i32) {
    %c0_i32 = arith.constant 0 : i32
    %c0_i32_0 = arith.constant 0 : i32
    return %arg0, %c0_i32 : i32, i32
  }
  func.func @transform_3(%arg0: i32) -> (i32, i32) {
    %c0_i32 = arith.constant 0 : i32
    %c0_i32_0 = arith.constant 0 : i32
    return %arg0, %c0_i32 : i32, i32
  }
  func.func @transform_4(%arg0: i32) -> (i32, i32) {
    %c0_i32 = arith.constant 0 : i32
    %c0_i32_0 = arith.constant 0 : i32
    return %arg0, %c0_i32 : i32, i32
  }
  func.func @transform_5(%arg0: i32) -> (i32, i32) {
    %c0_i32 = arith.constant 0 : i32
    %c0_i32_0 = arith.constant 0 : i32
    %c0_i32_1 = arith.constant 0 : i32
    return %c0_i32, %c0_i32_0 : i32, i32
  }
  func.func @transform_6(%arg0: i32) -> (i32, i32) {
    %c0_i32 = arith.constant 0 : i32
    %c0_i32_0 = arith.constant 0 : i32
    %c0_i32_1 = arith.constant 0 : i32
    return %c0_i32, %c0_i32_0 : i32, i32
  }
  func.func @transform_7(%arg0: i32) -> (i32, i32) {
    %c0_i32 = arith.constant 0 : i32
    %c0_i32_0 = arith.constant 0 : i32
    %c0_i32_1 = arith.constant 0 : i32
    return %c0_i32, %c0_i32_0 : i32, i32
  }
  func.func @transform_8(%arg0: i32) -> (i32, i32) {
    %c0_i32 = arith.constant 0 : i32
    %c0_i32_0 = arith.constant 0 : i32
    %c0_i32_1 = arith.constant 0 : i32
    return %c0_i32, %c0_i32_0 : i32, i32
  }
  func.func @transform_9(%arg0: i32) -> (i32, i32) {
    %c0_i32 = arith.constant 0 : i32
    %c0_i32_0 = arith.constant 0 : i32
    %c0_i32_1 = arith.constant 0 : i32
    return %c0_i32, %c0_i32_0 : i32, i32
  }
  func.func @transform_10(%arg0: i32) -> (i32, i32) {
    %c0_i32 = arith.constant 0 : i32
    %c0_i32_0 = arith.constant 0 : i32
    %c0_i32_1 = arith.constant 0 : i32
    return %c0_i32, %c0_i32_0 : i32, i32
  }
  func.func @transform_11(%arg0: i32) -> (i32, i32) {
    %c0_i32 = arith.constant 0 : i32
    %c0_i32_0 = arith.constant 0 : i32
    %c0_i32_1 = arith.constant 0 : i32
    return %c0_i32, %c0_i32_0 : i32, i32
  }
  func.func @transform_12(%arg0: i32) -> (i32, i32, i32) {
    %c0_i32 = arith.constant 0 : i32
    %c0_i32_0 = arith.constant 0 : i32
    %c0_i32_1 = arith.constant 0 : i32
    return %c0_i32, %arg0, %c0_i32_0 : i32, i32, i32
  }
  func.func @transform_13(%arg0: i32) -> (i32, i32) {
    %c0_i32 = arith.constant 0 : i32
    %c0_i32_0 = arith.constant 0 : i32
    return %arg0, %c0_i32 : i32, i32
  }
  func.func @transform_14(%arg0: i32) -> (i32, i32) {
    %c0_i32 = arith.constant 0 : i32
    %c0_i32_0 = arith.constant 0 : i32
    return %arg0, %c0_i32 : i32, i32
  }
  func.func @transform_15(%arg0: i32) -> (i32, i32) {
    %c0_i32 = arith.constant 0 : i32
    %c0_i32_0 = arith.constant 0 : i32
    return %arg0, %c0_i32 : i32, i32
  }
  func.func @transform_16(%arg0: i32) -> (i32, i32) {
    %c0_i32 = arith.constant 0 : i32
    %c0_i32_0 = arith.constant 0 : i32
    return %arg0, %c0_i32 : i32, i32
  }
}

</mosaic_0001>

<llo_original>
// kernel: tpu_custom_call.1
$region0: #{tpu_custom_call.1}
  #allocation0 [shape = 'u32[]', space=smem, size = 0x4, offset = 0x4, fixed_abs, tag = 'smem constant byte address 0x4 - core index']
  #allocation1 [shape = 'u32[144,128]{1,0:T(1,128)}', space=vmem, size = 0x12000, scoped, tag = 'internal scratch']
  #allocation2 [shape = 'f32[1,1]{1,0:T(1,128)S(1)}', space=vmem, size = 0x200, scoped, tag = 'scoped memory for tpu_custom_call.1']
  %s0 = inlined_call_operand.vmem [shape: f32[8,8,1], index: 0, kind: input, shape index: {}]
  %s1 = inlined_call_operand.hbm [shape: f32[8,20], index: 1, kind: input, shape index: {}]
  %s2 = inlined_call_operand.hbm [shape: f32[8,20], index: 2, kind: input, shape index: {}]
  %s3 = inlined_call_operand.hbm [shape: f32[8,20], index: 3, kind: input, shape index: {}]
  %s4 = inlined_call_operand.hbm [shape: f32[8,20], index: 4, kind: input, shape index: {}]
  %s5 = inlined_call_operand.hbm [shape: f32[1,512], index: 5, kind: input, shape index: {}]
  %s6 = inlined_call_operand.vmem [shape: f32[20,512], index: 6, kind: input, shape index: {}]
  %s7 = inlined_call_operand.vmem [shape: f32[1,512], index: 7, kind: input, shape index: {}]
  %s8 = inlined_call_operand.hbm [shape: f32[40,512], index: 8, kind: input, shape index: {}]
  %s9 = inlined_call_operand.vmem [shape: f32[1,512], index: 9, kind: input, shape index: {}]
  %s10 = inlined_call_operand.vmem [shape: f32[1,20], index: 10, kind: input, shape index: {}]
  %s11 = inlined_call_operand.<no memory space> [shape: f32[1,1], index: 11, kind: input, shape index: {}]
  %s12 = inlined_call_operand.vmem [shape: f32[8,8,1], index: 12, kind: output, shape index: {0}]
  %s13 = inlined_call_operand.hbm [shape: f32[8,20], index: 13, kind: output, shape index: {1}]
  %s14 = inlined_call_operand.hbm [shape: f32[8,20], index: 14, kind: output, shape index: {2}]
  %s15 = inlined_call_operand.hbm [shape: f32[8,20], index: 15, kind: output, shape index: {3}]
  %s16 = inlined_call_operand.hbm [shape: f32[8,20], index: 16, kind: output, shape index: {4}]
  %17 = xla_tuple %s12, %s13, %s14, %s15, %s16
  %s18 = sld [smem:[#allocation0]]
  $region114: #{tpu_custom_call.1} parent=0
    _
  %s20 = ssub.s32 1, %s18
  %s21 = scalar_select 0, %s20, %s18
  %v22 = vstv %s11
  %23 = vst [vmem:[#allocation2] sm:$0x1] %v22
  $region1: #{tpu_custom_call.1} parent=0
    #allocation3 [shape = 'u8[4096]{0}', space=vmem, size = 0x1000, scoped, tag = 'input window, operand 1, single buffered']
    #allocation4 [shape = 's32[1]{0}', space=sflag, size = 0x4, scoped, tag = 'scoped memory for tpu_custom_call.1']
    #allocation5 [shape = 's32[1]{0}', space=sflag, size = 0x4, scoped, tag = 'scoped memory for tpu_custom_call.1']
    #allocation6 [shape = 'u8[4096]{0}', space=vmem, size = 0x1000, scoped, tag = 'input window, operand 2, single buffered']
    #allocation7 [shape = 's32[1]{0}', space=sflag, size = 0x4, scoped, tag = 'scoped memory for tpu_custom_call.1']
    #allocation8 [shape = 'u8[4096]{0}', space=vmem, size = 0x1000, scoped, tag = 'input window, operand 3, single buffered']
    #allocation9 [shape = 'u8[4096]{0}', space=vmem, size = 0x1000, scoped, tag = 'input window, operand 4, single buffered']
    #allocation10 [shape = 's32[1]{0}', space=sflag, size = 0x4, scoped, tag = 'scoped memory for tpu_custom_call.1']
    #allocation11 [shape = 'u8[2048]{0}', space=vmem, size = 0x800, scoped, tag = 'input window, operand 5, single buffered']
    #allocation12 [shape = 'u8[81920]{0}', space=vmem, size = 0x14000, scoped, tag = 'input window, operand 8, single buffered']
    #allocation13 [shape = 's32[1]{0}', space=sflag, size = 0x4, scoped, tag = 'scoped memory for tpu_custom_call.1']
    #allocation14 [shape = 'u8[4096]{0}', space=vmem, size = 0x1000, scoped, tag = 'output window, operand 1, single buffered']
    #allocation15 [shape = 'u8[4096]{0}', space=vmem, size = 0x1000, scoped, tag = 'output window, operand 2, single buffered']
    #allocation16 [shape = 's32[1]{0}', space=sflag, size = 0x4, scoped, tag = 'scoped memory for tpu_custom_call.1']
    #allocation17 [shape = 'u8[4096]{0}', space=vmem, size = 0x1000, scoped, tag = 'output window, operand 3, single buffered']
    #allocation18 [shape = 'u8[4096]{0}', space=vmem, size = 0x1000, scoped, tag = 'output window, operand 4, single buffered']
    #allocation19 [shape = 's32[1]{0}', space=sflag, size = 0x4, scoped, tag = 'scoped memory for tpu_custom_call.1']
    %24 = vsyncpa [#allocation4], 0
    %25 = vsyncpa [#allocation7], 0
    %26 = vsyncpa [#allocation10], 0
    %27 = vsyncpa [#allocation13], 0
    %28 = vsyncpa [#allocation5], 0
    %29 = vsyncpa [#allocation16], 0
    %30 = vsyncpa [#allocation19], 0
    // Predicated region
    $region2: #{tpu_custom_call.1} parent=1 // pred_check
      _
    $region3: #{tpu_custom_call.1} parent=1 // pred_check_branch
      %32 = sbr.rel (0) target = $region5
    $region4: #{tpu_custom_call.1} parent=1 // pred_region
      _
    $region5: #{tpu_custom_call.1} parent=1 // pred_fallthru
      _
    // Predicated region
    $region6: #{tpu_custom_call.1} parent=1 // pred_check
      _
    $region7: #{tpu_custom_call.1} parent=1 // pred_check_branch
      %34 = sbr.rel (0) target = $region9
    $region8: #{tpu_custom_call.1} parent=1 // pred_region
      %s36 = ssub.s32 128, 128
      %37 = vsyncadd [#allocation4], %s36
      %s39 = sshll.u32 [#allocation3], 4
      %s40 = int_to_ptr.vmem [resolvable:$true] %s39
      %42 = dma.hbm_to_vmem [thread:$0]  %s1, 128, %s40, [#allocation4]
    $region9: #{tpu_custom_call.1} parent=1 // pred_fallthru
      _
    // Predicated region
    $region10: #{tpu_custom_call.1} parent=1 // pred_check
      _
    $region11: #{tpu_custom_call.1} parent=1 // pred_check_branch
      %44 = sbr.rel (0) target = $region13
    $region12: #{tpu_custom_call.1} parent=1 // pred_region
      %s46 = ssub.s32 128, 128
      %47 = vsyncadd [#allocation7], %s46
      %s49 = sshll.u32 [#allocation6], 4
      %s50 = int_to_ptr.vmem [resolvable:$true] %s49
      %52 = dma.hbm_to_vmem [thread:$0]  %s2, 128, %s50, [#allocation7]
    $region13: #{tpu_custom_call.1} parent=1 // pred_fallthru
      _
    // Predicated region
    $region14: #{tpu_custom_call.1} parent=1 // pred_check
      _
    $region15: #{tpu_custom_call.1} parent=1 // pred_check_branch
      %54 = sbr.rel (0) target = $region17
    $region16: #{tpu_custom_call.1} parent=1 // pred_region
      %s56 = ssub.s32 128, 128
      %57 = vsyncadd [#allocation7], %s56
      %s59 = sshll.u32 [#allocation8], 4
      %s60 = int_to_ptr.vmem [resolvable:$true] %s59
      %62 = dma.hbm_to_vmem [thread:$0]  %s3, 128, %s60, [#allocation7]
    $region17: #{tpu_custom_call.1} parent=1 // pred_fallthru
      _
    // Predicated region
    $region18: #{tpu_custom_call.1} parent=1 // pred_check
      _
    $region19: #{tpu_custom_call.1} parent=1 // pred_check_branch
      %64 = sbr.rel (0) target = $region21
    $region20: #{tpu_custom_call.1} parent=1 // pred_region
      %s66 = ssub.s32 128, 128
      %67 = vsyncadd [#allocation10], %s66
      %s69 = sshll.u32 [#allocation9], 4
      %s70 = int_to_ptr.vmem [resolvable:$true] %s69
      %72 = dma.hbm_to_vmem [thread:$0]  %s4, 128, %s70, [#allocation10]
    $region21: #{tpu_custom_call.1} parent=1 // pred_fallthru
      _
    // Predicated region
    $region22: #{tpu_custom_call.1} parent=1 // pred_check
      _
    $region23: #{tpu_custom_call.1} parent=1 // pred_check_branch
      %74 = sbr.rel (0) target = $region25
    $region24: #{tpu_custom_call.1} parent=1 // pred_region
      %s76 = ssub.s32 64, 64
      %77 = vsyncadd [#allocation10], %s76
      %s79 = sshll.u32 [#allocation11], 4
      %s80 = int_to_ptr.vmem [resolvable:$true] %s79
      %82 = dma.hbm_to_vmem [thread:$0]  %s5, 64, %s80, [#allocation10]
    $region25: #{tpu_custom_call.1} parent=1 // pred_fallthru
      _
    // Predicated region
    $region26: #{tpu_custom_call.1} parent=1 // pred_check
      _
    $region27: #{tpu_custom_call.1} parent=1 // pred_check_branch
      %84 = sbr.rel (0) target = $region29
    $region28: #{tpu_custom_call.1} parent=1 // pred_region
      _
    $region29: #{tpu_custom_call.1} parent=1 // pred_fallthru
      _
    // Predicated region
    $region30: #{tpu_custom_call.1} parent=1 // pred_check
      _
    $region31: #{tpu_custom_call.1} parent=1 // pred_check_branch
      %86 = sbr.rel (0) target = $region33
    $region32: #{tpu_custom_call.1} parent=1 // pred_region
      _
    $region33: #{tpu_custom_call.1} parent=1 // pred_fallthru
      _
    // Predicated region
    $region34: #{tpu_custom_call.1} parent=1 // pred_check
      _
    $region35: #{tpu_custom_call.1} parent=1 // pred_check_branch
      %88 = sbr.rel (0) target = $region37
    $region36: #{tpu_custom_call.1} parent=1 // pred_region
      %s90 = ssub.s32 2560, 2560
      %91 = vsyncadd [#allocation13], %s90
      %s92 = sshll.u32 [#allocation12], 4
      %s93 = int_to_ptr.vmem [resolvable:$true] %s92
      %98 = dma.hbm_to_vmem [thread:$0]  %s8, 2560, %s93, [#allocation13], 512, 512, 32
    $region37: #{tpu_custom_call.1} parent=1 // pred_fallthru
      _
    // Predicated region
    $region38: #{tpu_custom_call.1} parent=1 // pred_check
      _
    $region39: #{tpu_custom_call.1} parent=1 // pred_check_branch
      %100 = sbr.rel (0) target = $region41
    $region40: #{tpu_custom_call.1} parent=1 // pred_region
      _
    $region41: #{tpu_custom_call.1} parent=1 // pred_fallthru
      _
    // Predicated region
    $region42: #{tpu_custom_call.1} parent=1 // pred_check
      _
    $region43: #{tpu_custom_call.1} parent=1 // pred_check_branch
      %102 = sbr.rel (0) target = $region45
    $region44: #{tpu_custom_call.1} parent=1 // pred_region
      _
    $region45: #{tpu_custom_call.1} parent=1 // pred_fallthru
      _
    // Predicated region
    $region46: #{tpu_custom_call.1} parent=1 // pred_check
      _
    $region47: #{tpu_custom_call.1} parent=1 // pred_check_branch
      %104 = sbr.rel (0) target = $region49
    $region48: #{tpu_custom_call.1} parent=1 // pred_region
      _
    $region49: #{tpu_custom_call.1} parent=1 // pred_fallthru
      _
    // Predicated region
    $region50: #{tpu_custom_call.1} parent=1 // pred_check
      _
    $region51: #{tpu_custom_call.1} parent=1 // pred_check_branch
      %106 = sbr.rel (0) target = $region53
    $region52: #{tpu_custom_call.1} parent=1 // pred_region
      %107 = dma.done [#allocation4], 128
    $region53: #{tpu_custom_call.1} parent=1 // pred_fallthru
      _
    // Predicated region
    $region54: #{tpu_custom_call.1} parent=1 // pred_check
      _
    $region55: #{tpu_custom_call.1} parent=1 // pred_check_branch
      %109 = sbr.rel (0) target = $region57
    $region56: #{tpu_custom_call.1} parent=1 // pred_region
      %110 = dma.done [#allocation7], 128
    $region57: #{tpu_custom_call.1} parent=1 // pred_fallthru
      _
    // Predicated region
    $region58: #{tpu_custom_call.1} parent=1 // pred_check
      _
    $region59: #{tpu_custom_call.1} parent=1 // pred_check_branch
      %112 = sbr.rel (0) target = $region61
    $region60: #{tpu_custom_call.1} parent=1 // pred_region
      %113 = dma.done [#allocation7], 128
    $region61: #{tpu_custom_call.1} parent=1 // pred_fallthru
      _
    // Predicated region
    $region62: #{tpu_custom_call.1} parent=1 // pred_check
      _
    $region63: #{tpu_custom_call.1} parent=1 // pred_check_branch
      %115 = sbr.rel (0) target = $region65
    $region64: #{tpu_custom_call.1} parent=1 // pred_region
      %116 = dma.done [#allocation10], 128
    $region65: #{tpu_custom_call.1} parent=1 // pred_fallthru
      _
    // Predicated region
    $region66: #{tpu_custom_call.1} parent=1 // pred_check
      _
    $region67: #{tpu_custom_call.1} parent=1 // pred_check_branch
      %118 = sbr.rel (0) target = $region69
    $region68: #{tpu_custom_call.1} parent=1 // pred_region
      %119 = dma.done [#allocation10], 64
    $region69: #{tpu_custom_call.1} parent=1 // pred_fallthru
      _
    // Predicated region
    $region70: #{tpu_custom_call.1} parent=1 // pred_check
      _
    $region71: #{tpu_custom_call.1} parent=1 // pred_check_branch
      %121 = sbr.rel (0) target = $region73
    $region72: #{tpu_custom_call.1} parent=1 // pred_region
      %122 = dma.done [#allocation13], 2560
    $region73: #{tpu_custom_call.1} parent=1 // pred_fallthru
      _
    %v123 = vld [vmem:[#allocation3] sm:$0xff]
    %v124 = vld [vmem:[#allocation6] sm:$0xff]
    %v125 = vld [vmem:[#allocation8] sm:$0xff]
    %v126 = vld [vmem:[#allocation9] sm:$0xff]
    %v127 = vld [vmem:[%s0] sm:$0xff]
    %v128 = vld [vmem:[#allocation11] sm:$0xf]
    %130 = vset.pattern.permute.xlu0 0
    %131 = vperm.xlu0 %130, %v127
    %v132 = vpop.permute.xlu0 %131
    %v135 = vlaneseq
    %v136 = vshrl.u32 %v135, 7
    %v137 = vsub.s32 0, %v136
    %v138 = vrot.slane %v128, %v137
    %v139 = vlaneseq
    %v140 = vshrl.u32 %v139, 7
    %v141 = vsub.s32 1, %v140
    %v142 = vrot.slane %v128, %v141
    %v143 = vlaneseq
    %v144 = vshrl.u32 %v143, 7
    %v145 = vsub.s32 2, %v144
    %v146 = vrot.slane %v128, %v145
    %v147 = vlaneseq
    %v148 = vshrl.u32 %v147, 7
    %v149 = vsub.s32 3, %v148
    %v150 = vrot.slane %v128, %v149
    %v155 = vmul.f32 %v132, %v138
    %v156 = vmul.f32 %v132, %v142
    %v157 = vmul.f32 %v132, %v146
    %v158 = vmul.f32 %v132, %v150
    %v159 = vld [vmem:[%s6] sm:$0xff]
    %v160 = vld [vmem:[%s6 + $0x8] sm:$0xff]
    %v161 = vld [vmem:[%s6 + $0x10] sm:$0xff]
    %v162 = vld [vmem:[%s6 + $0x18] sm:$0xff]
    %v163 = vld [vmem:[%s6 + $0x20] sm:$0xff]
    %v164 = vld [vmem:[%s6 + $0x28] sm:$0xff]
    %v165 = vld [vmem:[%s6 + $0x30] sm:$0xff]
    %v166 = vld [vmem:[%s6 + $0x38] sm:$0xff]
    %v167 = vld [vmem:[%s6 + $0x40] sm:$0xf]
    %v168 = vld [vmem:[%s6 + $0x48] sm:$0xf]
    %v169 = vld [vmem:[%s6 + $0x50] sm:$0xf]
    %v170 = vld [vmem:[%s6 + $0x58] sm:$0xf]
    %vm171 = vcmask 162816
    %v173 = vsel %vm171, %v123, 0
    %vm175 = vcmask 1043456
    %v177 = vsel %vm175, %v167, 0
    %v180 = vsel %vm175, %v168, 0
    %v183 = vsel %vm175, %v169, 0
    %v186 = vsel %vm175, %v170, 0
    %188 = vmatprep.subr.mxu0 %v160
    %189 = vmatpush1.msra.mxu0 %v159
    %190 = vmatprep.subr.mxu0 %v164
    %191 = vmatpush1.msra.mxu0 %v163
    %192 = vmatprep.subr.mxu0 %v180
    %193 = vmatpush1.msra.mxu0 %v177
    %194 = vmatprep.subr.mxu0 0.0
    %195 = vmatpush1.msra.mxu0 0.0
    %196 = vmatprep.subr.mxu0 0.0
    %197 = vmatpush1.msra.mxu0 0.0
    %198 = vmatprep.subr.mxu0 0.0
    %199 = vmatpush1.msra.mxu0 0.0
    %200 = vmatprep.subr.mxu0 0.0
    %201 = vmatpush1.msra.mxu0 0.0
    %202 = vmatprep.subr.mxu0 0.0
    %203 = vmatpush1.msra.mxu0 0.0
    %204 = vmatprep.subr.mxu0 0.0
    %205 = vmatpush1.msra.mxu0 0.0
    %206 = vmatprep.subr.mxu0 0.0
    %207 = vmatpush1.msra.mxu0 0.0
    %208 = vmatprep.subr.mxu0 0.0
    %209 = vmatpush1.msra.mxu0 0.0
    %210 = vmatprep.subr.mxu0 0.0
    %211 = vmatpush1.msra.mxu0 0.0
    %212 = vmatprep.subr.mxu0 0.0
    %213 = vmatpush1.msra.mxu0 0.0
    %214 = vmatprep.subr.mxu0 0.0
    %215 = vmatpush1.msra.mxu0 0.0
    %216 = vmatprep.subr.mxu0 0.0
    %217 = vmatpush1.msra.mxu0 0.0
    %218 = vmatprep.subr.mxu0 0.0
    %219 = vmatpush1.msra.mxu0 0.0
    %220 = vmatprep.subr.mxu0 0.0
    %221 = vmatpush1.msra.mxu0 0.0
    %222 = vmatprep.subr.mxu0 0.0
    %223 = vmatpush1.msra.mxu0 0.0
    %224 = vmatprep.subr.mxu0 0.0
    %225 = vmatpush1.msra.mxu0 0.0
    %226 = vmatprep.subr.mxu0 0.0
    %227 = vmatpush1.msra.mxu0 0.0
    %228 = vmatprep.subr.mxu0 0.0
    %229 = vmatpush1.msra.mxu0 0.0
    %230 = vmatprep.subr.mxu0 0.0
    %231 = vmatpush1.msra.mxu0 0.0
    %232 = vmatprep.subr.mxu0 0.0
    %233 = vmatpush1.msra.mxu0 0.0
    %234 = vmatprep.subr.mxu0 0.0
    %235 = vmatpush1.msra.mxu0 0.0
    %236 = vmatprep.subr.mxu0 0.0
    %237 = vmatpush1.msra.mxu0 0.0
    %238 = vmatprep.subr.mxu0 0.0
    %239 = vmatpush1.msra.mxu0 0.0
    %240 = vmatprep.subr.mxu0 0.0
    %241 = vmatpush1.msra.mxu0 0.0
    %242 = vmatprep.subr.mxu0 0.0
    %243 = vmatpush1.msra.mxu0 0.0
    %244 = vmatprep.subr.mxu0 0.0
    %245 = vmatpush1.msra.mxu0 0.0
    %246 = vmatprep.subr.mxu0 0.0
    %247 = vmatpush1.msra.mxu0 0.0
    %248 = vmatprep.subr.mxu0 0.0
    %249 = vmatpush1.msra.mxu0 0.0
    %250 = vmatprep.subr.mxu0 0.0
    %251 = vmatpush1.msra.mxu0 0.0
    %252 = vmatprep.mubr.f32.mxu0 0.0
    %253 = vmatmul.mubr.f32.gmra.mrb[0].mxu0 %v173
    %v254 = vpop.f32.mrb[0].mxu0
    %v255 = vadd.f32 0.0, %v254
    %v256 = vpop.f32.mrb[0].mxu0
    %v257 = vadd.f32 0.0, %v256
    %258 = vdwg.mxu0
    %259 = vmatprep.subr.mxu0 %v162
    %260 = vmatpush1.msra.mxu0 %v161
    %261 = vmatprep.subr.mxu0 %v166
    %262 = vmatpush1.msra.mxu0 %v165
    %263 = vmatprep.subr.mxu0 %v186
    %264 = vmatpush1.msra.mxu0 %v183
    %265 = vmatprep.subr.mxu0 0.0
    %266 = vmatpush1.msra.mxu0 0.0
    %267 = vmatprep.subr.mxu0 0.0
    %268 = vmatpush1.msra.mxu0 0.0
    %269 = vmatprep.subr.mxu0 0.0
    %270 = vmatpush1.msra.mxu0 0.0
    %271 = vmatprep.subr.mxu0 0.0
    %272 = vmatpush1.msra.mxu0 0.0
    %273 = vmatprep.subr.mxu0 0.0
    %274 = vmatpush1.msra.mxu0 0.0
    %275 = vmatprep.subr.mxu0 0.0
    %276 = vmatpush1.msra.mxu0 0.0
    %277 = vmatprep.subr.mxu0 0.0
    %278 = vmatpush1.msra.mxu0 0.0
    %279 = vmatprep.subr.mxu0 0.0
    %280 = vmatpush1.msra.mxu0 0.0
    %281 = vmatprep.subr.mxu0 0.0
    %282 = vmatpush1.msra.mxu0 0.0
    %283 = vmatprep.subr.mxu0 0.0
    %284 = vmatpush1.msra.mxu0 0.0
    %285 = vmatprep.subr.mxu0 0.0
    %286 = vmatpush1.msra.mxu0 0.0
    %287 = vmatprep.subr.mxu0 0.0
    %288 = vmatpush1.msra.mxu0 0.0
    %289 = vmatprep.subr.mxu0 0.0
    %290 = vmatpush1.msra.mxu0 0.0
    %291 = vmatprep.subr.mxu0 0.0
    %292 = vmatpush1.msra.mxu0 0.0
    %293 = vmatprep.subr.mxu0 0.0
    %294 = vmatpush1.msra.mxu0 0.0
    %295 = vmatprep.subr.mxu0 0.0
    %296 = vmatpush1.msra.mxu0 0.0
    %297 = vmatprep.subr.mxu0 0.0
    %298 = vmatpush1.msra.mxu0 0.0
    %299 = vmatprep.subr.mxu0 0.0
    %300 = vmatpush1.msra.mxu0 0.0
    %301 = vmatprep.subr.mxu0 0.0
    %302 = vmatpush1.msra.mxu0 0.0
    %303 = vmatprep.subr.mxu0 0.0
    %304 = vmatpush1.msra.mxu0 0.0
    %305 = vmatprep.subr.mxu0 0.0
    %306 = vmatpush1.msra.mxu0 0.0
    %307 = vmatprep.subr.mxu0 0.0
    %308 = vmatpush1.msra.mxu0 0.0
    %309 = vmatprep.subr.mxu0 0.0
    %310 = vmatpush1.msra.mxu0 0.0
    %311 = vmatprep.subr.mxu0 0.0
    %312 = vmatpush1.msra.mxu0 0.0
    %313 = vmatprep.subr.mxu0 0.0
    %314 = vmatpush1.msra.mxu0 0.0
    %315 = vmatprep.subr.mxu0 0.0
    %316 = vmatpush1.msra.mxu0 0.0
    %317 = vmatprep.subr.mxu0 0.0
    %318 = vmatpush1.msra.mxu0 0.0
    %319 = vmatprep.subr.mxu0 0.0
    %320 = vmatpush1.msra.mxu0 0.0
    %321 = vmatprep.subr.mxu0 0.0
    %322 = vmatpush1.msra.mxu0 0.0
    %323 = vmatprep.mubr.f32.mxu0 0.0
    %324 = vmatmul.mubr.f32.gmra.mrb[0].mxu0 %v173
    %v325 = vpop.f32.mrb[0].mxu0
    %v326 = vadd.f32 0.0, %v325
    %v327 = vpop.f32.mrb[0].mxu0
    %v328 = vadd.f32 0.0, %v327
    %329 = vdwg.mxu0
    %v330 = vadd.f32 %v155, %v255
    %v331 = vadd.f32 %v156, %v257
    %v332 = vadd.f32 %v157, %v326
    %v333 = vadd.f32 %v158, %v328
    %v334 = vld [vmem:[%s7] sm:$0xf]
    %v336 = vlaneseq
    %v337 = vshrl.u32 %v336, 7
    %v338 = vsub.s32 0, %v337
    %v339 = vrot.slane %v334, %v338
    %v340 = vlaneseq
    %v341 = vshrl.u32 %v340, 7
    %v342 = vsub.s32 1, %v341
    %v343 = vrot.slane %v334, %v342
    %v344 = vlaneseq
    %v345 = vshrl.u32 %v344, 7
    %v346 = vsub.s32 2, %v345
    %v347 = vrot.slane %v334, %v346
    %v348 = vlaneseq
    %v349 = vshrl.u32 %v348, 7
    %v350 = vsub.s32 3, %v349
    %v351 = vrot.slane %v334, %v350
    %v356 = vadd.f32 %v330, %v339
    %v357 = vadd.f32 %v331, %v343
    %v358 = vadd.f32 %v332, %v347
    %v359 = vadd.f32 %v333, %v351
    %v360 = vmul.f32 %v356, 0.5
    %v361 = vtanh.pop %v360
    %v362 = vmul.f32 %v361, 0.5
    %v363 = vadd.f32 %v362, 0.5
    %v364 = vmul.f32 %v357, 0.5
    %v365 = vtanh.pop %v364
    %v366 = vmul.f32 %v365, 0.5
    %v367 = vadd.f32 %v366, 0.5
    %v368 = vtanh.pop %v358
    %v369 = vmul.f32 %v359, 0.5
    %v370 = vtanh.pop %v369
    %v371 = vmul.f32 %v370, 0.5
    %v372 = vadd.f32 %v371, 0.5
    %v373 = vmul.f32 %v367, %v124
    %v374 = vmul.f32 %v363, %v368
    %v375 = vadd.f32 %v373, %v374
    %v376 = vtanh.pop %v375
    %v377 = vmul.f32 %v372, %v376
    %379 = vrot.lane.b32.xlu0 %v125, 20
    %v380 = vpop.permute.xlu0 %379
    %v382 = vsel %vm171, %v377, %v380
    %v383 = vld [vmem:[#allocation12] sm:$0xff]
    %v384 = vld [vmem:[#allocation12 + $0x8] sm:$0xff]
    %v385 = vld [vmem:[#allocation12 + $0x10] sm:$0xff]
    %v386 = vld [vmem:[#allocation12 + $0x18] sm:$0xff]
    %v387 = vld [vmem:[#allocation12 + $0x20] sm:$0xff]
    %v388 = vld [vmem:[#allocation12 + $0x28] sm:$0xff]
    %v389 = vld [vmem:[#allocation12 + $0x30] sm:$0xff]
    %v390 = vld [vmem:[#allocation12 + $0x38] sm:$0xff]
    %v391 = vld [vmem:[#allocation12 + $0x40] sm:$0xff]
    %v392 = vld [vmem:[#allocation12 + $0x48] sm:$0xff]
    %v393 = vld [vmem:[#allocation12 + $0x50] sm:$0xff]
    %v394 = vld [vmem:[#allocation12 + $0x58] sm:$0xff]
    %v395 = vld [vmem:[#allocation12 + $0x60] sm:$0xff]
    %v396 = vld [vmem:[#allocation12 + $0x68] sm:$0xff]
    %v397 = vld [vmem:[#allocation12 + $0x70] sm:$0xff]
    %v398 = vld [vmem:[#allocation12 + $0x78] sm:$0xff]
    %v399 = vld [vmem:[#allocation12 + $0x80] sm:$0xff]
    %v400 = vld [vmem:[#allocation12 + $0x88] sm:$0xff]
    %v401 = vld [vmem:[#allocation12 + $0x90] sm:$0xff]
    %v402 = vld [vmem:[#allocation12 + $0x98] sm:$0xff]
    %v403 = vld [vmem:[%s9] sm:$0xf]
    %v405 = vlaneseq
    %v406 = vshrl.u32 %v405, 7
    %v407 = vsub.s32 0, %v406
    %v408 = vrot.slane %v403, %v407
    %v409 = vlaneseq
    %v410 = vshrl.u32 %v409, 7
    %v411 = vsub.s32 1, %v410
    %v412 = vrot.slane %v403, %v411
    %v413 = vlaneseq
    %v414 = vshrl.u32 %v413, 7
    %v415 = vsub.s32 2, %v414
    %v416 = vrot.slane %v403, %v415
    %v417 = vlaneseq
    %v418 = vshrl.u32 %v417, 7
    %v419 = vsub.s32 3, %v418
    %v420 = vrot.slane %v403, %v419
    %vm425 = vcmask 326656
    %v427 = vsel %vm425, %v382, 0
    %429 = vmatprep.subr.mxu0 %v384
    %430 = vmatpush1.msra.mxu0 %v383
    %431 = vmatprep.subr.mxu0 %v388
    %432 = vmatpush1.msra.mxu0 %v387
    %433 = vmatprep.subr.mxu0 %v392
    %434 = vmatpush1.msra.mxu0 %v391
    %435 = vmatprep.subr.mxu0 %v396
    %436 = vmatpush1.msra.mxu0 %v395
    %437 = vmatprep.subr.mxu0 %v400
    %438 = vmatpush1.msra.mxu0 %v399
    %439 = vmatprep.subr.mxu0 0.0
    %440 = vmatpush1.msra.mxu0 0.0
    %441 = vmatprep.subr.mxu0 0.0
    %442 = vmatpush1.msra.mxu0 0.0
    %443 = vmatprep.subr.mxu0 0.0
    %444 = vmatpush1.msra.mxu0 0.0
    %445 = vmatprep.subr.mxu0 0.0
    %446 = vmatpush1.msra.mxu0 0.0
    %447 = vmatprep.subr.mxu0 0.0
    %448 = vmatpush1.msra.mxu0 0.0
    %449 = vmatprep.subr.mxu0 0.0
    %450 = vmatpush1.msra.mxu0 0.0
    %451 = vmatprep.subr.mxu0 0.0
    %452 = vmatpush1.msra.mxu0 0.0
    %453 = vmatprep.subr.mxu0 0.0
    %454 = vmatpush1.msra.mxu0 0.0
    %455 = vmatprep.subr.mxu0 0.0
    %456 = vmatpush1.msra.mxu0 0.0
    %457 = vmatprep.subr.mxu0 0.0
    %458 = vmatpush1.msra.mxu0 0.0
    %459 = vmatprep.subr.mxu0 0.0
    %460 = vmatpush1.msra.mxu0 0.0
    %461 = vmatprep.subr.mxu0 0.0
    %462 = vmatpush1.msra.mxu0 0.0
    %463 = vmatprep.subr.mxu0 0.0
    %464 = vmatpush1.msra.mxu0 0.0
    %465 = vmatprep.subr.mxu0 0.0
    %466 = vmatpush1.msra.mxu0 0.0
    %467 = vmatprep.subr.mxu0 0.0
    %468 = vmatpush1.msra.mxu0 0.0
    %469 = vmatprep.subr.mxu0 0.0
    %470 = vmatpush1.msra.mxu0 0.0
    %471 = vmatprep.subr.mxu0 0.0
    %472 = vmatpush1.msra.mxu0 0.0
    %473 = vmatprep.subr.mxu0 0.0
    %474 = vmatpush1.msra.mxu0 0.0
    %475 = vmatprep.subr.mxu0 0.0
    %476 = vmatpush1.msra.mxu0 0.0
    %477 = vmatprep.subr.mxu0 0.0
    %478 = vmatpush1.msra.mxu0 0.0
    %479 = vmatprep.subr.mxu0 0.0
    %480 = vmatpush1.msra.mxu0 0.0
    %481 = vmatprep.subr.mxu0 0.0
    %482 = vmatpush1.msra.mxu0 0.0
    %483 = vmatprep.subr.mxu0 0.0
    %484 = vmatpush1.msra.mxu0 0.0
    %485 = vmatprep.subr.mxu0 0.0
    %486 = vmatpush1.msra.mxu0 0.0
    %487 = vmatprep.subr.mxu0 0.0
    %488 = vmatpush1.msra.mxu0 0.0
    %489 = vmatprep.subr.mxu0 0.0
    %490 = vmatpush1.msra.mxu0 0.0
    %491 = vmatprep.subr.mxu0 0.0
    %492 = vmatpush1.msra.mxu0 0.0
    %493 = vmatprep.mubr.f32.mxu0 0.0
    %494 = vmatmul.mubr.f32.gmra.mrb[0].mxu0 %v427
    %v495 = vpop.f32.mrb[0].mxu0
    %v496 = vadd.f32 %v408, %v495
    %v497 = vpop.f32.mrb[0].mxu0
    %v498 = vadd.f32 %v412, %v497
    %499 = vdwg.mxu0
    %500 = vmatprep.subr.mxu0 %v386
    %501 = vmatpush1.msra.mxu0 %v385
    %502 = vmatprep.subr.mxu0 %v390
    %503 = vmatpush1.msra.mxu0 %v389
    %504 = vmatprep.subr.mxu0 %v394
    %505 = vmatpush1.msra.mxu0 %v393
    %506 = vmatprep.subr.mxu0 %v398
    %507 = vmatpush1.msra.mxu0 %v397
    %508 = vmatprep.subr.mxu0 %v402
    %509 = vmatpush1.msra.mxu0 %v401
    %510 = vmatprep.subr.mxu0 0.0
    %511 = vmatpush1.msra.mxu0 0.0
    %512 = vmatprep.subr.mxu0 0.0
    %513 = vmatpush1.msra.mxu0 0.0
    %514 = vmatprep.subr.mxu0 0.0
    %515 = vmatpush1.msra.mxu0 0.0
    %516 = vmatprep.subr.mxu0 0.0
    %517 = vmatpush1.msra.mxu0 0.0
    %518 = vmatprep.subr.mxu0 0.0
    %519 = vmatpush1.msra.mxu0 0.0
    %520 = vmatprep.subr.mxu0 0.0
    %521 = vmatpush1.msra.mxu0 0.0
    %522 = vmatprep.subr.mxu0 0.0
    %523 = vmatpush1.msra.mxu0 0.0
    %524 = vmatprep.subr.mxu0 0.0
    %525 = vmatpush1.msra.mxu0 0.0
    %526 = vmatprep.subr.mxu0 0.0
    %527 = vmatpush1.msra.mxu0 0.0
    %528 = vmatprep.subr.mxu0 0.0
    %529 = vmatpush1.msra.mxu0 0.0
    %530 = vmatprep.subr.mxu0 0.0
    %531 = vmatpush1.msra.mxu0 0.0
    %532 = vmatprep.subr.mxu0 0.0
    %533 = vmatpush1.msra.mxu0 0.0
    %534 = vmatprep.subr.mxu0 0.0
    %535 = vmatpush1.msra.mxu0 0.0
    %536 = vmatprep.subr.mxu0 0.0
    %537 = vmatpush1.msra.mxu0 0.0
    %538 = vmatprep.subr.mxu0 0.0
    %539 = vmatpush1.msra.mxu0 0.0
    %540 = vmatprep.subr.mxu0 0.0
    %541 = vmatpush1.msra.mxu0 0.0
    %542 = vmatprep.subr.mxu0 0.0
    %543 = vmatpush1.msra.mxu0 0.0
    %544 = vmatprep.subr.mxu0 0.0
    %545 = vmatpush1.msra.mxu0 0.0
    %546 = vmatprep.subr.mxu0 0.0
    %547 = vmatpush1.msra.mxu0 0.0
    %548 = vmatprep.subr.mxu0 0.0
    %549 = vmatpush1.msra.mxu0 0.0
    %550 = vmatprep.subr.mxu0 0.0
    %551 = vmatpush1.msra.mxu0 0.0
    %552 = vmatprep.subr.mxu0 0.0
    %553 = vmatpush1.msra.mxu0 0.0
    %554 = vmatprep.subr.mxu0 0.0
    %555 = vmatpush1.msra.mxu0 0.0
    %556 = vmatprep.subr.mxu0 0.0
    %557 = vmatpush1.msra.mxu0 0.0
    %558 = vmatprep.subr.mxu0 0.0
    %559 = vmatpush1.msra.mxu0 0.0
    %560 = vmatprep.subr.mxu0 0.0
    %561 = vmatpush1.msra.mxu0 0.0
    %562 = vmatprep.subr.mxu0 0.0
    %563 = vmatpush1.msra.mxu0 0.0
    %564 = vmatprep.mubr.f32.mxu0 0.0
    %565 = vmatmul.mubr.f32.gmra.mrb[0].mxu0 %v427
    %v566 = vpop.f32.mrb[0].mxu0
    %v567 = vadd.f32 %v416, %v566
    %v568 = vpop.f32.mrb[0].mxu0
    %v569 = vadd.f32 %v420, %v568
    %570 = vdwg.mxu0
    %v571 = vmul.f32 %v496, 0.5
    %v572 = vtanh.pop %v571
    %v573 = vmul.f32 %v572, 0.5
    %v574 = vadd.f32 %v573, 0.5
    %v575 = vmul.f32 %v498, 0.5
    %v576 = vtanh.pop %v575
    %v577 = vmul.f32 %v576, 0.5
    %v578 = vadd.f32 %v577, 0.5
    %v579 = vtanh.pop %v567
    %v580 = vmul.f32 %v569, 0.5
    %v581 = vtanh.pop %v580
    %v582 = vmul.f32 %v581, 0.5
    %v583 = vadd.f32 %v582, 0.5
    %v584 = vmul.f32 %v578, %v126
    %v585 = vmul.f32 %v574, %v579
    %v586 = vadd.f32 %v584, %v585
    %v587 = vtanh.pop %v586
    %v588 = vmul.f32 %v583, %v587
    %v589 = vld [vmem:[%s10] sm:$0x1]
    %v591 = vlaneseq
    %v592 = vshrl.u32 %v591, 7
    %v593 = vsub.s32 0, %v592
    %v594 = vrot.slane %v589, %v593
    %v596 = vmul.f32 %v588, %v594
    %v597 = vsel %vm171, %v596, 0.0
    %598 = vadd.xlane.f32.xlu0 %v597
    %v599 = vpop.xlane.xlu0 %598
    %v600 = vld [vmem:[#allocation2] sm:$0x1]
    %v602 = vlaneseq
    %v603 = vshrl.u32 %v602, 7
    %v604 = vsub.s32 0, %v603
    %v605 = vrot.slane %v600, %v604
    %v607 = vadd.f32 %v599, %v605
    %vm608 = vcmask 7168
    %609 = vst.msk [vmem:[%s12] sm:$0xff] %vm608, %v607
    %s610 = scalar_lea.vmem %s0, 8
    %v611 = vld [vmem:[%s610] sm:$0xff]
    %v612 = vld [vmem:[#allocation11] sm:$0xf]
    %614 = vset.pattern.permute.xlu0 0
    %615 = vperm.xlu0 %614, %v611
    %v616 = vpop.permute.xlu0 %615
    %v619 = vlaneseq
    %v620 = vshrl.u32 %v619, 7
    %v621 = vsub.s32 0, %v620
    %v622 = vrot.slane %v612, %v621
    %v623 = vlaneseq
    %v624 = vshrl.u32 %v623, 7
    %v625 = vsub.s32 1, %v624
    %v626 = vrot.slane %v612, %v625
    %v627 = vlaneseq
    %v628 = vshrl.u32 %v627, 7
    %v629 = vsub.s32 2, %v628
    %v630 = vrot.slane %v612, %v629
    %v631 = vlaneseq
    %v632 = vshrl.u32 %v631, 7
    %v633 = vsub.s32 3, %v632
    %v634 = vrot.slane %v612, %v633
    %v639 = vmul.f32 %v616, %v622
    %v640 = vmul.f32 %v616, %v626
    %v641 = vmul.f32 %v616, %v630
    %v642 = vmul.f32 %v616, %v634
    %v643 = vld [vmem:[%s6] sm:$0xff]
    %v644 = vld [vmem:[%s6 + $0x8] sm:$0xff]
    %v645 = vld [vmem:[%s6 + $0x10] sm:$0xff]
    %v646 = vld [vmem:[%s6 + $0x18] sm:$0xff]
    %v647 = vld [vmem:[%s6 + $0x20] sm:$0xff]
    %v648 = vld [vmem:[%s6 + $0x28] sm:$0xff]
    %v649 = vld [vmem:[%s6 + $0x30] sm:$0xff]
    %v650 = vld [vmem:[%s6 + $0x38] sm:$0xff]
    %v651 = vld [vmem:[%s6 + $0x40] sm:$0xf]
    %v652 = vld [vmem:[%s6 + $0x48] sm:$0xf]
    %v653 = vld [vmem:[%s6 + $0x50] sm:$0xf]
    %v654 = vld [vmem:[%s6 + $0x58] sm:$0xf]
    %v656 = vsel %vm171, %v377, 0
    %v659 = vsel %vm175, %v651, 0
    %v662 = vsel %vm175, %v652, 0
    %v665 = vsel %vm175, %v653, 0
    %v668 = vsel %vm175, %v654, 0
    %670 = vmatprep.subr.mxu0 %v644
    %671 = vmatpush1.msra.mxu0 %v643
    %672 = vmatprep.subr.mxu0 %v648
    %673 = vmatpush1.msra.mxu0 %v647
    %674 = vmatprep.subr.mxu0 %v662
    %675 = vmatpush1.msra.mxu0 %v659
    %676 = vmatprep.subr.mxu0 0.0
    %677 = vmatpush1.msra.mxu0 0.0
    %678 = vmatprep.subr.mxu0 0.0
    %679 = vmatpush1.msra.mxu0 0.0
    %680 = vmatprep.subr.mxu0 0.0
    %681 = vmatpush1.msra.mxu0 0.0
    %682 = vmatprep.subr.mxu0 0.0
    %683 = vmatpush1.msra.mxu0 0.0
    %684 = vmatprep.subr.mxu0 0.0
    %685 = vmatpush1.msra.mxu0 0.0
    %686 = vmatprep.subr.mxu0 0.0
    %687 = vmatpush1.msra.mxu0 0.0
    %688 = vmatprep.subr.mxu0 0.0
    %689 = vmatpush1.msra.mxu0 0.0
    %690 = vmatprep.subr.mxu0 0.0
    %691 = vmatpush1.msra.mxu0 0.0
    %692 = vmatprep.subr.mxu0 0.0
    %693 = vmatpush1.msra.mxu0 0.0
    %694 = vmatprep.subr.mxu0 0.0
    %695 = vmatpush1.msra.mxu0 0.0
    %696 = vmatprep.subr.mxu0 0.0
    %697 = vmatpush1.msra.mxu0 0.0
    %698 = vmatprep.subr.mxu0 0.0
    %699 = vmatpush1.msra.mxu0 0.0
    %700 = vmatprep.subr.mxu0 0.0
    %701 = vmatpush1.msra.mxu0 0.0
    %702 = vmatprep.subr.mxu0 0.0
    %703 = vmatpush1.msra.mxu0 0.0
    %704 = vmatprep.subr.mxu0 0.0
    %705 = vmatpush1.msra.mxu0 0.0
    %706 = vmatprep.subr.mxu0 0.0
    %707 = vmatpush1.msra.mxu0 0.0
    %708 = vmatprep.subr.mxu0 0.0
    %709 = vmatpush1.msra.mxu0 0.0
    %710 = vmatprep.subr.mxu0 0.0
    %711 = vmatpush1.msra.mxu0 0.0
    %712 = vmatprep.subr.mxu0 0.0
    %713 = vmatpush1.msra.mxu0 0.0
    %714 = vmatprep.subr.mxu0 0.0
    %715 = vmatpush1.msra.mxu0 0.0
    %716 = vmatprep.subr.mxu0 0.0
    %717 = vmatpush1.msra.mxu0 0.0
    %718 = vmatprep.subr.mxu0 0.0
    %719 = vmatpush1.msra.mxu0 0.0
    %720 = vmatprep.subr.mxu0 0.0
    %721 = vmatpush1.msra.mxu0 0.0
    %722 = vmatprep.subr.mxu0 0.0
    %723 = vmatpush1.msra.mxu0 0.0
    %724 = vmatprep.subr.mxu0 0.0
    %725 = vmatpush1.msra.mxu0 0.0
    %726 = vmatprep.subr.mxu0 0.0
    %727 = vmatpush1.msra.mxu0 0.0
    %728 = vmatprep.subr.mxu0 0.0
    %729 = vmatpush1.msra.mxu0 0.0
    %730 = vmatprep.subr.mxu0 0.0
    %731 = vmatpush1.msra.mxu0 0.0
    %732 = vmatprep.subr.mxu0 0.0
    %733 = vmatpush1.msra.mxu0 0.0
    %734 = vmatprep.mubr.f32.mxu0 0.0
    %735 = vmatmul.mubr.f32.gmra.mrb[0].mxu0 %v656
    %v736 = vpop.f32.mrb[0].mxu0
    %v737 = vadd.f32 0.0, %v736
    %v738 = vpop.f32.mrb[0].mxu0
    %v739 = vadd.f32 0.0, %v738
    %740 = vdwg.mxu0
    %741 = vmatprep.subr.mxu0 %v646
    %742 = vmatpush1.msra.mxu0 %v645
    %743 = vmatprep.subr.mxu0 %v650
    %744 = vmatpush1.msra.mxu0 %v649
    %745 = vmatprep.subr.mxu0 %v668
    %746 = vmatpush1.msra.mxu0 %v665
    %747 = vmatprep.subr.mxu0 0.0
    %748 = vmatpush1.msra.mxu0 0.0
    %749 = vmatprep.subr.mxu0 0.0
    %750 = vmatpush1.msra.mxu0 0.0
    %751 = vmatprep.subr.mxu0 0.0
    %752 = vmatpush1.msra.mxu0 0.0
    %753 = vmatprep.subr.mxu0 0.0
    %754 = vmatpush1.msra.mxu0 0.0
    %755 = vmatprep.subr.mxu0 0.0
    %756 = vmatpush1.msra.mxu0 0.0
    %757 = vmatprep.subr.mxu0 0.0
    %758 = vmatpush1.msra.mxu0 0.0
    %759 = vmatprep.subr.mxu0 0.0
    %760 = vmatpush1.msra.mxu0 0.0
    %761 = vmatprep.subr.mxu0 0.0
    %762 = vmatpush1.msra.mxu0 0.0
    %763 = vmatprep.subr.mxu0 0.0
    %764 = vmatpush1.msra.mxu0 0.0
    %765 = vmatprep.subr.mxu0 0.0
    %766 = vmatpush1.msra.mxu0 0.0
    %767 = vmatprep.subr.mxu0 0.0
    %768 = vmatpush1.msra.mxu0 0.0
    %769 = vmatprep.subr.mxu0 0.0
    %770 = vmatpush1.msra.mxu0 0.0
    %771 = vmatprep.subr.mxu0 0.0
    %772 = vmatpush1.msra.mxu0 0.0
    %773 = vmatprep.subr.mxu0 0.0
    %774 = vmatpush1.msra.mxu0 0.0
    %775 = vmatprep.subr.mxu0 0.0
    %776 = vmatpush1.msra.mxu0 0.0
    %777 = vmatprep.subr.mxu0 0.0
    %778 = vmatpush1.msra.mxu0 0.0
    %779 = vmatprep.subr.mxu0 0.0
    %780 = vmatpush1.msra.mxu0 0.0
    %781 = vmatprep.subr.mxu0 0.0
    %782 = vmatpush1.msra.mxu0 0.0
    %783 = vmatprep.subr.mxu0 0.0
    %784 = vmatpush1.msra.mxu0 0.0
    %785 = vmatprep.subr.mxu0 0.0
    %786 = vmatpush1.msra.mxu0 0.0
    %787 = vmatprep.subr.mxu0 0.0
    %788 = vmatpush1.msra.mxu0 0.0
    %789 = vmatprep.subr.mxu0 0.0
    %790 = vmatpush1.msra.mxu0 0.0
    %791 = vmatprep.subr.mxu0 0.0
    %792 = vmatpush1.msra.mxu0 0.0
    %793 = vmatprep.subr.mxu0 0.0
    %794 = vmatpush1.msra.mxu0 0.0
    %795 = vmatprep.subr.mxu0 0.0
    %796 = vmatpush1.msra.mxu0 0.0
    %797 = vmatprep.subr.mxu0 0.0
    %798 = vmatpush1.msra.mxu0 0.0
    %799 = vmatprep.subr.mxu0 0.0
    %800 = vmatpush1.msra.mxu0 0.0
    %801 = vmatprep.subr.mxu0 0.0
    %802 = vmatpush1.msra.mxu0 0.0
    %803 = vmatprep.subr.mxu0 0.0
    %804 = vmatpush1.msra.mxu0 0.0
    %805 = vmatprep.mubr.f32.mxu0 0.0
    %806 = vmatmul.mubr.f32.gmra.mrb[0].mxu0 %v656
    %v807 = vpop.f32.mrb[0].mxu0
    %v808 = vadd.f32 0.0, %v807
    %v809 = vpop.f32.mrb[0].mxu0
    %v810 = vadd.f32 0.0, %v809
    %811 = vdwg.mxu0
    %v812 = vadd.f32 %v639, %v737
    %v813 = vadd.f32 %v640, %v739
    %v814 = vadd.f32 %v641, %v808
    %v815 = vadd.f32 %v642, %v810
    %v816 = vld [vmem:[%s7] sm:$0xf]
    %v818 = vlaneseq
    %v819 = vshrl.u32 %v818, 7
    %v820 = vsub.s32 0, %v819
    %v821 = vrot.slane %v816, %v820
    %v822 = vlaneseq
    %v823 = vshrl.u32 %v822, 7
    %v824 = vsub.s32 1, %v823
    %v825 = vrot.slane %v816, %v824
    %v826 = vlaneseq
    %v827 = vshrl.u32 %v826, 7
    %v828 = vsub.s32 2, %v827
    %v829 = vrot.slane %v816, %v828
    %v830 = vlaneseq
    %v831 = vshrl.u32 %v830, 7
    %v832 = vsub.s32 3, %v831
    %v833 = vrot.slane %v816, %v832
    %v838 = vadd.f32 %v812, %v821
    %v839 = vadd.f32 %v813, %v825
    %v840 = vadd.f32 %v814, %v829
    %v841 = vadd.f32 %v815, %v833
    %v842 = vmul.f32 %v838, 0.5
    %v843 = vtanh.pop %v842
    %v844 = vmul.f32 %v843, 0.5
    %v845 = vadd.f32 %v844, 0.5
    %v846 = vmul.f32 %v839, 0.5
    %v847 = vtanh.pop %v846
    %v848 = vmul.f32 %v847, 0.5
    %v849 = vadd.f32 %v848, 0.5
    %v850 = vtanh.pop %v840
    %v851 = vmul.f32 %v841, 0.5
    %v852 = vtanh.pop %v851
    %v853 = vmul.f32 %v852, 0.5
    %v854 = vadd.f32 %v853, 0.5
    %v855 = vmul.f32 %v849, %v375
    %v856 = vmul.f32 %v845, %v850
    %v857 = vadd.f32 %v855, %v856
    %v858 = vtanh.pop %v857
    %v859 = vmul.f32 %v854, %v858
    %861 = vrot.lane.b32.xlu0 %v588, 20
    %v862 = vpop.permute.xlu0 %861
    %v864 = vsel %vm171, %v859, %v862
    %v865 = vld [vmem:[#allocation12] sm:$0xff]
    %v866 = vld [vmem:[#allocation12 + $0x8] sm:$0xff]
    %v867 = vld [vmem:[#allocation12 + $0x10] sm:$0xff]
    %v868 = vld [vmem:[#allocation12 + $0x18] sm:$0xff]
    %v869 = vld [vmem:[#allocation12 + $0x20] sm:$0xff]
    %v870 = vld [vmem:[#allocation12 + $0x28] sm:$0xff]
    %v871 = vld [vmem:[#allocation12 + $0x30] sm:$0xff]
    %v872 = vld [vmem:[#allocation12 + $0x38] sm:$0xff]
    %v873 = vld [vmem:[#allocation12 + $0x40] sm:$0xff]
    %v874 = vld [vmem:[#allocation12 + $0x48] sm:$0xff]
    %v875 = vld [vmem:[#allocation12 + $0x50] sm:$0xff]
    %v876 = vld [vmem:[#allocation12 + $0x58] sm:$0xff]
    %v877 = vld [vmem:[#allocation12 + $0x60] sm:$0xff]
    %v878 = vld [vmem:[#allocation12 + $0x68] sm:$0xff]
    %v879 = vld [vmem:[#allocation12 + $0x70] sm:$0xff]
    %v880 = vld [vmem:[#allocation12 + $0x78] sm:$0xff]
    %v881 = vld [vmem:[#allocation12 + $0x80] sm:$0xff]
    %v882 = vld [vmem:[#allocation12 + $0x88] sm:$0xff]
    %v883 = vld [vmem:[#allocation12 + $0x90] sm:$0xff]
    %v884 = vld [vmem:[#allocation12 + $0x98] sm:$0xff]
    %v885 = vld [vmem:[%s9] sm:$0xf]
    %v887 = vlaneseq
    %v888 = vshrl.u32 %v887, 7
    %v889 = vsub.s32 0, %v888
    %v890 = vrot.slane %v885, %v889
    %v891 = vlaneseq
    %v892 = vshrl.u32 %v891, 7
    %v893 = vsub.s32 1, %v892
    %v894 = vrot.slane %v885, %v893
    %v895 = vlaneseq
    %v896 = vshrl.u32 %v895, 7
    %v897 = vsub.s32 2, %v896
    %v898 = vrot.slane %v885, %v897
    %v899 = vlaneseq
    %v900 = vshrl.u32 %v899, 7
    %v901 = vsub.s32 3, %v900
    %v902 = vrot.slane %v885, %v901
    %v908 = vsel %vm425, %v864, 0
    %910 = vmatprep.subr.mxu0 %v866
    %911 = vmatpush1.msra.mxu0 %v865
    %912 = vmatprep.subr.mxu0 %v870
    %913 = vmatpush1.msra.mxu0 %v869
    %914 = vmatprep.subr.mxu0 %v874
    %915 = vmatpush1.msra.mxu0 %v873
    %916 = vmatprep.subr.mxu0 %v878
    %917 = vmatpush1.msra.mxu0 %v877
    %918 = vmatprep.subr.mxu0 %v882
    %919 = vmatpush1.msra.mxu0 %v881
    %920 = vmatprep.subr.mxu0 0.0
    %921 = vmatpush1.msra.mxu0 0.0
    %922 = vmatprep.subr.mxu0 0.0
    %923 = vmatpush1.msra.mxu0 0.0
    %924 = vmatprep.subr.mxu0 0.0
    %925 = vmatpush1.msra.mxu0 0.0
    %926 = vmatprep.subr.mxu0 0.0
    %927 = vmatpush1.msra.mxu0 0.0
    %928 = vmatprep.subr.mxu0 0.0
    %929 = vmatpush1.msra.mxu0 0.0
    %930 = vmatprep.subr.mxu0 0.0
    %931 = vmatpush1.msra.mxu0 0.0
    %932 = vmatprep.subr.mxu0 0.0
    %933 = vmatpush1.msra.mxu0 0.0
    %934 = vmatprep.subr.mxu0 0.0
    %935 = vmatpush1.msra.mxu0 0.0
    %936 = vmatprep.subr.mxu0 0.0
    %937 = vmatpush1.msra.mxu0 0.0
    %938 = vmatprep.subr.mxu0 0.0
    %939 = vmatpush1.msra.mxu0 0.0
    %940 = vmatprep.subr.mxu0 0.0
    %941 = vmatpush1.msra.mxu0 0.0
    %942 = vmatprep.subr.mxu0 0.0
    %943 = vmatpush1.msra.mxu0 0.0
    %944 = vmatprep.subr.mxu0 0.0
    %945 = vmatpush1.msra.mxu0 0.0
    %946 = vmatprep.subr.mxu0 0.0
    %947 = vmatpush1.msra.mxu0 0.0
    %948 = vmatprep.subr.mxu0 0.0
    %949 = vmatpush1.msra.mxu0 0.0
    %950 = vmatprep.subr.mxu0 0.0
    %951 = vmatpush1.msra.mxu0 0.0
    %952 = vmatprep.subr.mxu0 0.0
    %953 = vmatpush1.msra.mxu0 0.0
    %954 = vmatprep.subr.mxu0 0.0
    %955 = vmatpush1.msra.mxu0 0.0
    %956 = vmatprep.subr.mxu0 0.0
    %957 = vmatpush1.msra.mxu0 0.0
    %958 = vmatprep.subr.mxu0 0.0
    %959 = vmatpush1.msra.mxu0 0.0
    %960 = vmatprep.subr.mxu0 0.0
    %961 = vmatpush1.msra.mxu0 0.0
    %962 = vmatprep.subr.mxu0 0.0
    %963 = vmatpush1.msra.mxu0 0.0
    %964 = vmatprep.subr.mxu0 0.0
    %965 = vmatpush1.msra.mxu0 0.0
    %966 = vmatprep.subr.mxu0 0.0
    %967 = vmatpush1.msra.mxu0 0.0
    %968 = vmatprep.subr.mxu0 0.0
    %969 = vmatpush1.msra.mxu0 0.0
    %970 = vmatprep.subr.mxu0 0.0
    %971 = vmatpush1.msra.mxu0 0.0
    %972 = vmatprep.subr.mxu0 0.0
    %973 = vmatpush1.msra.mxu0 0.0
    %974 = vmatprep.mubr.f32.mxu0 0.0
    %975 = vmatmul.mubr.f32.gmra.mrb[0].mxu0 %v908
    %v976 = vpop.f32.mrb[0].mxu0
    %v977 = vadd.f32 %v890, %v976
    %v978 = vpop.f32.mrb[0].mxu0
    %v979 = vadd.f32 %v894, %v978
    %980 = vdwg.mxu0
    %981 = vmatprep.subr.mxu0 %v868
    %982 = vmatpush1.msra.mxu0 %v867
    %983 = vmatprep.subr.mxu0 %v872
    %984 = vmatpush1.msra.mxu0 %v871
    %985 = vmatprep.subr.mxu0 %v876
    %986 = vmatpush1.msra.mxu0 %v875
    %987 = vmatprep.subr.mxu0 %v880
    %988 = vmatpush1.msra.mxu0 %v879
    %989 = vmatprep.subr.mxu0 %v884
    %990 = vmatpush1.msra.mxu0 %v883
    %991 = vmatprep.subr.mxu0 0.0
    %992 = vmatpush1.msra.mxu0 0.0
    %993 = vmatprep.subr.mxu0 0.0
    %994 = vmatpush1.msra.mxu0 0.0
    %995 = vmatprep.subr.mxu0 0.0
    %996 = vmatpush1.msra.mxu0 0.0
    %997 = vmatprep.subr.mxu0 0.0
    %998 = vmatpush1.msra.mxu0 0.0
    %999 = vmatprep.subr.mxu0 0.0
    %1000 = vmatpush1.msra.mxu0 0.0
    %1001 = vmatprep.subr.mxu0 0.0
    %1002 = vmatpush1.msra.mxu0 0.0
    %1003 = vmatprep.subr.mxu0 0.0
    %1004 = vmatpush1.msra.mxu0 0.0
    %1005 = vmatprep.subr.mxu0 0.0
    %1006 = vmatpush1.msra.mxu0 0.0
    %1007 = vmatprep.subr.mxu0 0.0
    %1008 = vmatpush1.msra.mxu0 0.0
    %1009 = vmatprep.subr.mxu0 0.0
    %1010 = vmatpush1.msra.mxu0 0.0
    %1011 = vmatprep.subr.mxu0 0.0
    %1012 = vmatpush1.msra.mxu0 0.0
    %1013 = vmatprep.subr.mxu0 0.0
    %1014 = vmatpush1.msra.mxu0 0.0
    %1015 = vmatprep.subr.mxu0 0.0
    %1016 = vmatpush1.msra.mxu0 0.0
    %1017 = vmatprep.subr.mxu0 0.0
    %1018 = vmatpush1.msra.mxu0 0.0
    %1019 = vmatprep.subr.mxu0 0.0
    %1020 = vmatpush1.msra.mxu0 0.0
    %1021 = vmatprep.subr.mxu0 0.0
    %1022 = vmatpush1.msra.mxu0 0.0
    %1023 = vmatprep.subr.mxu0 0.0
    %1024 = vmatpush1.msra.mxu0 0.0
    %1025 = vmatprep.subr.mxu0 0.0
    %1026 = vmatpush1.msra.mxu0 0.0
    %1027 = vmatprep.subr.mxu0 0.0
    %1028 = vmatpush1.msra.mxu0 0.0
    %1029 = vmatprep.subr.mxu0 0.0
    %1030 = vmatpush1.msra.mxu0 0.0
    %1031 = vmatprep.subr.mxu0 0.0
    %1032 = vmatpush1.msra.mxu0 0.0
    %1033 = vmatprep.subr.mxu0 0.0
    %1034 = vmatpush1.msra.mxu0 0.0
    %1035 = vmatprep.subr.mxu0 0.0
    %1036 = vmatpush1.msra.mxu0 0.0
    %1037 = vmatprep.subr.mxu0 0.0
    %1038 = vmatpush1.msra.mxu0 0.0
    %1039 = vmatprep.subr.mxu0 0.0
    %1040 = vmatpush1.msra.mxu0 0.0
    %1041 = vmatprep.subr.mxu0 0.0
    %1042 = vmatpush1.msra.mxu0 0.0
    %1043 = vmatprep.subr.mxu0 0.0
    %1044 = vmatpush1.msra.mxu0 0.0
    %1045 = vmatprep.mubr.f32.mxu0 0.0
    %1046 = vmatmul.mubr.f32.gmra.mrb[0].mxu0 %v908
    %v1047 = vpop.f32.mrb[0].mxu0
    %v1048 = vadd.f32 %v898, %v1047
    %v1049 = vpop.f32.mrb[0].mxu0
    %v1050 = vadd.f32 %v902, %v1049
    %1051 = vdwg.mxu0
    %v1052 = vmul.f32 %v977, 0.5
    %v1053 = vtanh.pop %v1052
    %v1054 = vmul.f32 %v1053, 0.5
    %v1055 = vadd.f32 %v1054, 0.5
    %v1056 = vmul.f32 %v979, 0.5
    %v1057 = vtanh.pop %v1056
    %v1058 = vmul.f32 %v1057, 0.5
    %v1059 = vadd.f32 %v1058, 0.5
    %v1060 = vtanh.pop %v1048
    %v1061 = vmul.f32 %v1050, 0.5
    %v1062 = vtanh.pop %v1061
    %v1063 = vmul.f32 %v1062, 0.5
    %v1064 = vadd.f32 %v1063, 0.5
    %v1065 = vmul.f32 %v1059, %v586
    %v1066 = vmul.f32 %v1055, %v1060
    %v1067 = vadd.f32 %v1065, %v1066
    %v1068 = vtanh.pop %v1067
    %v1069 = vmul.f32 %v1064, %v1068
    %v1070 = vld [vmem:[%s10] sm:$0x1]
    %v1072 = vlaneseq
    %v1073 = vshrl.u32 %v1072, 7
    %v1074 = vsub.s32 0, %v1073
    %v1075 = vrot.slane %v1070, %v1074
    %v1077 = vmul.f32 %v1069, %v1075
    %v1078 = vsel %vm171, %v1077, 0.0
    %1079 = vadd.xlane.f32.xlu0 %v1078
    %v1080 = vpop.xlane.xlu0 %1079
    %v1081 = vld [vmem:[#allocation2] sm:$0x1]
    %v1083 = vlaneseq
    %v1084 = vshrl.u32 %v1083, 7
    %v1085 = vsub.s32 0, %v1084
    %v1086 = vrot.slane %v1081, %v1085
    %v1088 = vadd.f32 %v1080, %v1086
    %s1089 = scalar_lea.vmem %s12, 8
    %1090 = vst.msk [vmem:[%s1089] sm:$0xff] %vm608, %v1088
    %s1091 = scalar_lea.vmem %s0, 16
    %v1092 = vld [vmem:[%s1091] sm:$0xff]
    %v1093 = vld [vmem:[#allocation11] sm:$0xf]
    %1095 = vset.pattern.permute.xlu0 0
    %1096 = vperm.xlu0 %1095, %v1092
    %v1097 = vpop.permute.xlu0 %1096
    %v1100 = vlaneseq
    %v1101 = vshrl.u32 %v1100, 7
    %v1102 = vsub.s32 0, %v1101
    %v1103 = vrot.slane %v1093, %v1102
    %v1104 = vlaneseq
    %v1105 = vshrl.u32 %v1104, 7
    %v1106 = vsub.s32 1, %v1105
    %v1107 = vrot.slane %v1093, %v1106
    %v1108 = vlaneseq
    %v1109 = vshrl.u32 %v1108, 7
    %v1110 = vsub.s32 2, %v1109
    %v1111 = vrot.slane %v1093, %v1110
    %v1112 = vlaneseq
    %v1113 = vshrl.u32 %v1112, 7
    %v1114 = vsub.s32 3, %v1113
    %v1115 = vrot.slane %v1093, %v1114
    %v1120 = vmul.f32 %v1097, %v1103
    %v1121 = vmul.f32 %v1097, %v1107
    %v1122 = vmul.f32 %v1097, %v1111
    %v1123 = vmul.f32 %v1097, %v1115
    %v1124 = vld [vmem:[%s6] sm:$0xff]
    %v1125 = vld [vmem:[%s6 + $0x8] sm:$0xff]
    %v1126 = vld [vmem:[%s6 + $0x10] sm:$0xff]
    %v1127 = vld [vmem:[%s6 + $0x18] sm:$0xff]
    %v1128 = vld [vmem:[%s6 + $0x20] sm:$0xff]
    %v1129 = vld [vmem:[%s6 + $0x28] sm:$0xff]
    %v1130 = vld [vmem:[%s6 + $0x30] sm:$0xff]
    %v1131 = vld [vmem:[%s6 + $0x38] sm:$0xff]
    %v1132 = vld [vmem:[%s6 + $0x40] sm:$0xf]
    %v1133 = vld [vmem:[%s6 + $0x48] sm:$0xf]
    %v1134 = vld [vmem:[%s6 + $0x50] sm:$0xf]
    %v1135 = vld [vmem:[%s6 + $0x58] sm:$0xf]
    %v1137 = vsel %vm171, %v859, 0
    %v1140 = vsel %vm175, %v1132, 0
    %v1143 = vsel %vm175, %v1133, 0
    %v1146 = vsel %vm175, %v1134, 0
    %v1149 = vsel %vm175, %v1135, 0
    %1151 = vmatprep.subr.mxu0 %v1125
    %1152 = vmatpush1.msra.mxu0 %v1124
    %1153 = vmatprep.subr.mxu0 %v1129
    %1154 = vmatpush1.msra.mxu0 %v1128
    %1155 = vmatprep.subr.mxu0 %v1143
    %1156 = vmatpush1.msra.mxu0 %v1140
    %1157 = vmatprep.subr.mxu0 0.0
    %1158 = vmatpush1.msra.mxu0 0.0
    %1159 = vmatprep.subr.mxu0 0.0
    %1160 = vmatpush1.msra.mxu0 0.0
    %1161 = vmatprep.subr.mxu0 0.0
    %1162 = vmatpush1.msra.mxu0 0.0
    %1163 = vmatprep.subr.mxu0 0.0
    %1164 = vmatpush1.msra.mxu0 0.0
    %1165 = vmatprep.subr.mxu0 0.0
    %1166 = vmatpush1.msra.mxu0 0.0
    %1167 = vmatprep.subr.mxu0 0.0
    %1168 = vmatpush1.msra.mxu0 0.0
    %1169 = vmatprep.subr.mxu0 0.0
    %1170 = vmatpush1.msra.mxu0 0.0
    %1171 = vmatprep.subr.mxu0 0.0
    %1172 = vmatpush1.msra.mxu0 0.0
    %1173 = vmatprep.subr.mxu0 0.0
    %1174 = vmatpush1.msra.mxu0 0.0
    %1175 = vmatprep.subr.mxu0 0.0
    %1176 = vmatpush1.msra.mxu0 0.0
    %1177 = vmatprep.subr.mxu0 0.0
    %1178 = vmatpush1.msra.mxu0 0.0
    %1179 = vmatprep.subr.mxu0 0.0
    %1180 = vmatpush1.msra.mxu0 0.0
    %1181 = vmatprep.subr.mxu0 0.0
    %1182 = vmatpush1.msra.mxu0 0.0
    %1183 = vmatprep.subr.mxu0 0.0
    %1184 = vmatpush1.msra.mxu0 0.0
    %1185 = vmatprep.subr.mxu0 0.0
    %1186 = vmatpush1.msra.mxu0 0.0
    %1187 = vmatprep.subr.mxu0 0.0
    %1188 = vmatpush1.msra.mxu0 0.0
    %1189 = vmatprep.subr.mxu0 0.0
    %1190 = vmatpush1.msra.mxu0 0.0
    %1191 = vmatprep.subr.mxu0 0.0
    %1192 = vmatpush1.msra.mxu0 0.0
    %1193 = vmatprep.subr.mxu0 0.0
    %1194 = vmatpush1.msra.mxu0 0.0
    %1195 = vmatprep.subr.mxu0 0.0
    %1196 = vmatpush1.msra.mxu0 0.0
    %1197 = vmatprep.subr.mxu0 0.0
    %1198 = vmatpush1.msra.mxu0 0.0
    %1199 = vmatprep.subr.mxu0 0.0
    %1200 = vmatpush1.msra.mxu0 0.0
    %1201 = vmatprep.subr.mxu0 0.0
    %1202 = vmatpush1.msra.mxu0 0.0
    %1203 = vmatprep.subr.mxu0 0.0
    %1204 = vmatpush1.msra.mxu0 0.0
    %1205 = vmatprep.subr.mxu0 0.0
    %1206 = vmatpush1.msra.mxu0 0.0
    %1207 = vmatprep.subr.mxu0 0.0
    %1208 = vmatpush1.msra.mxu0 0.0
    %1209 = vmatprep.subr.mxu0 0.0
    %1210 = vmatpush1.msra.mxu0 0.0
    %1211 = vmatprep.subr.mxu0 0.0
    %1212 = vmatpush1.msra.mxu0 0.0
    %1213 = vmatprep.subr.mxu0 0.0
    %1214 = vmatpush1.msra.mxu0 0.0
    %1215 = vmatprep.mubr.f32.mxu0 0.0
    %1216 = vmatmul.mubr.f32.gmra.mrb[0].mxu0 %v1137
    %v1217 = vpop.f32.mrb[0].mxu0
    %v1218 = vadd.f32 0.0, %v1217
    %v1219 = vpop.f32.mrb[0].mxu0
    %v1220 = vadd.f32 0.0, %v1219
    %1221 = vdwg.mxu0
    %1222 = vmatprep.subr.mxu0 %v1127
    %1223 = vmatpush1.msra.mxu0 %v1126
    %1224 = vmatprep.subr.mxu0 %v1131
    %1225 = vmatpush1.msra.mxu0 %v1130
    %1226 = vmatprep.subr.mxu0 %v1149
    %1227 = vmatpush1.msra.mxu0 %v1146
    %1228 = vmatprep.subr.mxu0 0.0
    %1229 = vmatpush1.msra.mxu0 0.0
    %1230 = vmatprep.subr.mxu0 0.0
    %1231 = vmatpush1.msra.mxu0 0.0
    %1232 = vmatprep.subr.mxu0 0.0
    %1233 = vmatpush1.msra.mxu0 0.0
    %1234 = vmatprep.subr.mxu0 0.0
    %1235 = vmatpush1.msra.mxu0 0.0
    %1236 = vmatprep.subr.mxu0 0.0
    %1237 = vmatpush1.msra.mxu0 0.0
    %1238 = vmatprep.subr.mxu0 0.0
    %1239 = vmatpush1.msra.mxu0 0.0
    %1240 = vmatprep.subr.mxu0 0.0
    %1241 = vmatpush1.msra.mxu0 0.0
    %1242 = vmatprep.subr.mxu0 0.0
    %1243 = vmatpush1.msra.mxu0 0.0
    %1244 = vmatprep.subr.mxu0 0.0
    %1245 = vmatpush1.msra.mxu0 0.0
    %1246 = vmatprep.subr.mxu0 0.0
    %1247 = vmatpush1.msra.mxu0 0.0
    %1248 = vmatprep.subr.mxu0 0.0
    %1249 = vmatpush1.msra.mxu0 0.0
    %1250 = vmatprep.subr.mxu0 0.0
    %1251 = vmatpush1.msra.mxu0 0.0
    %1252 = vmatprep.subr.mxu0 0.0
    %1253 = vmatpush1.msra.mxu0 0.0
    %1254 = vmatprep.subr.mxu0 0.0
    %1255 = vmatpush1.msra.mxu0 0.0
    %1256 = vmatprep.subr.mxu0 0.0
    %1257 = vmatpush1.msra.mxu0 0.0
    %1258 = vmatprep.subr.mxu0 0.0
    %1259 = vmatpush1.msra.mxu0 0.0
    %1260 = vmatprep.subr.mxu0 0.0
    %1261 = vmatpush1.msra.mxu0 0.0
    %1262 = vmatprep.subr.mxu0 0.0
    %1263 = vmatpush1.msra.mxu0 0.0
    %1264 = vmatprep.subr.mxu0 0.0
    %1265 = vmatpush1.msra.mxu0 0.0
    %1266 = vmatprep.subr.mxu0 0.0
    %1267 = vmatpush1.msra.mxu0 0.0
    %1268 = vmatprep.subr.mxu0 0.0
    %1269 = vmatpush1.msra.mxu0 0.0
    %1270 = vmatprep.subr.mxu0 0.0
    %1271 = vmatpush1.msra.mxu0 0.0
    %1272 = vmatprep.subr.mxu0 0.0
    %1273 = vmatpush1.msra.mxu0 0.0
    %1274 = vmatprep.subr.mxu0 0.0
    %1275 = vmatpush1.msra.mxu0 0.0
    %1276 = vmatprep.subr.mxu0 0.0
    %1277 = vmatpush1.msra.mxu0 0.0
    %1278 = vmatprep.subr.mxu0 0.0
    %1279 = vmatpush1.msra.mxu0 0.0
    %1280 = vmatprep.subr.mxu0 0.0
    %1281 = vmatpush1.msra.mxu0 0.0
    %1282 = vmatprep.subr.mxu0 0.0
    %1283 = vmatpush1.msra.mxu0 0.0
    %1284 = vmatprep.subr.mxu0 0.0
    %1285 = vmatpush1.msra.mxu0 0.0
    %1286 = vmatprep.mubr.f32.mxu0 0.0
    %1287 = vmatmul.mubr.f32.gmra.mrb[0].mxu0 %v1137
    %v1288 = vpop.f32.mrb[0].mxu0
    %v1289 = vadd.f32 0.0, %v1288
    %v1290 = vpop.f32.mrb[0].mxu0
    %v1291 = vadd.f32 0.0, %v1290
    %1292 = vdwg.mxu0
    %v1293 = vadd.f32 %v1120, %v1218
    %v1294 = vadd.f32 %v1121, %v1220
    %v1295 = vadd.f32 %v1122, %v1289
    %v1296 = vadd.f32 %v1123, %v1291
    %v1297 = vld [vmem:[%s7] sm:$0xf]
    %v1299 = vlaneseq
    %v1300 = vshrl.u32 %v1299, 7
    %v1301 = vsub.s32 0, %v1300
    %v1302 = vrot.slane %v1297, %v1301
    %v1303 = vlaneseq
    %v1304 = vshrl.u32 %v1303, 7
    %v1305 = vsub.s32 1, %v1304
    %v1306 = vrot.slane %v1297, %v1305
    %v1307 = vlaneseq
    %v1308 = vshrl.u32 %v1307, 7
    %v1309 = vsub.s32 2, %v1308
    %v1310 = vrot.slane %v1297, %v1309
    %v1311 = vlaneseq
    %v1312 = vshrl.u32 %v1311, 7
    %v1313 = vsub.s32 3, %v1312
    %v1314 = vrot.slane %v1297, %v1313
    %v1319 = vadd.f32 %v1293, %v1302
    %v1320 = vadd.f32 %v1294, %v1306
    %v1321 = vadd.f32 %v1295, %v1310
    %v1322 = vadd.f32 %v1296, %v1314
    %v1323 = vmul.f32 %v1319, 0.5
    %v1324 = vtanh.pop %v1323
    %v1325 = vmul.f32 %v1324, 0.5
    %v1326 = vadd.f32 %v1325, 0.5
    %v1327 = vmul.f32 %v1320, 0.5
    %v1328 = vtanh.pop %v1327
    %v1329 = vmul.f32 %v1328, 0.5
    %v1330 = vadd.f32 %v1329, 0.5
    %v1331 = vtanh.pop %v1321
    %v1332 = vmul.f32 %v1322, 0.5
    %v1333 = vtanh.pop %v1332
    %v1334 = vmul.f32 %v1333, 0.5
    %v1335 = vadd.f32 %v1334, 0.5
    %v1336 = vmul.f32 %v1330, %v857
    %v1337 = vmul.f32 %v1326, %v1331
    %v1338 = vadd.f32 %v1336, %v1337
    %v1339 = vtanh.pop %v1338
    %v1340 = vmul.f32 %v1335, %v1339
    %1342 = vrot.lane.b32.xlu0 %v1069, 20
    %v1343 = vpop.permute.xlu0 %1342
    %v1345 = vsel %vm171, %v1340, %v1343
    %v1346 = vld [vmem:[#allocation12] sm:$0xff]
    %v1347 = vld [vmem:[#allocation12 + $0x8] sm:$0xff]
    %v1348 = vld [vmem:[#allocation12 + $0x10] sm:$0xff]
    %v1349 = vld [vmem:[#allocation12 + $0x18] sm:$0xff]
    %v1350 = vld [vmem:[#allocation12 + $0x20] sm:$0xff]
    %v1351 = vld [vmem:[#allocation12 + $0x28] sm:$0xff]
    %v1352 = vld [vmem:[#allocation12 + $0x30] sm:$0xff]
    %v1353 = vld [vmem:[#allocation12 + $0x38] sm:$0xff]
    %v1354 = vld [vmem:[#allocation12 + $0x40] sm:$0xff]
    %v1355 = vld [vmem:[#allocation12 + $0x48] sm:$0xff]
    %v1356 = vld [vmem:[#allocation12 + $0x50] sm:$0xff]
    %v1357 = vld [vmem:[#allocation12 + $0x58] sm:$0xff]
    %v1358 = vld [vmem:[#allocation12 + $0x60] sm:$0xff]
    %v1359 = vld [vmem:[#allocation12 + $0x68] sm:$0xff]
    %v1360 = vld [vmem:[#allocation12 + $0x70] sm:$0xff]
    %v1361 = vld [vmem:[#allocation12 + $0x78] sm:$0xff]
    %v1362 = vld [vmem:[#allocation12 + $0x80] sm:$0xff]
    %v1363 = vld [vmem:[#allocation12 + $0x88] sm:$0xff]
    %v1364 = vld [vmem:[#allocation12 + $0x90] sm:$0xff]
    %v1365 = vld [vmem:[#allocation12 + $0x98] sm:$0xff]
    %v1366 = vld [vmem:[%s9] sm:$0xf]
    %v1368 = vlaneseq
    %v1369 = vshrl.u32 %v1368, 7
    %v1370 = vsub.s32 0, %v1369
    %v1371 = vrot.slane %v1366, %v1370
    %v1372 = vlaneseq
    %v1373 = vshrl.u32 %v1372, 7
    %v1374 = vsub.s32 1, %v1373
    %v1375 = vrot.slane %v1366, %v1374
    %v1376 = vlaneseq
    %v1377 = vshrl.u32 %v1376, 7
    %v1378 = vsub.s32 2, %v1377
    %v1379 = vrot.slane %v1366, %v1378
    %v1380 = vlaneseq
    %v1381 = vshrl.u32 %v1380, 7
    %v1382 = vsub.s32 3, %v1381
    %v1383 = vrot.slane %v1366, %v1382
    %v1389 = vsel %vm425, %v1345, 0
    %1391 = vmatprep.subr.mxu0 %v1347
    %1392 = vmatpush1.msra.mxu0 %v1346
    %1393 = vmatprep.subr.mxu0 %v1351
    %1394 = vmatpush1.msra.mxu0 %v1350
    %1395 = vmatprep.subr.mxu0 %v1355
    %1396 = vmatpush1.msra.mxu0 %v1354
    %1397 = vmatprep.subr.mxu0 %v1359
    %1398 = vmatpush1.msra.mxu0 %v1358
    %1399 = vmatprep.subr.mxu0 %v1363
    %1400 = vmatpush1.msra.mxu0 %v1362
    %1401 = vmatprep.subr.mxu0 0.0
    %1402 = vmatpush1.msra.mxu0 0.0
    %1403 = vmatprep.subr.mxu0 0.0
    %1404 = vmatpush1.msra.mxu0 0.0
    %1405 = vmatprep.subr.mxu0 0.0
    %1406 = vmatpush1.msra.mxu0 0.0
    %1407 = vmatprep.subr.mxu0 0.0
    %1408 = vmatpush1.msra.mxu0 0.0
    %1409 = vmatprep.subr.mxu0 0.0
    %1410 = vmatpush1.msra.mxu0 0.0
    %1411 = vmatprep.subr.mxu0 0.0
    %1412 = vmatpush1.msra.mxu0 0.0
    %1413 = vmatprep.subr.mxu0 0.0
    %1414 = vmatpush1.msra.mxu0 0.0
    %1415 = vmatprep.subr.mxu0 0.0
    %1416 = vmatpush1.msra.mxu0 0.0
    %1417 = vmatprep.subr.mxu0 0.0
    %1418 = vmatpush1.msra.mxu0 0.0
    %1419 = vmatprep.subr.mxu0 0.0
    %1420 = vmatpush1.msra.mxu0 0.0
    %1421 = vmatprep.subr.mxu0 0.0
    %1422 = vmatpush1.msra.mxu0 0.0
    %1423 = vmatprep.subr.mxu0 0.0
    %1424 = vmatpush1.msra.mxu0 0.0
    %1425 = vmatprep.subr.mxu0 0.0
    %1426 = vmatpush1.msra.mxu0 0.0
    %1427 = vmatprep.subr.mxu0 0.0
    %1428 = vmatpush1.msra.mxu0 0.0
    %1429 = vmatprep.subr.mxu0 0.0
    %1430 = vmatpush1.msra.mxu0 0.0
    %1431 = vmatprep.subr.mxu0 0.0
    %1432 = vmatpush1.msra.mxu0 0.0
    %1433 = vmatprep.subr.mxu0 0.0
    %1434 = vmatpush1.msra.mxu0 0.0
    %1435 = vmatprep.subr.mxu0 0.0
    %1436 = vmatpush1.msra.mxu0 0.0
    %1437 = vmatprep.subr.mxu0 0.0
    %1438 = vmatpush1.msra.mxu0 0.0
    %1439 = vmatprep.subr.mxu0 0.0
    %1440 = vmatpush1.msra.mxu0 0.0
    %1441 = vmatprep.subr.mxu0 0.0
    %1442 = vmatpush1.msra.mxu0 0.0
    %1443 = vmatprep.subr.mxu0 0.0
    %1444 = vmatpush1.msra.mxu0 0.0
    %1445 = vmatprep.subr.mxu0 0.0
    %1446 = vmatpush1.msra.mxu0 0.0
    %1447 = vmatprep.subr.mxu0 0.0
    %1448 = vmatpush1.msra.mxu0 0.0
    %1449 = vmatprep.subr.mxu0 0.0
    %1450 = vmatpush1.msra.mxu0 0.0
    %1451 = vmatprep.subr.mxu0 0.0
    %1452 = vmatpush1.msra.mxu0 0.0
    %1453 = vmatprep.subr.mxu0 0.0
    %1454 = vmatpush1.msra.mxu0 0.0
    %1455 = vmatprep.mubr.f32.mxu0 0.0
    %1456 = vmatmul.mubr.f32.gmra.mrb[0].mxu0 %v1389
    %v1457 = vpop.f32.mrb[0].mxu0
    %v1458 = vadd.f32 %v1371, %v1457
    %v1459 = vpop.f32.mrb[0].mxu0
    %v1460 = vadd.f32 %v1375, %v1459
    %1461 = vdwg.mxu0
    %1462 = vmatprep.subr.mxu0 %v1349
    %1463 = vmatpush1.msra.mxu0 %v1348
    %1464 = vmatprep.subr.mxu0 %v1353
    %1465 = vmatpush1.msra.mxu0 %v1352
    %1466 = vmatprep.subr.mxu0 %v1357
    %1467 = vmatpush1.msra.mxu0 %v1356
    %1468 = vmatprep.subr.mxu0 %v1361
    %1469 = vmatpush1.msra.mxu0 %v1360
    %1470 = vmatprep.subr.mxu0 %v1365
    %1471 = vmatpush1.msra.mxu0 %v1364
    %1472 = vmatprep.subr.mxu0 0.0
    %1473 = vmatpush1.msra.mxu0 0.0
    %1474 = vmatprep.subr.mxu0 0.0
    %1475 = vmatpush1.msra.mxu0 0.0
    %1476 = vmatprep.subr.mxu0 0.0
    %1477 = vmatpush1.msra.mxu0 0.0
    %1478 = vmatprep.subr.mxu0 0.0
    %1479 = vmatpush1.msra.mxu0 0.0
    %1480 = vmatprep.subr.mxu0 0.0
    %1481 = vmatpush1.msra.mxu0 0.0
    %1482 = vmatprep.subr.mxu0 0.0
    %1483 = vmatpush1.msra.mxu0 0.0
    %1484 = vmatprep.subr.mxu0 0.0
    %1485 = vmatpush1.msra.mxu0 0.0
    %1486 = vmatprep.subr.mxu0 0.0
    %1487 = vmatpush1.msra.mxu0 0.0
    %1488 = vmatprep.subr.mxu0 0.0
    %1489 = vmatpush1.msra.mxu0 0.0
    %1490 = vmatprep.subr.mxu0 0.0
    %1491 = vmatpush1.msra.mxu0 0.0
    %1492 = vmatprep.subr.mxu0 0.0
    %1493 = vmatpush1.msra.mxu0 0.0
    %1494 = vmatprep.subr.mxu0 0.0
    %1495 = vmatpush1.msra.mxu0 0.0
    %1496 = vmatprep.subr.mxu0 0.0
    %1497 = vmatpush1.msra.mxu0 0.0
    %1498 = vmatprep.subr.mxu0 0.0
    %1499 = vmatpush1.msra.mxu0 0.0
    %1500 = vmatprep.subr.mxu0 0.0
    %1501 = vmatpush1.msra.mxu0 0.0
    %1502 = vmatprep.subr.mxu0 0.0
    %1503 = vmatpush1.msra.mxu0 0.0
    %1504 = vmatprep.subr.mxu0 0.0
    %1505 = vmatpush1.msra.mxu0 0.0
    %1506 = vmatprep.subr.mxu0 0.0
    %1507 = vmatpush1.msra.mxu0 0.0
    %1508 = vmatprep.subr.mxu0 0.0
    %1509 = vmatpush1.msra.mxu0 0.0
    %1510 = vmatprep.subr.mxu0 0.0
    %1511 = vmatpush1.msra.mxu0 0.0
    %1512 = vmatprep.subr.mxu0 0.0
    %1513 = vmatpush1.msra.mxu0 0.0
    %1514 = vmatprep.subr.mxu0 0.0
    %1515 = vmatpush1.msra.mxu0 0.0
    %1516 = vmatprep.subr.mxu0 0.0
    %1517 = vmatpush1.msra.mxu0 0.0
    %1518 = vmatprep.subr.mxu0 0.0
    %1519 = vmatpush1.msra.mxu0 0.0
    %1520 = vmatprep.subr.mxu0 0.0
    %1521 = vmatpush1.msra.mxu0 0.0
    %1522 = vmatprep.subr.mxu0 0.0
    %1523 = vmatpush1.msra.mxu0 0.0
    %1524 = vmatprep.subr.mxu0 0.0
    %1525 = vmatpush1.msra.mxu0 0.0
    %1526 = vmatprep.mubr.f32.mxu0 0.0
    %1527 = vmatmul.mubr.f32.gmra.mrb[0].mxu0 %v1389
    %v1528 = vpop.f32.mrb[0].mxu0
    %v1529 = vadd.f32 %v1379, %v1528
    %v1530 = vpop.f32.mrb[0].mxu0
    %v1531 = vadd.f32 %v1383, %v1530
    %1532 = vdwg.mxu0
    %v1533 = vmul.f32 %v1458, 0.5
    %v1534 = vtanh.pop %v1533
    %v1535 = vmul.f32 %v1534, 0.5
    %v1536 = vadd.f32 %v1535, 0.5
    %v1537 = vmul.f32 %v1460, 0.5
    %v1538 = vtanh.pop %v1537
    %v1539 = vmul.f32 %v1538, 0.5
    %v1540 = vadd.f32 %v1539, 0.5
    %v1541 = vtanh.pop %v1529
    %v1542 = vmul.f32 %v1531, 0.5
    %v1543 = vtanh.pop %v1542
    %v1544 = vmul.f32 %v1543, 0.5
    %v1545 = vadd.f32 %v1544, 0.5
    %v1546 = vmul.f32 %v1540, %v1067
    %v1547 = vmul.f32 %v1536, %v1541
    %v1548 = vadd.f32 %v1546, %v1547
    %v1549 = vtanh.pop %v1548
    %v1550 = vmul.f32 %v1545, %v1549
    %v1551 = vld [vmem:[%s10] sm:$0x1]
    %v1553 = vlaneseq
    %v1554 = vshrl.u32 %v1553, 7
    %v1555 = vsub.s32 0, %v1554
    %v1556 = vrot.slane %v1551, %v1555
    %v1558 = vmul.f32 %v1550, %v1556
    %v1559 = vsel %vm171, %v1558, 0.0
    %1560 = vadd.xlane.f32.xlu0 %v1559
    %v1561 = vpop.xlane.xlu0 %1560
    %v1562 = vld [vmem:[#allocation2] sm:$0x1]
    %v1564 = vlaneseq
    %v1565 = vshrl.u32 %v1564, 7
    %v1566 = vsub.s32 0, %v1565
    %v1567 = vrot.slane %v1562, %v1566
    %v1569 = vadd.f32 %v1561, %v1567
    %s1570 = scalar_lea.vmem %s12, 16
    %1571 = vst.msk [vmem:[%s1570] sm:$0xff] %vm608, %v1569
    %s1572 = scalar_lea.vmem %s0, 24
    %v1573 = vld [vmem:[%s1572] sm:$0xff]
    %v1574 = vld [vmem:[#allocation11] sm:$0xf]
    %1576 = vset.pattern.permute.xlu0 0
    %1577 = vperm.xlu0 %1576, %v1573
    %v1578 = vpop.permute.xlu0 %1577
    %v1581 = vlaneseq
    %v1582 = vshrl.u32 %v1581, 7
    %v1583 = vsub.s32 0, %v1582
    %v1584 = vrot.slane %v1574, %v1583
    %v1585 = vlaneseq
    %v1586 = vshrl.u32 %v1585, 7
    %v1587 = vsub.s32 1, %v1586
    %v1588 = vrot.slane %v1574, %v1587
    %v1589 = vlaneseq
    %v1590 = vshrl.u32 %v1589, 7
    %v1591 = vsub.s32 2, %v1590
    %v1592 = vrot.slane %v1574, %v1591
    %v1593 = vlaneseq
    %v1594 = vshrl.u32 %v1593, 7
    %v1595 = vsub.s32 3, %v1594
    %v1596 = vrot.slane %v1574, %v1595
    %v1601 = vmul.f32 %v1578, %v1584
    %v1602 = vmul.f32 %v1578, %v1588
    %v1603 = vmul.f32 %v1578, %v1592
    %v1604 = vmul.f32 %v1578, %v1596
    %v1605 = vld [vmem:[%s6] sm:$0xff]
    %v1606 = vld [vmem:[%s6 + $0x8] sm:$0xff]
    %v1607 = vld [vmem:[%s6 + $0x10] sm:$0xff]
    %v1608 = vld [vmem:[%s6 + $0x18] sm:$0xff]
    %v1609 = vld [vmem:[%s6 + $0x20] sm:$0xff]
    %v1610 = vld [vmem:[%s6 + $0x28] sm:$0xff]
    %v1611 = vld [vmem:[%s6 + $0x30] sm:$0xff]
    %v1612 = vld [vmem:[%s6 + $0x38] sm:$0xff]
    %v1613 = vld [vmem:[%s6 + $0x40] sm:$0xf]
    %v1614 = vld [vmem:[%s6 + $0x48] sm:$0xf]
    %v1615 = vld [vmem:[%s6 + $0x50] sm:$0xf]
    %v1616 = vld [vmem:[%s6 + $0x58] sm:$0xf]
    %v1618 = vsel %vm171, %v1340, 0
    %v1621 = vsel %vm175, %v1613, 0
    %v1624 = vsel %vm175, %v1614, 0
    %v1627 = vsel %vm175, %v1615, 0
    %v1630 = vsel %vm175, %v1616, 0
    %1632 = vmatprep.subr.mxu0 %v1606
    %1633 = vmatpush1.msra.mxu0 %v1605
    %1634 = vmatprep.subr.mxu0 %v1610
    %1635 = vmatpush1.msra.mxu0 %v1609
    %1636 = vmatprep.subr.mxu0 %v1624
    %1637 = vmatpush1.msra.mxu0 %v1621
    %1638 = vmatprep.subr.mxu0 0.0
    %1639 = vmatpush1.msra.mxu0 0.0
    %1640 = vmatprep.subr.mxu0 0.0
    %1641 = vmatpush1.msra.mxu0 0.0
    %1642 = vmatprep.subr.mxu0 0.0
    %1643 = vmatpush1.msra.mxu0 0.0
    %1644 = vmatprep.subr.mxu0 0.0
    %1645 = vmatpush1.msra.mxu0 0.0
    %1646 = vmatprep.subr.mxu0 0.0
    %1647 = vmatpush1.msra.mxu0 0.0
    %1648 = vmatprep.subr.mxu0 0.0
    %1649 = vmatpush1.msra.mxu0 0.0
    %1650 = vmatprep.subr.mxu0 0.0
    %1651 = vmatpush1.msra.mxu0 0.0
    %1652 = vmatprep.subr.mxu0 0.0
    %1653 = vmatpush1.msra.mxu0 0.0
    %1654 = vmatprep.subr.mxu0 0.0
    %1655 = vmatpush1.msra.mxu0 0.0
    %1656 = vmatprep.subr.mxu0 0.0
    %1657 = vmatpush1.msra.mxu0 0.0
    %1658 = vmatprep.subr.mxu0 0.0
    %1659 = vmatpush1.msra.mxu0 0.0
    %1660 = vmatprep.subr.mxu0 0.0
    %1661 = vmatpush1.msra.mxu0 0.0
    %1662 = vmatprep.subr.mxu0 0.0
    %1663 = vmatpush1.msra.mxu0 0.0
    %1664 = vmatprep.subr.mxu0 0.0
    %1665 = vmatpush1.msra.mxu0 0.0
    %1666 = vmatprep.subr.mxu0 0.0
    %1667 = vmatpush1.msra.mxu0 0.0
    %1668 = vmatprep.subr.mxu0 0.0
    %1669 = vmatpush1.msra.mxu0 0.0
    %1670 = vmatprep.subr.mxu0 0.0
    %1671 = vmatpush1.msra.mxu0 0.0
    %1672 = vmatprep.subr.mxu0 0.0
    %1673 = vmatpush1.msra.mxu0 0.0
    %1674 = vmatprep.subr.mxu0 0.0
    %1675 = vmatpush1.msra.mxu0 0.0
    %1676 = vmatprep.subr.mxu0 0.0
    %1677 = vmatpush1.msra.mxu0 0.0
    %1678 = vmatprep.subr.mxu0 0.0
    %1679 = vmatpush1.msra.mxu0 0.0
    %1680 = vmatprep.subr.mxu0 0.0
    %1681 = vmatpush1.msra.mxu0 0.0
    %1682 = vmatprep.subr.mxu0 0.0
    %1683 = vmatpush1.msra.mxu0 0.0
    %1684 = vmatprep.subr.mxu0 0.0
    %1685 = vmatpush1.msra.mxu0 0.0
    %1686 = vmatprep.subr.mxu0 0.0
    %1687 = vmatpush1.msra.mxu0 0.0
    %1688 = vmatprep.subr.mxu0 0.0
    %1689 = vmatpush1.msra.mxu0 0.0
    %1690 = vmatprep.subr.mxu0 0.0
    %1691 = vmatpush1.msra.mxu0 0.0
    %1692 = vmatprep.subr.mxu0 0.0
    %1693 = vmatpush1.msra.mxu0 0.0
    %1694 = vmatprep.subr.mxu0 0.0
    %1695 = vmatpush1.msra.mxu0 0.0
    %1696 = vmatprep.mubr.f32.mxu0 0.0
    %1697 = vmatmul.mubr.f32.gmra.mrb[0].mxu0 %v1618
    %v1698 = vpop.f32.mrb[0].mxu0
    %v1699 = vadd.f32 0.0, %v1698
    %v1700 = vpop.f32.mrb[0].mxu0
    %v1701 = vadd.f32 0.0, %v1700
    %1702 = vdwg.mxu0
    %1703 = vmatprep.subr.mxu0 %v1608
    %1704 = vmatpush1.msra.mxu0 %v1607
    %1705 = vmatprep.subr.mxu0 %v1612
    %1706 = vmatpush1.msra.mxu0 %v1611
    %1707 = vmatprep.subr.mxu0 %v1630
    %1708 = vmatpush1.msra.mxu0 %v1627
    %1709 = vmatprep.subr.mxu0 0.0
    %1710 = vmatpush1.msra.mxu0 0.0
    %1711 = vmatprep.subr.mxu0 0.0
    %1712 = vmatpush1.msra.mxu0 0.0
    %1713 = vmatprep.subr.mxu0 0.0
    %1714 = vmatpush1.msra.mxu0 0.0
    %1715 = vmatprep.subr.mxu0 0.0
    %1716 = vmatpush1.msra.mxu0 0.0
    %1717 = vmatprep.subr.mxu0 0.0
    %1718 = vmatpush1.msra.mxu0 0.0
    %1719 = vmatprep.subr.mxu0 0.0
    %1720 = vmatpush1.msra.mxu0 0.0
    %1721 = vmatprep.subr.mxu0 0.0
    %1722 = vmatpush1.msra.mxu0 0.0
    %1723 = vmatprep.subr.mxu0 0.0
    %1724 = vmatpush1.msra.mxu0 0.0
    %1725 = vmatprep.subr.mxu0 0.0
    %1726 = vmatpush1.msra.mxu0 0.0
    %1727 = vmatprep.subr.mxu0 0.0
    %1728 = vmatpush1.msra.mxu0 0.0
    %1729 = vmatprep.subr.mxu0 0.0
    %1730 = vmatpush1.msra.mxu0 0.0
    %1731 = vmatprep.subr.mxu0 0.0
    %1732 = vmatpush1.msra.mxu0 0.0
    %1733 = vmatprep.subr.mxu0 0.0
    %1734 = vmatpush1.msra.mxu0 0.0
    %1735 = vmatprep.subr.mxu0 0.0
    %1736 = vmatpush1.msra.mxu0 0.0
    %1737 = vmatprep.subr.mxu0 0.0
    %1738 = vmatpush1.msra.mxu0 0.0
    %1739 = vmatprep.subr.mxu0 0.0
    %1740 = vmatpush1.msra.mxu0 0.0
    %1741 = vmatprep.subr.mxu0 0.0
    %1742 = vmatpush1.msra.mxu0 0.0
    %1743 = vmatprep.subr.mxu0 0.0
    %1744 = vmatpush1.msra.mxu0 0.0
    %1745 = vmatprep.subr.mxu0 0.0
    %1746 = vmatpush1.msra.mxu0 0.0
    %1747 = vmatprep.subr.mxu0 0.0
    %1748 = vmatpush1.msra.mxu0 0.0
    %1749 = vmatprep.subr.mxu0 0.0
    %1750 = vmatpush1.msra.mxu0 0.0
    %1751 = vmatprep.subr.mxu0 0.0
    %1752 = vmatpush1.msra.mxu0 0.0
    %1753 = vmatprep.subr.mxu0 0.0
    %1754 = vmatpush1.msra.mxu0 0.0
    %1755 = vmatprep.subr.mxu0 0.0
    %1756 = vmatpush1.msra.mxu0 0.0
    %1757 = vmatprep.subr.mxu0 0.0
    %1758 = vmatpush1.msra.mxu0 0.0
    %1759 = vmatprep.subr.mxu0 0.0
    %1760 = vmatpush1.msra.mxu0 0.0
    %1761 = vmatprep.subr.mxu0 0.0
    %1762 = vmatpush1.msra.mxu0 0.0
    %1763 = vmatprep.subr.mxu0 0.0
    %1764 = vmatpush1.msra.mxu0 0.0
    %1765 = vmatprep.subr.mxu0 0.0
    %1766 = vmatpush1.msra.mxu0 0.0
    %1767 = vmatprep.mubr.f32.mxu0 0.0
    %1768 = vmatmul.mubr.f32.gmra.mrb[0].mxu0 %v1618
    %v1769 = vpop.f32.mrb[0].mxu0
    %v1770 = vadd.f32 0.0, %v1769
    %v1771 = vpop.f32.mrb[0].mxu0
    %v1772 = vadd.f32 0.0, %v1771
    %1773 = vdwg.mxu0
    %v1774 = vadd.f32 %v1601, %v1699
    %v1775 = vadd.f32 %v1602, %v1701
    %v1776 = vadd.f32 %v1603, %v1770
    %v1777 = vadd.f32 %v1604, %v1772
    %v1778 = vld [vmem:[%s7] sm:$0xf]
    %v1780 = vlaneseq
    %v1781 = vshrl.u32 %v1780, 7
    %v1782 = vsub.s32 0, %v1781
    %v1783 = vrot.slane %v1778, %v1782
    %v1784 = vlaneseq
    %v1785 = vshrl.u32 %v1784, 7
    %v1786 = vsub.s32 1, %v1785
    %v1787 = vrot.slane %v1778, %v1786
    %v1788 = vlaneseq
    %v1789 = vshrl.u32 %v1788, 7
    %v1790 = vsub.s32 2, %v1789
    %v1791 = vrot.slane %v1778, %v1790
    %v1792 = vlaneseq
    %v1793 = vshrl.u32 %v1792, 7
    %v1794 = vsub.s32 3, %v1793
    %v1795 = vrot.slane %v1778, %v1794
    %v1800 = vadd.f32 %v1774, %v1783
    %v1801 = vadd.f32 %v1775, %v1787
    %v1802 = vadd.f32 %v1776, %v1791
    %v1803 = vadd.f32 %v1777, %v1795
    %v1804 = vmul.f32 %v1800, 0.5
    %v1805 = vtanh.pop %v1804
    %v1806 = vmul.f32 %v1805, 0.5
    %v1807 = vadd.f32 %v1806, 0.5
    %v1808 = vmul.f32 %v1801, 0.5
    %v1809 = vtanh.pop %v1808
    %v1810 = vmul.f32 %v1809, 0.5
    %v1811 = vadd.f32 %v1810, 0.5
    %v1812 = vtanh.pop %v1802
    %v1813 = vmul.f32 %v1803, 0.5
    %v1814 = vtanh.pop %v1813
    %v1815 = vmul.f32 %v1814, 0.5
    %v1816 = vadd.f32 %v1815, 0.5
    %v1817 = vmul.f32 %v1811, %v1338
    %v1818 = vmul.f32 %v1807, %v1812
    %v1819 = vadd.f32 %v1817, %v1818
    %v1820 = vtanh.pop %v1819
    %v1821 = vmul.f32 %v1816, %v1820
    %1823 = vrot.lane.b32.xlu0 %v1550, 20
    %v1824 = vpop.permute.xlu0 %1823
    %v1826 = vsel %vm171, %v1821, %v1824
    %v1827 = vld [vmem:[#allocation12] sm:$0xff]
    %v1828 = vld [vmem:[#allocation12 + $0x8] sm:$0xff]
    %v1829 = vld [vmem:[#allocation12 + $0x10] sm:$0xff]
    %v1830 = vld [vmem:[#allocation12 + $0x18] sm:$0xff]
    %v1831 = vld [vmem:[#allocation12 + $0x20] sm:$0xff]
    %v1832 = vld [vmem:[#allocation12 + $0x28] sm:$0xff]
    %v1833 = vld [vmem:[#allocation12 + $0x30] sm:$0xff]
    %v1834 = vld [vmem:[#allocation12 + $0x38] sm:$0xff]
    %v1835 = vld [vmem:[#allocation12 + $0x40] sm:$0xff]
    %v1836 = vld [vmem:[#allocation12 + $0x48] sm:$0xff]
    %v1837 = vld [vmem:[#allocation12 + $0x50] sm:$0xff]
    %v1838 = vld [vmem:[#allocation12 + $0x58] sm:$0xff]
    %v1839 = vld [vmem:[#allocation12 + $0x60] sm:$0xff]
    %v1840 = vld [vmem:[#allocation12 + $0x68] sm:$0xff]
    %v1841 = vld [vmem:[#allocation12 + $0x70] sm:$0xff]
    %v1842 = vld [vmem:[#allocation12 + $0x78] sm:$0xff]
    %v1843 = vld [vmem:[#allocation12 + $0x80] sm:$0xff]
    %v1844 = vld [vmem:[#allocation12 + $0x88] sm:$0xff]
    %v1845 = vld [vmem:[#allocation12 + $0x90] sm:$0xff]
    %v1846 = vld [vmem:[#allocation12 + $0x98] sm:$0xff]
    %v1847 = vld [vmem:[%s9] sm:$0xf]
    %v1849 = vlaneseq
    %v1850 = vshrl.u32 %v1849, 7
    %v1851 = vsub.s32 0, %v1850
    %v1852 = vrot.slane %v1847, %v1851
    %v1853 = vlaneseq
    %v1854 = vshrl.u32 %v1853, 7
    %v1855 = vsub.s32 1, %v1854
    %v1856 = vrot.slane %v1847, %v1855
    %v1857 = vlaneseq
    %v1858 = vshrl.u32 %v1857, 7
    %v1859 = vsub.s32 2, %v1858
    %v1860 = vrot.slane %v1847, %v1859
    %v1861 = vlaneseq
    %v1862 = vshrl.u32 %v1861, 7
    %v1863 = vsub.s32 3, %v1862
    %v1864 = vrot.slane %v1847, %v1863
    %v1870 = vsel %vm425, %v1826, 0
    %1872 = vmatprep.subr.mxu0 %v1828
    %1873 = vmatpush1.msra.mxu0 %v1827
    %1874 = vmatprep.subr.mxu0 %v1832
    %1875 = vmatpush1.msra.mxu0 %v1831
    %1876 = vmatprep.subr.mxu0 %v1836
    %1877 = vmatpush1.msra.mxu0 %v1835
    %1878 = vmatprep.subr.mxu0 %v1840
    %1879 = vmatpush1.msra.mxu0 %v1839
    %1880 = vmatprep.subr.mxu0 %v1844
    %1881 = vmatpush1.msra.mxu0 %v1843
    %1882 = vmatprep.subr.mxu0 0.0
    %1883 = vmatpush1.msra.mxu0 0.0
    %1884 = vmatprep.subr.mxu0 0.0
    %1885 = vmatpush1.msra.mxu0 0.0
    %1886 = vmatprep.subr.mxu0 0.0
    %1887 = vmatpush1.msra.mxu0 0.0
    %1888 = vmatprep.subr.mxu0 0.0
    %1889 = vmatpush1.msra.mxu0 0.0
    %1890 = vmatprep.subr.mxu0 0.0
    %1891 = vmatpush1.msra.mxu0 0.0
    %1892 = vmatprep.subr.mxu0 0.0
    %1893 = vmatpush1.msra.mxu0 0.0
    %1894 = vmatprep.subr.mxu0 0.0
    %1895 = vmatpush1.msra.mxu0 0.0
    %1896 = vmatprep.subr.mxu0 0.0
    %1897 = vmatpush1.msra.mxu0 0.0
    %1898 = vmatprep.subr.mxu0 0.0
    %1899 = vmatpush1.msra.mxu0 0.0
    %1900 = vmatprep.subr.mxu0 0.0
    %1901 = vmatpush1.msra.mxu0 0.0
    %1902 = vmatprep.subr.mxu0 0.0
    %1903 = vmatpush1.msra.mxu0 0.0
    %1904 = vmatprep.subr.mxu0 0.0
    %1905 = vmatpush1.msra.mxu0 0.0
    %1906 = vmatprep.subr.mxu0 0.0
    %1907 = vmatpush1.msra.mxu0 0.0
    %1908 = vmatprep.subr.mxu0 0.0
    %1909 = vmatpush1.msra.mxu0 0.0
    %1910 = vmatprep.subr.mxu0 0.0
    %1911 = vmatpush1.msra.mxu0 0.0
    %1912 = vmatprep.subr.mxu0 0.0
    %1913 = vmatpush1.msra.mxu0 0.0
    %1914 = vmatprep.subr.mxu0 0.0
    %1915 = vmatpush1.msra.mxu0 0.0
    %1916 = vmatprep.subr.mxu0 0.0
    %1917 = vmatpush1.msra.mxu0 0.0
    %1918 = vmatprep.subr.mxu0 0.0
    %1919 = vmatpush1.msra.mxu0 0.0
    %1920 = vmatprep.subr.mxu0 0.0
    %1921 = vmatpush1.msra.mxu0 0.0
    %1922 = vmatprep.subr.mxu0 0.0
    %1923 = vmatpush1.msra.mxu0 0.0
    %1924 = vmatprep.subr.mxu0 0.0
    %1925 = vmatpush1.msra.mxu0 0.0
    %1926 = vmatprep.subr.mxu0 0.0
    %1927 = vmatpush1.msra.mxu0 0.0
    %1928 = vmatprep.subr.mxu0 0.0
    %1929 = vmatpush1.msra.mxu0 0.0
    %1930 = vmatprep.subr.mxu0 0.0
    %1931 = vmatpush1.msra.mxu0 0.0
    %1932 = vmatprep.subr.mxu0 0.0
    %1933 = vmatpush1.msra.mxu0 0.0
    %1934 = vmatprep.subr.mxu0 0.0
    %1935 = vmatpush1.msra.mxu0 0.0
    %1936 = vmatprep.mubr.f32.mxu0 0.0
    %1937 = vmatmul.mubr.f32.gmra.mrb[0].mxu0 %v1870
    %v1938 = vpop.f32.mrb[0].mxu0
    %v1939 = vadd.f32 %v1852, %v1938
    %v1940 = vpop.f32.mrb[0].mxu0
    %v1941 = vadd.f32 %v1856, %v1940
    %1942 = vdwg.mxu0
    %1943 = vmatprep.subr.mxu0 %v1830
    %1944 = vmatpush1.msra.mxu0 %v1829
    %1945 = vmatprep.subr.mxu0 %v1834
    %1946 = vmatpush1.msra.mxu0 %v1833
    %1947 = vmatprep.subr.mxu0 %v1838
    %1948 = vmatpush1.msra.mxu0 %v1837
    %1949 = vmatprep.subr.mxu0 %v1842
    %1950 = vmatpush1.msra.mxu0 %v1841
    %1951 = vmatprep.subr.mxu0 %v1846
    %1952 = vmatpush1.msra.mxu0 %v1845
    %1953 = vmatprep.subr.mxu0 0.0
    %1954 = vmatpush1.msra.mxu0 0.0
    %1955 = vmatprep.subr.mxu0 0.0
    %1956 = vmatpush1.msra.mxu0 0.0
    %1957 = vmatprep.subr.mxu0 0.0
    %1958 = vmatpush1.msra.mxu0 0.0
    %1959 = vmatprep.subr.mxu0 0.0
    %1960 = vmatpush1.msra.mxu0 0.0
    %1961 = vmatprep.subr.mxu0 0.0
    %1962 = vmatpush1.msra.mxu0 0.0
    %1963 = vmatprep.subr.mxu0 0.0
    %1964 = vmatpush1.msra.mxu0 0.0
    %1965 = vmatprep.subr.mxu0 0.0
    %1966 = vmatpush1.msra.mxu0 0.0
    %1967 = vmatprep.subr.mxu0 0.0
    %1968 = vmatpush1.msra.mxu0 0.0
    %1969 = vmatprep.subr.mxu0 0.0
    %1970 = vmatpush1.msra.mxu0 0.0
    %1971 = vmatprep.subr.mxu0 0.0
    %1972 = vmatpush1.msra.mxu0 0.0
    %1973 = vmatprep.subr.mxu0 0.0
    %1974 = vmatpush1.msra.mxu0 0.0
    %1975 = vmatprep.subr.mxu0 0.0
    %1976 = vmatpush1.msra.mxu0 0.0
    %1977 = vmatprep.subr.mxu0 0.0
    %1978 = vmatpush1.msra.mxu0 0.0
    %1979 = vmatprep.subr.mxu0 0.0
    %1980 = vmatpush1.msra.mxu0 0.0
    %1981 = vmatprep.subr.mxu0 0.0
    %1982 = vmatpush1.msra.mxu0 0.0
    %1983 = vmatprep.subr.mxu0 0.0
    %1984 = vmatpush1.msra.mxu0 0.0
    %1985 = vmatprep.subr.mxu0 0.0
    %1986 = vmatpush1.msra.mxu0 0.0
    %1987 = vmatprep.subr.mxu0 0.0
    %1988 = vmatpush1.msra.mxu0 0.0
    %1989 = vmatprep.subr.mxu0 0.0
    %1990 = vmatpush1.msra.mxu0 0.0
    %1991 = vmatprep.subr.mxu0 0.0
    %1992 = vmatpush1.msra.mxu0 0.0
    %1993 = vmatprep.subr.mxu0 0.0
    %1994 = vmatpush1.msra.mxu0 0.0
    %1995 = vmatprep.subr.mxu0 0.0
    %1996 = vmatpush1.msra.mxu0 0.0
    %1997 = vmatprep.subr.mxu0 0.0
    %1998 = vmatpush1.msra.mxu0 0.0
    %1999 = vmatprep.subr.mxu0 0.0
    %2000 = vmatpush1.msra.mxu0 0.0
    %2001 = vmatprep.subr.mxu0 0.0
    %2002 = vmatpush1.msra.mxu0 0.0
    %2003 = vmatprep.subr.mxu0 0.0
    %2004 = vmatpush1.msra.mxu0 0.0
    %2005 = vmatprep.subr.mxu0 0.0
    %2006 = vmatpush1.msra.mxu0 0.0
    %2007 = vmatprep.mubr.f32.mxu0 0.0
    %2008 = vmatmul.mubr.f32.gmra.mrb[0].mxu0 %v1870
    %v2009 = vpop.f32.mrb[0].mxu0
    %v2010 = vadd.f32 %v1860, %v2009
    %v2011 = vpop.f32.mrb[0].mxu0
    %v2012 = vadd.f32 %v1864, %v2011
    %2013 = vdwg.mxu0
    %v2014 = vmul.f32 %v1939, 0.5
    %v2015 = vtanh.pop %v2014
    %v2016 = vmul.f32 %v2015, 0.5
    %v2017 = vadd.f32 %v2016, 0.5
    %v2018 = vmul.f32 %v1941, 0.5
    %v2019 = vtanh.pop %v2018
    %v2020 = vmul.f32 %v2019, 0.5
    %v2021 = vadd.f32 %v2020, 0.5
    %v2022 = vtanh.pop %v2010
    %v2023 = vmul.f32 %v2012, 0.5
    %v2024 = vtanh.pop %v2023
    %v2025 = vmul.f32 %v2024, 0.5
    %v2026 = vadd.f32 %v2025, 0.5
    %v2027 = vmul.f32 %v2021, %v1548
    %v2028 = vmul.f32 %v2017, %v2022
    %v2029 = vadd.f32 %v2027, %v2028
    %v2030 = vtanh.pop %v2029
    %v2031 = vmul.f32 %v2026, %v2030
    %v2032 = vld [vmem:[%s10] sm:$0x1]
    %v2034 = vlaneseq
    %v2035 = vshrl.u32 %v2034, 7
    %v2036 = vsub.s32 0, %v2035
    %v2037 = vrot.slane %v2032, %v2036
    %v2039 = vmul.f32 %v2031, %v2037
    %v2040 = vsel %vm171, %v2039, 0.0
    %2041 = vadd.xlane.f32.xlu0 %v2040
    %v2042 = vpop.xlane.xlu0 %2041
    %v2043 = vld [vmem:[#allocation2] sm:$0x1]
    %v2045 = vlaneseq
    %v2046 = vshrl.u32 %v2045, 7
    %v2047 = vsub.s32 0, %v2046
    %v2048 = vrot.slane %v2043, %v2047
    %v2050 = vadd.f32 %v2042, %v2048
    %s2051 = scalar_lea.vmem %s12, 24
    %2052 = vst.msk [vmem:[%s2051] sm:$0xff] %vm608, %v2050
    %s2053 = scalar_lea.vmem %s0, 32
    %v2054 = vld [vmem:[%s2053] sm:$0xff]
    %v2055 = vld [vmem:[#allocation11] sm:$0xf]
    %2057 = vset.pattern.permute.xlu0 0
    %2058 = vperm.xlu0 %2057, %v2054
    %v2059 = vpop.permute.xlu0 %2058
    %v2062 = vlaneseq
    %v2063 = vshrl.u32 %v2062, 7
    %v2064 = vsub.s32 0, %v2063
    %v2065 = vrot.slane %v2055, %v2064
    %v2066 = vlaneseq
    %v2067 = vshrl.u32 %v2066, 7
    %v2068 = vsub.s32 1, %v2067
    %v2069 = vrot.slane %v2055, %v2068
    %v2070 = vlaneseq
    %v2071 = vshrl.u32 %v2070, 7
    %v2072 = vsub.s32 2, %v2071
    %v2073 = vrot.slane %v2055, %v2072
    %v2074 = vlaneseq
    %v2075 = vshrl.u32 %v2074, 7
    %v2076 = vsub.s32 3, %v2075
    %v2077 = vrot.slane %v2055, %v2076
    %v2082 = vmul.f32 %v2059, %v2065
    %v2083 = vmul.f32 %v2059, %v2069
    %v2084 = vmul.f32 %v2059, %v2073
    %v2085 = vmul.f32 %v2059, %v2077
    %v2086 = vld [vmem:[%s6] sm:$0xff]
    %v2087 = vld [vmem:[%s6 + $0x8] sm:$0xff]
    %v2088 = vld [vmem:[%s6 + $0x10] sm:$0xff]
    %v2089 = vld [vmem:[%s6 + $0x18] sm:$0xff]
    %v2090 = vld [vmem:[%s6 + $0x20] sm:$0xff]
    %v2091 = vld [vmem:[%s6 + $0x28] sm:$0xff]
    %v2092 = vld [vmem:[%s6 + $0x30] sm:$0xff]
    %v2093 = vld [vmem:[%s6 + $0x38] sm:$0xff]
    %v2094 = vld [vmem:[%s6 + $0x40] sm:$0xf]
    %v2095 = vld [vmem:[%s6 + $0x48] sm:$0xf]
    %v2096 = vld [vmem:[%s6 + $0x50] sm:$0xf]
    %v2097 = vld [vmem:[%s6 + $0x58] sm:$0xf]
    %v2099 = vsel %vm171, %v1821, 0
    %v2102 = vsel %vm175, %v2094, 0
    %v2105 = vsel %vm175, %v2095, 0
    %v2108 = vsel %vm175, %v2096, 0
    %v2111 = vsel %vm175, %v2097, 0
    %2113 = vmatprep.subr.mxu0 %v2087
    %2114 = vmatpush1.msra.mxu0 %v2086
    %2115 = vmatprep.subr.mxu0 %v2091
    %2116 = vmatpush1.msra.mxu0 %v2090
    %2117 = vmatprep.subr.mxu0 %v2105
    %2118 = vmatpush1.msra.mxu0 %v2102
    %2119 = vmatprep.subr.mxu0 0.0
    %2120 = vmatpush1.msra.mxu0 0.0
    %2121 = vmatprep.subr.mxu0 0.0
    %2122 = vmatpush1.msra.mxu0 0.0
    %2123 = vmatprep.subr.mxu0 0.0
    %2124 = vmatpush1.msra.mxu0 0.0
    %2125 = vmatprep.subr.mxu0 0.0
    %2126 = vmatpush1.msra.mxu0 0.0
    %2127 = vmatprep.subr.mxu0 0.0
    %2128 = vmatpush1.msra.mxu0 0.0
    %2129 = vmatprep.subr.mxu0 0.0
    %2130 = vmatpush1.msra.mxu0 0.0
    %2131 = vmatprep.subr.mxu0 0.0
    %2132 = vmatpush1.msra.mxu0 0.0
    %2133 = vmatprep.subr.mxu0 0.0
    %2134 = vmatpush1.msra.mxu0 0.0
    %2135 = vmatprep.subr.mxu0 0.0
    %2136 = vmatpush1.msra.mxu0 0.0
    %2137 = vmatprep.subr.mxu0 0.0
    %2138 = vmatpush1.msra.mxu0 0.0
    %2139 = vmatprep.subr.mxu0 0.0
    %2140 = vmatpush1.msra.mxu0 0.0
    %2141 = vmatprep.subr.mxu0 0.0
    %2142 = vmatpush1.msra.mxu0 0.0
    %2143 = vmatprep.subr.mxu0 0.0
    %2144 = vmatpush1.msra.mxu0 0.0
    %2145 = vmatprep.subr.mxu0 0.0
    %2146 = vmatpush1.msra.mxu0 0.0
    %2147 = vmatprep.subr.mxu0 0.0
    %2148 = vmatpush1.msra.mxu0 0.0
    %2149 = vmatprep.subr.mxu0 0.0
    %2150 = vmatpush1.msra.mxu0 0.0
    %2151 = vmatprep.subr.mxu0 0.0
    %2152 = vmatpush1.msra.mxu0 0.0
    %2153 = vmatprep.subr.mxu0 0.0
    %2154 = vmatpush1.msra.mxu0 0.0
    %2155 = vmatprep.subr.mxu0 0.0
    %2156 = vmatpush1.msra.mxu0 0.0
    %2157 = vmatprep.subr.mxu0 0.0
    %2158 = vmatpush1.msra.mxu0 0.0
    %2159 = vmatprep.subr.mxu0 0.0
    %2160 = vmatpush1.msra.mxu0 0.0
    %2161 = vmatprep.subr.mxu0 0.0
    %2162 = vmatpush1.msra.mxu0 0.0
    %2163 = vmatprep.subr.mxu0 0.0
    %2164 = vmatpush1.msra.mxu0 0.0
    %2165 = vmatprep.subr.mxu0 0.0
    %2166 = vmatpush1.msra.mxu0 0.0
    %2167 = vmatprep.subr.mxu0 0.0
    %2168 = vmatpush1.msra.mxu0 0.0
    %2169 = vmatprep.subr.mxu0 0.0
    %2170 = vmatpush1.msra.mxu0 0.0
    %2171 = vmatprep.subr.mxu0 0.0
    %2172 = vmatpush1.msra.mxu0 0.0
    %2173 = vmatprep.subr.mxu0 0.0
    %2174 = vmatpush1.msra.mxu0 0.0
    %2175 = vmatprep.subr.mxu0 0.0
    %2176 = vmatpush1.msra.mxu0 0.0
    %2177 = vmatprep.mubr.f32.mxu0 0.0
    %2178 = vmatmul.mubr.f32.gmra.mrb[0].mxu0 %v2099
    %v2179 = vpop.f32.mrb[0].mxu0
    %v2180 = vadd.f32 0.0, %v2179
    %v2181 = vpop.f32.mrb[0].mxu0
    %v2182 = vadd.f32 0.0, %v2181
    %2183 = vdwg.mxu0
    %2184 = vmatprep.subr.mxu0 %v2089
    %2185 = vmatpush1.msra.mxu0 %v2088
    %2186 = vmatprep.subr.mxu0 %v2093
    %2187 = vmatpush1.msra.mxu0 %v2092
    %2188 = vmatprep.subr.mxu0 %v2111
    %2189 = vmatpush1.msra.mxu0 %v2108
    %2190 = vmatprep.subr.mxu0 0.0
    %2191 = vmatpush1.msra.mxu0 0.0
    %2192 = vmatprep.subr.mxu0 0.0
    %2193 = vmatpush1.msra.mxu0 0.0
    %2194 = vmatprep.subr.mxu0 0.0
    %2195 = vmatpush1.msra.mxu0 0.0
    %2196 = vmatprep.subr.mxu0 0.0
    %2197 = vmatpush1.msra.mxu0 0.0
    %2198 = vmatprep.subr.mxu0 0.0
    %2199 = vmatpush1.msra.mxu0 0.0
    %2200 = vmatprep.subr.mxu0 0.0
    %2201 = vmatpush1.msra.mxu0 0.0
    %2202 = vmatprep.subr.mxu0 0.0
    %2203 = vmatpush1.msra.mxu0 0.0
    %2204 = vmatprep.subr.mxu0 0.0
    %2205 = vmatpush1.msra.mxu0 0.0
    %2206 = vmatprep.subr.mxu0 0.0
    %2207 = vmatpush1.msra.mxu0 0.0
    %2208 = vmatprep.subr.mxu0 0.0
    %2209 = vmatpush1.msra.mxu0 0.0
    %2210 = vmatprep.subr.mxu0 0.0
    %2211 = vmatpush1.msra.mxu0 0.0
    %2212 = vmatprep.subr.mxu0 0.0
    %2213 = vmatpush1.msra.mxu0 0.0
    %2214 = vmatprep.subr.mxu0 0.0
    %2215 = vmatpush1.msra.mxu0 0.0
    %2216 = vmatprep.subr.mxu0 0.0
    %2217 = vmatpush1.msra.mxu0 0.0
    %2218 = vmatprep.subr.mxu0 0.0
    %2219 = vmatpush1.msra.mxu0 0.0
    %2220 = vmatprep.subr.mxu0 0.0
    %2221 = vmatpush1.msra.mxu0 0.0
    %2222 = vmatprep.subr.mxu0 0.0
    %2223 = vmatpush1.msra.mxu0 0.0
    %2224 = vmatprep.subr.mxu0 0.0
    %2225 = vmatpush1.msra.mxu0 0.0
    %2226 = vmatprep.subr.mxu0 0.0
    %2227 = vmatpush1.msra.mxu0 0.0
    %2228 = vmatprep.subr.mxu0 0.0
    %2229 = vmatpush1.msra.mxu0 0.0
    %2230 = vmatprep.subr.mxu0 0.0
    %2231 = vmatpush1.msra.mxu0 0.0
    %2232 = vmatprep.subr.mxu0 0.0
    %2233 = vmatpush1.msra.mxu0 0.0
    %2234 = vmatprep.subr.mxu0 0.0
    %2235 = vmatpush1.msra.mxu0 0.0
    %2236 = vmatprep.subr.mxu0 0.0
    %2237 = vmatpush1.msra.mxu0 0.0
    %2238 = vmatprep.subr.mxu0 0.0
    %2239 = vmatpush1.msra.mxu0 0.0
    %2240 = vmatprep.subr.mxu0 0.0
    %2241 = vmatpush1.msra.mxu0 0.0
    %2242 = vmatprep.subr.mxu0 0.0
    %2243 = vmatpush1.msra.mxu0 0.0
    %2244 = vmatprep.subr.mxu0 0.0
    %2245 = vmatpush1.msra.mxu0 0.0
    %2246 = vmatprep.subr.mxu0 0.0
    %2247 = vmatpush1.msra.mxu0 0.0
    %2248 = vmatprep.mubr.f32.mxu0 0.0
    %2249 = vmatmul.mubr.f32.gmra.mrb[0].mxu0 %v2099
    %v2250 = vpop.f32.mrb[0].mxu0
    %v2251 = vadd.f32 0.0, %v2250
    %v2252 = vpop.f32.mrb[0].mxu0
    %v2253 = vadd.f32 0.0, %v2252
    %2254 = vdwg.mxu0
    %v2255 = vadd.f32 %v2082, %v2180
    %v2256 = vadd.f32 %v2083, %v2182
    %v2257 = vadd.f32 %v2084, %v2251
    %v2258 = vadd.f32 %v2085, %v2253
    %v2259 = vld [vmem:[%s7] sm:$0xf]
    %v2261 = vlaneseq
    %v2262 = vshrl.u32 %v2261, 7
    %v2263 = vsub.s32 0, %v2262
    %v2264 = vrot.slane %v2259, %v2263
    %v2265 = vlaneseq
    %v2266 = vshrl.u32 %v2265, 7
    %v2267 = vsub.s32 1, %v2266
    %v2268 = vrot.slane %v2259, %v2267
    %v2269 = vlaneseq
    %v2270 = vshrl.u32 %v2269, 7
    %v2271 = vsub.s32 2, %v2270
    %v2272 = vrot.slane %v2259, %v2271
    %v2273 = vlaneseq
    %v2274 = vshrl.u32 %v2273, 7
    %v2275 = vsub.s32 3, %v2274
    %v2276 = vrot.slane %v2259, %v2275
    %v2281 = vadd.f32 %v2255, %v2264
    %v2282 = vadd.f32 %v2256, %v2268
    %v2283 = vadd.f32 %v2257, %v2272
    %v2284 = vadd.f32 %v2258, %v2276
    %v2285 = vmul.f32 %v2281, 0.5
    %v2286 = vtanh.pop %v2285
    %v2287 = vmul.f32 %v2286, 0.5
    %v2288 = vadd.f32 %v2287, 0.5
    %v2289 = vmul.f32 %v2282, 0.5
    %v2290 = vtanh.pop %v2289
    %v2291 = vmul.f32 %v2290, 0.5
    %v2292 = vadd.f32 %v2291, 0.5
    %v2293 = vtanh.pop %v2283
    %v2294 = vmul.f32 %v2284, 0.5
    %v2295 = vtanh.pop %v2294
    %v2296 = vmul.f32 %v2295, 0.5
    %v2297 = vadd.f32 %v2296, 0.5
    %v2298 = vmul.f32 %v2292, %v1819
    %v2299 = vmul.f32 %v2288, %v2293
    %v2300 = vadd.f32 %v2298, %v2299
    %v2301 = vtanh.pop %v2300
    %v2302 = vmul.f32 %v2297, %v2301
    %2304 = vrot.lane.b32.xlu0 %v2031, 20
    %v2305 = vpop.permute.xlu0 %2304
    %v2307 = vsel %vm171, %v2302, %v2305
    %v2308 = vld [vmem:[#allocation12] sm:$0xff]
    %v2309 = vld [vmem:[#allocation12 + $0x8] sm:$0xff]
    %v2310 = vld [vmem:[#allocation12 + $0x10] sm:$0xff]
    %v2311 = vld [vmem:[#allocation12 + $0x18] sm:$0xff]
    %v2312 = vld [vmem:[#allocation12 + $0x20] sm:$0xff]
    %v2313 = vld [vmem:[#allocation12 + $0x28] sm:$0xff]
    %v2314 = vld [vmem:[#allocation12 + $0x30] sm:$0xff]
    %v2315 = vld [vmem:[#allocation12 + $0x38] sm:$0xff]
    %v2316 = vld [vmem:[#allocation12 + $0x40] sm:$0xff]
    %v2317 = vld [vmem:[#allocation12 + $0x48] sm:$0xff]
    %v2318 = vld [vmem:[#allocation12 + $0x50] sm:$0xff]
    %v2319 = vld [vmem:[#allocation12 + $0x58] sm:$0xff]
    %v2320 = vld [vmem:[#allocation12 + $0x60] sm:$0xff]
    %v2321 = vld [vmem:[#allocation12 + $0x68] sm:$0xff]
    %v2322 = vld [vmem:[#allocation12 + $0x70] sm:$0xff]
    %v2323 = vld [vmem:[#allocation12 + $0x78] sm:$0xff]
    %v2324 = vld [vmem:[#allocation12 + $0x80] sm:$0xff]
    %v2325 = vld [vmem:[#allocation12 + $0x88] sm:$0xff]
    %v2326 = vld [vmem:[#allocation12 + $0x90] sm:$0xff]
    %v2327 = vld [vmem:[#allocation12 + $0x98] sm:$0xff]
    %v2328 = vld [vmem:[%s9] sm:$0xf]
    %v2330 = vlaneseq
    %v2331 = vshrl.u32 %v2330, 7
    %v2332 = vsub.s32 0, %v2331
    %v2333 = vrot.slane %v2328, %v2332
    %v2334 = vlaneseq
    %v2335 = vshrl.u32 %v2334, 7
    %v2336 = vsub.s32 1, %v2335
    %v2337 = vrot.slane %v2328, %v2336
    %v2338 = vlaneseq
    %v2339 = vshrl.u32 %v2338, 7
    %v2340 = vsub.s32 2, %v2339
    %v2341 = vrot.slane %v2328, %v2340
    %v2342 = vlaneseq
    %v2343 = vshrl.u32 %v2342, 7
    %v2344 = vsub.s32 3, %v2343
    %v2345 = vrot.slane %v2328, %v2344
    %v2351 = vsel %vm425, %v2307, 0
    %2353 = vmatprep.subr.mxu0 %v2309
    %2354 = vmatpush1.msra.mxu0 %v2308
    %2355 = vmatprep.subr.mxu0 %v2313
    %2356 = vmatpush1.msra.mxu0 %v2312
    %2357 = vmatprep.subr.mxu0 %v2317
    %2358 = vmatpush1.msra.mxu0 %v2316
    %2359 = vmatprep.subr.mxu0 %v2321
    %2360 = vmatpush1.msra.mxu0 %v2320
    %2361 = vmatprep.subr.mxu0 %v2325
    %2362 = vmatpush1.msra.mxu0 %v2324
    %2363 = vmatprep.subr.mxu0 0.0
    %2364 = vmatpush1.msra.mxu0 0.0
    %2365 = vmatprep.subr.mxu0 0.0
    %2366 = vmatpush1.msra.mxu0 0.0
    %2367 = vmatprep.subr.mxu0 0.0
    %2368 = vmatpush1.msra.mxu0 0.0
    %2369 = vmatprep.subr.mxu0 0.0
    %2370 = vmatpush1.msra.mxu0 0.0
    %2371 = vmatprep.subr.mxu0 0.0
    %2372 = vmatpush1.msra.mxu0 0.0
    %2373 = vmatprep.subr.mxu0 0.0
    %2374 = vmatpush1.msra.mxu0 0.0
    %2375 = vmatprep.subr.mxu0 0.0
    %2376 = vmatpush1.msra.mxu0 0.0
    %2377 = vmatprep.subr.mxu0 0.0
    %2378 = vmatpush1.msra.mxu0 0.0
    %2379 = vmatprep.subr.mxu0 0.0
    %2380 = vmatpush1.msra.mxu0 0.0
    %2381 = vmatprep.subr.mxu0 0.0
    %2382 = vmatpush1.msra.mxu0 0.0
    %2383 = vmatprep.subr.mxu0 0.0
    %2384 = vmatpush1.msra.mxu0 0.0
    %2385 = vmatprep.subr.mxu0 0.0
    %2386 = vmatpush1.msra.mxu0 0.0
    %2387 = vmatprep.subr.mxu0 0.0
    %2388 = vmatpush1.msra.mxu0 0.0
    %2389 = vmatprep.subr.mxu0 0.0
    %2390 = vmatpush1.msra.mxu0 0.0
    %2391 = vmatprep.subr.mxu0 0.0
    %2392 = vmatpush1.msra.mxu0 0.0
    %2393 = vmatprep.subr.mxu0 0.0
    %2394 = vmatpush1.msra.mxu0 0.0
    %2395 = vmatprep.subr.mxu0 0.0
    %2396 = vmatpush1.msra.mxu0 0.0
    %2397 = vmatprep.subr.mxu0 0.0
    %2398 = vmatpush1.msra.mxu0 0.0
    %2399 = vmatprep.subr.mxu0 0.0
    %2400 = vmatpush1.msra.mxu0 0.0
    %2401 = vmatprep.subr.mxu0 0.0
    %2402 = vmatpush1.msra.mxu0 0.0
    %2403 = vmatprep.subr.mxu0 0.0
    %2404 = vmatpush1.msra.mxu0 0.0
    %2405 = vmatprep.subr.mxu0 0.0
    %2406 = vmatpush1.msra.mxu0 0.0
    %2407 = vmatprep.subr.mxu0 0.0
    %2408 = vmatpush1.msra.mxu0 0.0
    %2409 = vmatprep.subr.mxu0 0.0
    %2410 = vmatpush1.msra.mxu0 0.0
    %2411 = vmatprep.subr.mxu0 0.0
    %2412 = vmatpush1.msra.mxu0 0.0
    %2413 = vmatprep.subr.mxu0 0.0
    %2414 = vmatpush1.msra.mxu0 0.0
    %2415 = vmatprep.subr.mxu0 0.0
    %2416 = vmatpush1.msra.mxu0 0.0
    %2417 = vmatprep.mubr.f32.mxu0 0.0
    %2418 = vmatmul.mubr.f32.gmra.mrb[0].mxu0 %v2351
    %v2419 = vpop.f32.mrb[0].mxu0
    %v2420 = vadd.f32 %v2333, %v2419
    %v2421 = vpop.f32.mrb[0].mxu0
    %v2422 = vadd.f32 %v2337, %v2421
    %2423 = vdwg.mxu0
    %2424 = vmatprep.subr.mxu0 %v2311
    %2425 = vmatpush1.msra.mxu0 %v2310
    %2426 = vmatprep.subr.mxu0 %v2315
    %2427 = vmatpush1.msra.mxu0 %v2314
    %2428 = vmatprep.subr.mxu0 %v2319
    %2429 = vmatpush1.msra.mxu0 %v2318
    %2430 = vmatprep.subr.mxu0 %v2323
    %2431 = vmatpush1.msra.mxu0 %v2322
    %2432 = vmatprep.subr.mxu0 %v2327
    %2433 = vmatpush1.msra.mxu0 %v2326
    %2434 = vmatprep.subr.mxu0 0.0
    %2435 = vmatpush1.msra.mxu0 0.0
    %2436 = vmatprep.subr.mxu0 0.0
    %2437 = vmatpush1.msra.mxu0 0.0
    %2438 = vmatprep.subr.mxu0 0.0
    %2439 = vmatpush1.msra.mxu0 0.0
    %2440 = vmatprep.subr.mxu0 0.0
    %2441 = vmatpush1.msra.mxu0 0.0
    %2442 = vmatprep.subr.mxu0 0.0
    %2443 = vmatpush1.msra.mxu0 0.0
    %2444 = vmatprep.subr.mxu0 0.0
    %2445 = vmatpush1.msra.mxu0 0.0
    %2446 = vmatprep.subr.mxu0 0.0
    %2447 = vmatpush1.msra.mxu0 0.0
    %2448 = vmatprep.subr.mxu0 0.0
    %2449 = vmatpush1.msra.mxu0 0.0
    %2450 = vmatprep.subr.mxu0 0.0
    %2451 = vmatpush1.msra.mxu0 0.0
    %2452 = vmatprep.subr.mxu0 0.0
    %2453 = vmatpush1.msra.mxu0 0.0
    %2454 = vmatprep.subr.mxu0 0.0
    %2455 = vmatpush1.msra.mxu0 0.0
    %2456 = vmatprep.subr.mxu0 0.0
    %2457 = vmatpush1.msra.mxu0 0.0
    %2458 = vmatprep.subr.mxu0 0.0
    %2459 = vmatpush1.msra.mxu0 0.0
    %2460 = vmatprep.subr.mxu0 0.0
    %2461 = vmatpush1.msra.mxu0 0.0
    %2462 = vmatprep.subr.mxu0 0.0
    %2463 = vmatpush1.msra.mxu0 0.0
    %2464 = vmatprep.subr.mxu0 0.0
    %2465 = vmatpush1.msra.mxu0 0.0
    %2466 = vmatprep.subr.mxu0 0.0
    %2467 = vmatpush1.msra.mxu0 0.0
    %2468 = vmatprep.subr.mxu0 0.0
    %2469 = vmatpush1.msra.mxu0 0.0
    %2470 = vmatprep.subr.mxu0 0.0
    %2471 = vmatpush1.msra.mxu0 0.0
    %2472 = vmatprep.subr.mxu0 0.0
    %2473 = vmatpush1.msra.mxu0 0.0
    %2474 = vmatprep.subr.mxu0 0.0
    %2475 = vmatpush1.msra.mxu0 0.0
    %2476 = vmatprep.subr.mxu0 0.0
    %2477 = vmatpush1.msra.mxu0 0.0
    %2478 = vmatprep.subr.mxu0 0.0
    %2479 = vmatpush1.msra.mxu0 0.0
    %2480 = vmatprep.subr.mxu0 0.0
    %2481 = vmatpush1.msra.mxu0 0.0
    %2482 = vmatprep.subr.mxu0 0.0
    %2483 = vmatpush1.msra.mxu0 0.0
    %2484 = vmatprep.subr.mxu0 0.0
    %2485 = vmatpush1.msra.mxu0 0.0
    %2486 = vmatprep.subr.mxu0 0.0
    %2487 = vmatpush1.msra.mxu0 0.0
    %2488 = vmatprep.mubr.f32.mxu0 0.0
    %2489 = vmatmul.mubr.f32.gmra.mrb[0].mxu0 %v2351
    %v2490 = vpop.f32.mrb[0].mxu0
    %v2491 = vadd.f32 %v2341, %v2490
    %v2492 = vpop.f32.mrb[0].mxu0
    %v2493 = vadd.f32 %v2345, %v2492
    %2494 = vdwg.mxu0
    %v2495 = vmul.f32 %v2420, 0.5
    %v2496 = vtanh.pop %v2495
    %v2497 = vmul.f32 %v2496, 0.5
    %v2498 = vadd.f32 %v2497, 0.5
    %v2499 = vmul.f32 %v2422, 0.5
    %v2500 = vtanh.pop %v2499
    %v2501 = vmul.f32 %v2500, 0.5
    %v2502 = vadd.f32 %v2501, 0.5
    %v2503 = vtanh.pop %v2491
    %v2504 = vmul.f32 %v2493, 0.5
    %v2505 = vtanh.pop %v2504
    %v2506 = vmul.f32 %v2505, 0.5
    %v2507 = vadd.f32 %v2506, 0.5
    %v2508 = vmul.f32 %v2502, %v2029
    %v2509 = vmul.f32 %v2498, %v2503
    %v2510 = vadd.f32 %v2508, %v2509
    %v2511 = vtanh.pop %v2510
    %v2512 = vmul.f32 %v2507, %v2511
    %v2513 = vld [vmem:[%s10] sm:$0x1]
    %v2515 = vlaneseq
    %v2516 = vshrl.u32 %v2515, 7
    %v2517 = vsub.s32 0, %v2516
    %v2518 = vrot.slane %v2513, %v2517
    %v2520 = vmul.f32 %v2512, %v2518
    %v2521 = vsel %vm171, %v2520, 0.0
    %2522 = vadd.xlane.f32.xlu0 %v2521
    %v2523 = vpop.xlane.xlu0 %2522
    %v2524 = vld [vmem:[#allocation2] sm:$0x1]
    %v2526 = vlaneseq
    %v2527 = vshrl.u32 %v2526, 7
    %v2528 = vsub.s32 0, %v2527
    %v2529 = vrot.slane %v2524, %v2528
    %v2531 = vadd.f32 %v2523, %v2529
    %s2532 = scalar_lea.vmem %s12, 32
    %2533 = vst.msk [vmem:[%s2532] sm:$0xff] %vm608, %v2531
    %s2534 = scalar_lea.vmem %s0, 40
    %v2535 = vld [vmem:[%s2534] sm:$0xff]
    %v2536 = vld [vmem:[#allocation11] sm:$0xf]
    %2538 = vset.pattern.permute.xlu0 0
    %2539 = vperm.xlu0 %2538, %v2535
    %v2540 = vpop.permute.xlu0 %2539
    %v2543 = vlaneseq
    %v2544 = vshrl.u32 %v2543, 7
    %v2545 = vsub.s32 0, %v2544
    %v2546 = vrot.slane %v2536, %v2545
    %v2547 = vlaneseq
    %v2548 = vshrl.u32 %v2547, 7
    %v2549 = vsub.s32 1, %v2548
    %v2550 = vrot.slane %v2536, %v2549
    %v2551 = vlaneseq
    %v2552 = vshrl.u32 %v2551, 7
    %v2553 = vsub.s32 2, %v2552
    %v2554 = vrot.slane %v2536, %v2553
    %v2555 = vlaneseq
    %v2556 = vshrl.u32 %v2555, 7
    %v2557 = vsub.s32 3, %v2556
    %v2558 = vrot.slane %v2536, %v2557
    %v2563 = vmul.f32 %v2540, %v2546
    %v2564 = vmul.f32 %v2540, %v2550
    %v2565 = vmul.f32 %v2540, %v2554
    %v2566 = vmul.f32 %v2540, %v2558
    %v2567 = vld [vmem:[%s6] sm:$0xff]
    %v2568 = vld [vmem:[%s6 + $0x8] sm:$0xff]
    %v2569 = vld [vmem:[%s6 + $0x10] sm:$0xff]
    %v2570 = vld [vmem:[%s6 + $0x18] sm:$0xff]
    %v2571 = vld [vmem:[%s6 + $0x20] sm:$0xff]
    %v2572 = vld [vmem:[%s6 + $0x28] sm:$0xff]
    %v2573 = vld [vmem:[%s6 + $0x30] sm:$0xff]
    %v2574 = vld [vmem:[%s6 + $0x38] sm:$0xff]
    %v2575 = vld [vmem:[%s6 + $0x40] sm:$0xf]
    %v2576 = vld [vmem:[%s6 + $0x48] sm:$0xf]
    %v2577 = vld [vmem:[%s6 + $0x50] sm:$0xf]
    %v2578 = vld [vmem:[%s6 + $0x58] sm:$0xf]
    %v2580 = vsel %vm171, %v2302, 0
    %v2583 = vsel %vm175, %v2575, 0
    %v2586 = vsel %vm175, %v2576, 0
    %v2589 = vsel %vm175, %v2577, 0
    %v2592 = vsel %vm175, %v2578, 0
    %2594 = vmatprep.subr.mxu0 %v2568
    %2595 = vmatpush1.msra.mxu0 %v2567
    %2596 = vmatprep.subr.mxu0 %v2572
    %2597 = vmatpush1.msra.mxu0 %v2571
    %2598 = vmatprep.subr.mxu0 %v2586
    %2599 = vmatpush1.msra.mxu0 %v2583
    %2600 = vmatprep.subr.mxu0 0.0
    %2601 = vmatpush1.msra.mxu0 0.0
    %2602 = vmatprep.subr.mxu0 0.0
    %2603 = vmatpush1.msra.mxu0 0.0
    %2604 = vmatprep.subr.mxu0 0.0
    %2605 = vmatpush1.msra.mxu0 0.0
    %2606 = vmatprep.subr.mxu0 0.0
    %2607 = vmatpush1.msra.mxu0 0.0
    %2608 = vmatprep.subr.mxu0 0.0
    %2609 = vmatpush1.msra.mxu0 0.0
    %2610 = vmatprep.subr.mxu0 0.0
    %2611 = vmatpush1.msra.mxu0 0.0
    %2612 = vmatprep.subr.mxu0 0.0
    %2613 = vmatpush1.msra.mxu0 0.0
    %2614 = vmatprep.subr.mxu0 0.0
    %2615 = vmatpush1.msra.mxu0 0.0
    %2616 = vmatprep.subr.mxu0 0.0
    %2617 = vmatpush1.msra.mxu0 0.0
    %2618 = vmatprep.subr.mxu0 0.0
    %2619 = vmatpush1.msra.mxu0 0.0
    %2620 = vmatprep.subr.mxu0 0.0
    %2621 = vmatpush1.msra.mxu0 0.0
    %2622 = vmatprep.subr.mxu0 0.0
    %2623 = vmatpush1.msra.mxu0 0.0
    %2624 = vmatprep.subr.mxu0 0.0
    %2625 = vmatpush1.msra.mxu0 0.0
    %2626 = vmatprep.subr.mxu0 0.0
    %2627 = vmatpush1.msra.mxu0 0.0
    %2628 = vmatprep.subr.mxu0 0.0
    %2629 = vmatpush1.msra.mxu0 0.0
    %2630 = vmatprep.subr.mxu0 0.0
    %2631 = vmatpush1.msra.mxu0 0.0
    %2632 = vmatprep.subr.mxu0 0.0
    %2633 = vmatpush1.msra.mxu0 0.0
    %2634 = vmatprep.subr.mxu0 0.0
    %2635 = vmatpush1.msra.mxu0 0.0
    %2636 = vmatprep.subr.mxu0 0.0
    %2637 = vmatpush1.msra.mxu0 0.0
    %2638 = vmatprep.subr.mxu0 0.0
    %2639 = vmatpush1.msra.mxu0 0.0
    %2640 = vmatprep.subr.mxu0 0.0
    %2641 = vmatpush1.msra.mxu0 0.0
    %2642 = vmatprep.subr.mxu0 0.0
    %2643 = vmatpush1.msra.mxu0 0.0
    %2644 = vmatprep.subr.mxu0 0.0
    %2645 = vmatpush1.msra.mxu0 0.0
    %2646 = vmatprep.subr.mxu0 0.0
    %2647 = vmatpush1.msra.mxu0 0.0
    %2648 = vmatprep.subr.mxu0 0.0
    %2649 = vmatpush1.msra.mxu0 0.0
    %2650 = vmatprep.subr.mxu0 0.0
    %2651 = vmatpush1.msra.mxu0 0.0
    %2652 = vmatprep.subr.mxu0 0.0
    %2653 = vmatpush1.msra.mxu0 0.0
    %2654 = vmatprep.subr.mxu0 0.0
    %2655 = vmatpush1.msra.mxu0 0.0
    %2656 = vmatprep.subr.mxu0 0.0
    %2657 = vmatpush1.msra.mxu0 0.0
    %2658 = vmatprep.mubr.f32.mxu0 0.0
    %2659 = vmatmul.mubr.f32.gmra.mrb[0].mxu0 %v2580
    %v2660 = vpop.f32.mrb[0].mxu0
    %v2661 = vadd.f32 0.0, %v2660
    %v2662 = vpop.f32.mrb[0].mxu0
    %v2663 = vadd.f32 0.0, %v2662
    %2664 = vdwg.mxu0
    %2665 = vmatprep.subr.mxu0 %v2570
    %2666 = vmatpush1.msra.mxu0 %v2569
    %2667 = vmatprep.subr.mxu0 %v2574
    %2668 = vmatpush1.msra.mxu0 %v2573
    %2669 = vmatprep.subr.mxu0 %v2592
    %2670 = vmatpush1.msra.mxu0 %v2589
    %2671 = vmatprep.subr.mxu0 0.0
    %2672 = vmatpush1.msra.mxu0 0.0
    %2673 = vmatprep.subr.mxu0 0.0
    %2674 = vmatpush1.msra.mxu0 0.0
    %2675 = vmatprep.subr.mxu0 0.0
    %2676 = vmatpush1.msra.mxu0 0.0
    %2677 = vmatprep.subr.mxu0 0.0
    %2678 = vmatpush1.msra.mxu0 0.0
    %2679 = vmatprep.subr.mxu0 0.0
    %2680 = vmatpush1.msra.mxu0 0.0
    %2681 = vmatprep.subr.mxu0 0.0
    %2682 = vmatpush1.msra.mxu0 0.0
    %2683 = vmatprep.subr.mxu0 0.0
    %2684 = vmatpush1.msra.mxu0 0.0
    %2685 = vmatprep.subr.mxu0 0.0
    %2686 = vmatpush1.msra.mxu0 0.0
    %2687 = vmatprep.subr.mxu0 0.0
    %2688 = vmatpush1.msra.mxu0 0.0
    %2689 = vmatprep.subr.mxu0 0.0
    %2690 = vmatpush1.msra.mxu0 0.0
    %2691 = vmatprep.subr.mxu0 0.0
    %2692 = vmatpush1.msra.mxu0 0.0
    %2693 = vmatprep.subr.mxu0 0.0
    %2694 = vmatpush1.msra.mxu0 0.0
    %2695 = vmatprep.subr.mxu0 0.0
    %2696 = vmatpush1.msra.mxu0 0.0
    %2697 = vmatprep.subr.mxu0 0.0
    %2698 = vmatpush1.msra.mxu0 0.0
    %2699 = vmatprep.subr.mxu0 0.0
    %2700 = vmatpush1.msra.mxu0 0.0
    %2701 = vmatprep.subr.mxu0 0.0
    %2702 = vmatpush1.msra.mxu0 0.0
    %2703 = vmatprep.subr.mxu0 0.0
    %2704 = vmatpush1.msra.mxu0 0.0
    %2705 = vmatprep.subr.mxu0 0.0
    %2706 = vmatpush1.msra.mxu0 0.0
    %2707 = vmatprep.subr.mxu0 0.0
    %2708 = vmatpush1.msra.mxu0 0.0
    %2709 = vmatprep.subr.mxu0 0.0
    %2710 = vmatpush1.msra.mxu0 0.0
    %2711 = vmatprep.subr.mxu0 0.0
    %2712 = vmatpush1.msra.mxu0 0.0
    %2713 = vmatprep.subr.mxu0 0.0
    %2714 = vmatpush1.msra.mxu0 0.0
    %2715 = vmatprep.subr.mxu0 0.0
    %2716 = vmatpush1.msra.mxu0 0.0
    %2717 = vmatprep.subr.mxu0 0.0
    %2718 = vmatpush1.msra.mxu0 0.0
    %2719 = vmatprep.subr.mxu0 0.0
    %2720 = vmatpush1.msra.mxu0 0.0
    %2721 = vmatprep.subr.mxu0 0.0
    %2722 = vmatpush1.msra.mxu0 0.0
    %2723 = vmatprep.subr.mxu0 0.0
    %2724 = vmatpush1.msra.mxu0 0.0
    %2725 = vmatprep.subr.mxu0 0.0
    %2726 = vmatpush1.msra.mxu0 0.0
    %2727 = vmatprep.subr.mxu0 0.0
    %2728 = vmatpush1.msra.mxu0 0.0
    %2729 = vmatprep.mubr.f32.mxu0 0.0
    %2730 = vmatmul.mubr.f32.gmra.mrb[0].mxu0 %v2580
    %v2731 = vpop.f32.mrb[0].mxu0
    %v2732 = vadd.f32 0.0, %v2731
    %v2733 = vpop.f32.mrb[0].mxu0
    %v2734 = vadd.f32 0.0, %v2733
    %2735 = vdwg.mxu0
    %v2736 = vadd.f32 %v2563, %v2661
    %v2737 = vadd.f32 %v2564, %v2663
    %v2738 = vadd.f32 %v2565, %v2732
    %v2739 = vadd.f32 %v2566, %v2734
    %v2740 = vld [vmem:[%s7] sm:$0xf]
    %v2742 = vlaneseq
    %v2743 = vshrl.u32 %v2742, 7
    %v2744 = vsub.s32 0, %v2743
    %v2745 = vrot.slane %v2740, %v2744
    %v2746 = vlaneseq
    %v2747 = vshrl.u32 %v2746, 7
    %v2748 = vsub.s32 1, %v2747
    %v2749 = vrot.slane %v2740, %v2748
    %v2750 = vlaneseq
    %v2751 = vshrl.u32 %v2750, 7
    %v2752 = vsub.s32 2, %v2751
    %v2753 = vrot.slane %v2740, %v2752
    %v2754 = vlaneseq
    %v2755 = vshrl.u32 %v2754, 7
    %v2756 = vsub.s32 3, %v2755
    %v2757 = vrot.slane %v2740, %v2756
    %v2762 = vadd.f32 %v2736, %v2745
    %v2763 = vadd.f32 %v2737, %v2749
    %v2764 = vadd.f32 %v2738, %v2753
    %v2765 = vadd.f32 %v2739, %v2757
    %v2766 = vmul.f32 %v2762, 0.5
    %v2767 = vtanh.pop %v2766
    %v2768 = vmul.f32 %v2767, 0.5
    %v2769 = vadd.f32 %v2768, 0.5
    %v2770 = vmul.f32 %v2763, 0.5
    %v2771 = vtanh.pop %v2770
    %v2772 = vmul.f32 %v2771, 0.5
    %v2773 = vadd.f32 %v2772, 0.5
    %v2774 = vtanh.pop %v2764
    %v2775 = vmul.f32 %v2765, 0.5
    %v2776 = vtanh.pop %v2775
    %v2777 = vmul.f32 %v2776, 0.5
    %v2778 = vadd.f32 %v2777, 0.5
    %v2779 = vmul.f32 %v2773, %v2300
    %v2780 = vmul.f32 %v2769, %v2774
    %v2781 = vadd.f32 %v2779, %v2780
    %v2782 = vtanh.pop %v2781
    %v2783 = vmul.f32 %v2778, %v2782
    %2785 = vrot.lane.b32.xlu0 %v2512, 20
    %v2786 = vpop.permute.xlu0 %2785
    %v2788 = vsel %vm171, %v2783, %v2786
    %v2789 = vld [vmem:[#allocation12] sm:$0xff]
    %v2790 = vld [vmem:[#allocation12 + $0x8] sm:$0xff]
    %v2791 = vld [vmem:[#allocation12 + $0x10] sm:$0xff]
    %v2792 = vld [vmem:[#allocation12 + $0x18] sm:$0xff]
    %v2793 = vld [vmem:[#allocation12 + $0x20] sm:$0xff]
    %v2794 = vld [vmem:[#allocation12 + $0x28] sm:$0xff]
    %v2795 = vld [vmem:[#allocation12 + $0x30] sm:$0xff]
    %v2796 = vld [vmem:[#allocation12 + $0x38] sm:$0xff]
    %v2797 = vld [vmem:[#allocation12 + $0x40] sm:$0xff]
    %v2798 = vld [vmem:[#allocation12 + $0x48] sm:$0xff]
    %v2799 = vld [vmem:[#allocation12 + $0x50] sm:$0xff]
    %v2800 = vld [vmem:[#allocation12 + $0x58] sm:$0xff]
    %v2801 = vld [vmem:[#allocation12 + $0x60] sm:$0xff]
    %v2802 = vld [vmem:[#allocation12 + $0x68] sm:$0xff]
    %v2803 = vld [vmem:[#allocation12 + $0x70] sm:$0xff]
    %v2804 = vld [vmem:[#allocation12 + $0x78] sm:$0xff]
    %v2805 = vld [vmem:[#allocation12 + $0x80] sm:$0xff]
    %v2806 = vld [vmem:[#allocation12 + $0x88] sm:$0xff]
    %v2807 = vld [vmem:[#allocation12 + $0x90] sm:$0xff]
    %v2808 = vld [vmem:[#allocation12 + $0x98] sm:$0xff]
    %v2809 = vld [vmem:[%s9] sm:$0xf]
    %v2811 = vlaneseq
    %v2812 = vshrl.u32 %v2811, 7
    %v2813 = vsub.s32 0, %v2812
    %v2814 = vrot.slane %v2809, %v2813
    %v2815 = vlaneseq
    %v2816 = vshrl.u32 %v2815, 7
    %v2817 = vsub.s32 1, %v2816
    %v2818 = vrot.slane %v2809, %v2817
    %v2819 = vlaneseq
    %v2820 = vshrl.u32 %v2819, 7
    %v2821 = vsub.s32 2, %v2820
    %v2822 = vrot.slane %v2809, %v2821
    %v2823 = vlaneseq
    %v2824 = vshrl.u32 %v2823, 7
    %v2825 = vsub.s32 3, %v2824
    %v2826 = vrot.slane %v2809, %v2825
    %v2832 = vsel %vm425, %v2788, 0
    %2834 = vmatprep.subr.mxu0 %v2790
    %2835 = vmatpush1.msra.mxu0 %v2789
    %2836 = vmatprep.subr.mxu0 %v2794
    %2837 = vmatpush1.msra.mxu0 %v2793
    %2838 = vmatprep.subr.mxu0 %v2798
    %2839 = vmatpush1.msra.mxu0 %v2797
    %2840 = vmatprep.subr.mxu0 %v2802
    %2841 = vmatpush1.msra.mxu0 %v2801
    %2842 = vmatprep.subr.mxu0 %v2806
    %2843 = vmatpush1.msra.mxu0 %v2805
    %2844 = vmatprep.subr.mxu0 0.0
    %2845 = vmatpush1.msra.mxu0 0.0
    %2846 = vmatprep.subr.mxu0 0.0
    %2847 = vmatpush1.msra.mxu0 0.0
    %2848 = vmatprep.subr.mxu0 0.0
    %2849 = vmatpush1.msra.mxu0 0.0
    %2850 = vmatprep.subr.mxu0 0.0
    %2851 = vmatpush1.msra.mxu0 0.0
    %2852 = vmatprep.subr.mxu0 0.0
    %2853 = vmatpush1.msra.mxu0 0.0
    %2854 = vmatprep.subr.mxu0 0.0
    %2855 = vmatpush1.msra.mxu0 0.0
    %2856 = vmatprep.subr.mxu0 0.0
    %2857 = vmatpush1.msra.mxu0 0.0
    %2858 = vmatprep.subr.mxu0 0.0
    %2859 = vmatpush1.msra.mxu0 0.0
    %2860 = vmatprep.subr.mxu0 0.0
    %2861 = vmatpush1.msra.mxu0 0.0
    %2862 = vmatprep.subr.mxu0 0.0
    %2863 = vmatpush1.msra.mxu0 0.0
    %2864 = vmatprep.subr.mxu0 0.0
    %2865 = vmatpush1.msra.mxu0 0.0
    %2866 = vmatprep.subr.mxu0 0.0
    %2867 = vmatpush1.msra.mxu0 0.0
    %2868 = vmatprep.subr.mxu0 0.0
    %2869 = vmatpush1.msra.mxu0 0.0
    %2870 = vmatprep.subr.mxu0 0.0
    %2871 = vmatpush1.msra.mxu0 0.0
    %2872 = vmatprep.subr.mxu0 0.0
    %2873 = vmatpush1.msra.mxu0 0.0
    %2874 = vmatprep.subr.mxu0 0.0
    %2875 = vmatpush1.msra.mxu0 0.0
    %2876 = vmatprep.subr.mxu0 0.0
    %2877 = vmatpush1.msra.mxu0 0.0
    %2878 = vmatprep.subr.mxu0 0.0
    %2879 = vmatpush1.msra.mxu0 0.0
    %2880 = vmatprep.subr.mxu0 0.0
    %2881 = vmatpush1.msra.mxu0 0.0
    %2882 = vmatprep.subr.mxu0 0.0
    %2883 = vmatpush1.msra.mxu0 0.0
    %2884 = vmatprep.subr.mxu0 0.0
    %2885 = vmatpush1.msra.mxu0 0.0
    %2886 = vmatprep.subr.mxu0 0.0
    %2887 = vmatpush1.msra.mxu0 0.0
    %2888 = vmatprep.subr.mxu0 0.0
    %2889 = vmatpush1.msra.mxu0 0.0
    %2890 = vmatprep.subr.mxu0 0.0
    %2891 = vmatpush1.msra.mxu0 0.0
    %2892 = vmatprep.subr.mxu0 0.0
    %2893 = vmatpush1.msra.mxu0 0.0
    %2894 = vmatprep.subr.mxu0 0.0
    %2895 = vmatpush1.msra.mxu0 0.0
    %2896 = vmatprep.subr.mxu0 0.0
    %2897 = vmatpush1.msra.mxu0 0.0
    %2898 = vmatprep.mubr.f32.mxu0 0.0
    %2899 = vmatmul.mubr.f32.gmra.mrb[0].mxu0 %v2832
    %v2900 = vpop.f32.mrb[0].mxu0
    %v2901 = vadd.f32 %v2814, %v2900
    %v2902 = vpop.f32.mrb[0].mxu0
    %v2903 = vadd.f32 %v2818, %v2902
    %2904 = vdwg.mxu0
    %2905 = vmatprep.subr.mxu0 %v2792
    %2906 = vmatpush1.msra.mxu0 %v2791
    %2907 = vmatprep.subr.mxu0 %v2796
    %2908 = vmatpush1.msra.mxu0 %v2795
    %2909 = vmatprep.subr.mxu0 %v2800
    %2910 = vmatpush1.msra.mxu0 %v2799
    %2911 = vmatprep.subr.mxu0 %v2804
    %2912 = vmatpush1.msra.mxu0 %v2803
    %2913 = vmatprep.subr.mxu0 %v2808
    %2914 = vmatpush1.msra.mxu0 %v2807
    %2915 = vmatprep.subr.mxu0 0.0
    %2916 = vmatpush1.msra.mxu0 0.0
    %2917 = vmatprep.subr.mxu0 0.0
    %2918 = vmatpush1.msra.mxu0 0.0
    %2919 = vmatprep.subr.mxu0 0.0
    %2920 = vmatpush1.msra.mxu0 0.0
    %2921 = vmatprep.subr.mxu0 0.0
    %2922 = vmatpush1.msra.mxu0 0.0
    %2923 = vmatprep.subr.mxu0 0.0
    %2924 = vmatpush1.msra.mxu0 0.0
    %2925 = vmatprep.subr.mxu0 0.0
    %2926 = vmatpush1.msra.mxu0 0.0
    %2927 = vmatprep.subr.mxu0 0.0
    %2928 = vmatpush1.msra.mxu0 0.0
    %2929 = vmatprep.subr.mxu0 0.0
    %2930 = vmatpush1.msra.mxu0 0.0
    %2931 = vmatprep.subr.mxu0 0.0
    %2932 = vmatpush1.msra.mxu0 0.0
    %2933 = vmatprep.subr.mxu0 0.0
    %2934 = vmatpush1.msra.mxu0 0.0
    %2935 = vmatprep.subr.mxu0 0.0
    %2936 = vmatpush1.msra.mxu0 0.0
    %2937 = vmatprep.subr.mxu0 0.0
    %2938 = vmatpush1.msra.mxu0 0.0
    %2939 = vmatprep.subr.mxu0 0.0
    %2940 = vmatpush1.msra.mxu0 0.0
    %2941 = vmatprep.subr.mxu0 0.0
    %2942 = vmatpush1.msra.mxu0 0.0
    %2943 = vmatprep.subr.mxu0 0.0
    %2944 = vmatpush1.msra.mxu0 0.0
    %2945 = vmatprep.subr.mxu0 0.0
    %2946 = vmatpush1.msra.mxu0 0.0
    %2947 = vmatprep.subr.mxu0 0.0
    %2948 = vmatpush1.msra.mxu0 0.0
    %2949 = vmatprep.subr.mxu0 0.0
    %2950 = vmatpush1.msra.mxu0 0.0
    %2951 = vmatprep.subr.mxu0 0.0
    %2952 = vmatpush1.msra.mxu0 0.0
    %2953 = vmatprep.subr.mxu0 0.0
    %2954 = vmatpush1.msra.mxu0 0.0
    %2955 = vmatprep.subr.mxu0 0.0
    %2956 = vmatpush1.msra.mxu0 0.0
    %2957 = vmatprep.subr.mxu0 0.0
    %2958 = vmatpush1.msra.mxu0 0.0
    %2959 = vmatprep.subr.mxu0 0.0
    %2960 = vmatpush1.msra.mxu0 0.0
    %2961 = vmatprep.subr.mxu0 0.0
    %2962 = vmatpush1.msra.mxu0 0.0
    %2963 = vmatprep.subr.mxu0 0.0
    %2964 = vmatpush1.msra.mxu0 0.0
    %2965 = vmatprep.subr.mxu0 0.0
    %2966 = vmatpush1.msra.mxu0 0.0
    %2967 = vmatprep.subr.mxu0 0.0
    %2968 = vmatpush1.msra.mxu0 0.0
    %2969 = vmatprep.mubr.f32.mxu0 0.0
    %2970 = vmatmul.mubr.f32.gmra.mrb[0].mxu0 %v2832
    %v2971 = vpop.f32.mrb[0].mxu0
    %v2972 = vadd.f32 %v2822, %v2971
    %v2973 = vpop.f32.mrb[0].mxu0
    %v2974 = vadd.f32 %v2826, %v2973
    %2975 = vdwg.mxu0
    %v2976 = vmul.f32 %v2901, 0.5
    %v2977 = vtanh.pop %v2976
    %v2978 = vmul.f32 %v2977, 0.5
    %v2979 = vadd.f32 %v2978, 0.5
    %v2980 = vmul.f32 %v2903, 0.5
    %v2981 = vtanh.pop %v2980
    %v2982 = vmul.f32 %v2981, 0.5
    %v2983 = vadd.f32 %v2982, 0.5
    %v2984 = vtanh.pop %v2972
    %v2985 = vmul.f32 %v2974, 0.5
    %v2986 = vtanh.pop %v2985
    %v2987 = vmul.f32 %v2986, 0.5
    %v2988 = vadd.f32 %v2987, 0.5
    %v2989 = vmul.f32 %v2983, %v2510
    %v2990 = vmul.f32 %v2979, %v2984
    %v2991 = vadd.f32 %v2989, %v2990
    %v2992 = vtanh.pop %v2991
    %v2993 = vmul.f32 %v2988, %v2992
    %v2994 = vld [vmem:[%s10] sm:$0x1]
    %v2996 = vlaneseq
    %v2997 = vshrl.u32 %v2996, 7
    %v2998 = vsub.s32 0, %v2997
    %v2999 = vrot.slane %v2994, %v2998
    %v3001 = vmul.f32 %v2993, %v2999
    %v3002 = vsel %vm171, %v3001, 0.0
    %3003 = vadd.xlane.f32.xlu0 %v3002
    %v3004 = vpop.xlane.xlu0 %3003
    %v3005 = vld [vmem:[#allocation2] sm:$0x1]
    %v3007 = vlaneseq
    %v3008 = vshrl.u32 %v3007, 7
    %v3009 = vsub.s32 0, %v3008
    %v3010 = vrot.slane %v3005, %v3009
    %v3012 = vadd.f32 %v3004, %v3010
    %s3013 = scalar_lea.vmem %s12, 40
    %3014 = vst.msk [vmem:[%s3013] sm:$0xff] %vm608, %v3012
    %s3015 = scalar_lea.vmem %s0, 48
    %v3016 = vld [vmem:[%s3015] sm:$0xff]
    %v3017 = vld [vmem:[#allocation11] sm:$0xf]
    %3019 = vset.pattern.permute.xlu0 0
    %3020 = vperm.xlu0 %3019, %v3016
    %v3021 = vpop.permute.xlu0 %3020
    %v3024 = vlaneseq
    %v3025 = vshrl.u32 %v3024, 7
    %v3026 = vsub.s32 0, %v3025
    %v3027 = vrot.slane %v3017, %v3026
    %v3028 = vlaneseq
    %v3029 = vshrl.u32 %v3028, 7
    %v3030 = vsub.s32 1, %v3029
    %v3031 = vrot.slane %v3017, %v3030
    %v3032 = vlaneseq
    %v3033 = vshrl.u32 %v3032, 7
    %v3034 = vsub.s32 2, %v3033
    %v3035 = vrot.slane %v3017, %v3034
    %v3036 = vlaneseq
    %v3037 = vshrl.u32 %v3036, 7
    %v3038 = vsub.s32 3, %v3037
    %v3039 = vrot.slane %v3017, %v3038
    %v3044 = vmul.f32 %v3021, %v3027
    %v3045 = vmul.f32 %v3021, %v3031
    %v3046 = vmul.f32 %v3021, %v3035
    %v3047 = vmul.f32 %v3021, %v3039
    %v3048 = vld [vmem:[%s6] sm:$0xff]
    %v3049 = vld [vmem:[%s6 + $0x8] sm:$0xff]
    %v3050 = vld [vmem:[%s6 + $0x10] sm:$0xff]
    %v3051 = vld [vmem:[%s6 + $0x18] sm:$0xff]
    %v3052 = vld [vmem:[%s6 + $0x20] sm:$0xff]
    %v3053 = vld [vmem:[%s6 + $0x28] sm:$0xff]
    %v3054 = vld [vmem:[%s6 + $0x30] sm:$0xff]
    %v3055 = vld [vmem:[%s6 + $0x38] sm:$0xff]
    %v3056 = vld [vmem:[%s6 + $0x40] sm:$0xf]
    %v3057 = vld [vmem:[%s6 + $0x48] sm:$0xf]
    %v3058 = vld [vmem:[%s6 + $0x50] sm:$0xf]
    %v3059 = vld [vmem:[%s6 + $0x58] sm:$0xf]
    %v3061 = vsel %vm171, %v2783, 0
    %v3064 = vsel %vm175, %v3056, 0
    %v3067 = vsel %vm175, %v3057, 0
    %v3070 = vsel %vm175, %v3058, 0
    %v3073 = vsel %vm175, %v3059, 0
    %3075 = vmatprep.subr.mxu0 %v3049
    %3076 = vmatpush1.msra.mxu0 %v3048
    %3077 = vmatprep.subr.mxu0 %v3053
    %3078 = vmatpush1.msra.mxu0 %v3052
    %3079 = vmatprep.subr.mxu0 %v3067
    %3080 = vmatpush1.msra.mxu0 %v3064
    %3081 = vmatprep.subr.mxu0 0.0
    %3082 = vmatpush1.msra.mxu0 0.0
    %3083 = vmatprep.subr.mxu0 0.0
    %3084 = vmatpush1.msra.mxu0 0.0
    %3085 = vmatprep.subr.mxu0 0.0
    %3086 = vmatpush1.msra.mxu0 0.0
    %3087 = vmatprep.subr.mxu0 0.0
    %3088 = vmatpush1.msra.mxu0 0.0
    %3089 = vmatprep.subr.mxu0 0.0
    %3090 = vmatpush1.msra.mxu0 0.0
    %3091 = vmatprep.subr.mxu0 0.0
    %3092 = vmatpush1.msra.mxu0 0.0
    %3093 = vmatprep.subr.mxu0 0.0
    %3094 = vmatpush1.msra.mxu0 0.0
    %3095 = vmatprep.subr.mxu0 0.0
    %3096 = vmatpush1.msra.mxu0 0.0
    %3097 = vmatprep.subr.mxu0 0.0
    %3098 = vmatpush1.msra.mxu0 0.0
    %3099 = vmatprep.subr.mxu0 0.0
    %3100 = vmatpush1.msra.mxu0 0.0
    %3101 = vmatprep.subr.mxu0 0.0
    %3102 = vmatpush1.msra.mxu0 0.0
    %3103 = vmatprep.subr.mxu0 0.0
    %3104 = vmatpush1.msra.mxu0 0.0
    %3105 = vmatprep.subr.mxu0 0.0
    %3106 = vmatpush1.msra.mxu0 0.0
    %3107 = vmatprep.subr.mxu0 0.0
    %3108 = vmatpush1.msra.mxu0 0.0
    %3109 = vmatprep.subr.mxu0 0.0
    %3110 = vmatpush1.msra.mxu0 0.0
    %3111 = vmatprep.subr.mxu0 0.0
    %3112 = vmatpush1.msra.mxu0 0.0
    %3113 = vmatprep.subr.mxu0 0.0
    %3114 = vmatpush1.msra.mxu0 0.0
    %3115 = vmatprep.subr.mxu0 0.0
    %3116 = vmatpush1.msra.mxu0 0.0
    %3117 = vmatprep.subr.mxu0 0.0
    %3118 = vmatpush1.msra.mxu0 0.0
    %3119 = vmatprep.subr.mxu0 0.0
    %3120 = vmatpush1.msra.mxu0 0.0
    %3121 = vmatprep.subr.mxu0 0.0
    %3122 = vmatpush1.msra.mxu0 0.0
    %3123 = vmatprep.subr.mxu0 0.0
    %3124 = vmatpush1.msra.mxu0 0.0
    %3125 = vmatprep.subr.mxu0 0.0
    %3126 = vmatpush1.msra.mxu0 0.0
    %3127 = vmatprep.subr.mxu0 0.0
    %3128 = vmatpush1.msra.mxu0 0.0
    %3129 = vmatprep.subr.mxu0 0.0
    %3130 = vmatpush1.msra.mxu0 0.0
    %3131 = vmatprep.subr.mxu0 0.0
    %3132 = vmatpush1.msra.mxu0 0.0
    %3133 = vmatprep.subr.mxu0 0.0
    %3134 = vmatpush1.msra.mxu0 0.0
    %3135 = vmatprep.subr.mxu0 0.0
    %3136 = vmatpush1.msra.mxu0 0.0
    %3137 = vmatprep.subr.mxu0 0.0
    %3138 = vmatpush1.msra.mxu0 0.0
    %3139 = vmatprep.mubr.f32.mxu0 0.0
    %3140 = vmatmul.mubr.f32.gmra.mrb[0].mxu0 %v3061
    %v3141 = vpop.f32.mrb[0].mxu0
    %v3142 = vadd.f32 0.0, %v3141
    %v3143 = vpop.f32.mrb[0].mxu0
    %v3144 = vadd.f32 0.0, %v3143
    %3145 = vdwg.mxu0
    %3146 = vmatprep.subr.mxu0 %v3051
    %3147 = vmatpush1.msra.mxu0 %v3050
    %3148 = vmatprep.subr.mxu0 %v3055
    %3149 = vmatpush1.msra.mxu0 %v3054
    %3150 = vmatprep.subr.mxu0 %v3073
    %3151 = vmatpush1.msra.mxu0 %v3070
    %3152 = vmatprep.subr.mxu0 0.0
    %3153 = vmatpush1.msra.mxu0 0.0
    %3154 = vmatprep.subr.mxu0 0.0
    %3155 = vmatpush1.msra.mxu0 0.0
    %3156 = vmatprep.subr.mxu0 0.0
    %3157 = vmatpush1.msra.mxu0 0.0
    %3158 = vmatprep.subr.mxu0 0.0
    %3159 = vmatpush1.msra.mxu0 0.0
    %3160 = vmatprep.subr.mxu0 0.0
    %3161 = vmatpush1.msra.mxu0 0.0
    %3162 = vmatprep.subr.mxu0 0.0
    %3163 = vmatpush1.msra.mxu0 0.0
    %3164 = vmatprep.subr.mxu0 0.0
    %3165 = vmatpush1.msra.mxu0 0.0
    %3166 = vmatprep.subr.mxu0 0.0
    %3167 = vmatpush1.msra.mxu0 0.0
    %3168 = vmatprep.subr.mxu0 0.0
    %3169 = vmatpush1.msra.mxu0 0.0
    %3170 = vmatprep.subr.mxu0 0.0
    %3171 = vmatpush1.msra.mxu0 0.0
    %3172 = vmatprep.subr.mxu0 0.0
    %3173 = vmatpush1.msra.mxu0 0.0
    %3174 = vmatprep.subr.mxu0 0.0
    %3175 = vmatpush1.msra.mxu0 0.0
    %3176 = vmatprep.subr.mxu0 0.0
    %3177 = vmatpush1.msra.mxu0 0.0
    %3178 = vmatprep.subr.mxu0 0.0
    %3179 = vmatpush1.msra.mxu0 0.0
    %3180 = vmatprep.subr.mxu0 0.0
    %3181 = vmatpush1.msra.mxu0 0.0
    %3182 = vmatprep.subr.mxu0 0.0
    %3183 = vmatpush1.msra.mxu0 0.0
    %3184 = vmatprep.subr.mxu0 0.0
    %3185 = vmatpush1.msra.mxu0 0.0
    %3186 = vmatprep.subr.mxu0 0.0
    %3187 = vmatpush1.msra.mxu0 0.0
    %3188 = vmatprep.subr.mxu0 0.0
    %3189 = vmatpush1.msra.mxu0 0.0
    %3190 = vmatprep.subr.mxu0 0.0
    %3191 = vmatpush1.msra.mxu0 0.0
    %3192 = vmatprep.subr.mxu0 0.0
    %3193 = vmatpush1.msra.mxu0 0.0
    %3194 = vmatprep.subr.mxu0 0.0
    %3195 = vmatpush1.msra.mxu0 0.0
    %3196 = vmatprep.subr.mxu0 0.0
    %3197 = vmatpush1.msra.mxu0 0.0
    %3198 = vmatprep.subr.mxu0 0.0
    %3199 = vmatpush1.msra.mxu0 0.0
    %3200 = vmatprep.subr.mxu0 0.0
    %3201 = vmatpush1.msra.mxu0 0.0
    %3202 = vmatprep.subr.mxu0 0.0
    %3203 = vmatpush1.msra.mxu0 0.0
    %3204 = vmatprep.subr.mxu0 0.0
    %3205 = vmatpush1.msra.mxu0 0.0
    %3206 = vmatprep.subr.mxu0 0.0
    %3207 = vmatpush1.msra.mxu0 0.0
    %3208 = vmatprep.subr.mxu0 0.0
    %3209 = vmatpush1.msra.mxu0 0.0
    %3210 = vmatprep.mubr.f32.mxu0 0.0
    %3211 = vmatmul.mubr.f32.gmra.mrb[0].mxu0 %v3061
    %v3212 = vpop.f32.mrb[0].mxu0
    %v3213 = vadd.f32 0.0, %v3212
    %v3214 = vpop.f32.mrb[0].mxu0
    %v3215 = vadd.f32 0.0, %v3214
    %3216 = vdwg.mxu0
    %v3217 = vadd.f32 %v3044, %v3142
    %v3218 = vadd.f32 %v3045, %v3144
    %v3219 = vadd.f32 %v3046, %v3213
    %v3220 = vadd.f32 %v3047, %v3215
    %v3221 = vld [vmem:[%s7] sm:$0xf]
    %v3223 = vlaneseq
    %v3224 = vshrl.u32 %v3223, 7
    %v3225 = vsub.s32 0, %v3224
    %v3226 = vrot.slane %v3221, %v3225
    %v3227 = vlaneseq
    %v3228 = vshrl.u32 %v3227, 7
    %v3229 = vsub.s32 1, %v3228
    %v3230 = vrot.slane %v3221, %v3229
    %v3231 = vlaneseq
    %v3232 = vshrl.u32 %v3231, 7
    %v3233 = vsub.s32 2, %v3232
    %v3234 = vrot.slane %v3221, %v3233
    %v3235 = vlaneseq
    %v3236 = vshrl.u32 %v3235, 7
    %v3237 = vsub.s32 3, %v3236
    %v3238 = vrot.slane %v3221, %v3237
    %v3243 = vadd.f32 %v3217, %v3226
    %v3244 = vadd.f32 %v3218, %v3230
    %v3245 = vadd.f32 %v3219, %v3234
    %v3246 = vadd.f32 %v3220, %v3238
    %v3247 = vmul.f32 %v3243, 0.5
    %v3248 = vtanh.pop %v3247
    %v3249 = vmul.f32 %v3248, 0.5
    %v3250 = vadd.f32 %v3249, 0.5
    %v3251 = vmul.f32 %v3244, 0.5
    %v3252 = vtanh.pop %v3251
    %v3253 = vmul.f32 %v3252, 0.5
    %v3254 = vadd.f32 %v3253, 0.5
    %v3255 = vtanh.pop %v3245
    %v3256 = vmul.f32 %v3246, 0.5
    %v3257 = vtanh.pop %v3256
    %v3258 = vmul.f32 %v3257, 0.5
    %v3259 = vadd.f32 %v3258, 0.5
    %v3260 = vmul.f32 %v3254, %v2781
    %v3261 = vmul.f32 %v3250, %v3255
    %v3262 = vadd.f32 %v3260, %v3261
    %v3263 = vtanh.pop %v3262
    %v3264 = vmul.f32 %v3259, %v3263
    %3266 = vrot.lane.b32.xlu0 %v2993, 20
    %v3267 = vpop.permute.xlu0 %3266
    %v3269 = vsel %vm171, %v3264, %v3267
    %v3270 = vld [vmem:[#allocation12] sm:$0xff]
    %v3271 = vld [vmem:[#allocation12 + $0x8] sm:$0xff]
    %v3272 = vld [vmem:[#allocation12 + $0x10] sm:$0xff]
    %v3273 = vld [vmem:[#allocation12 + $0x18] sm:$0xff]
    %v3274 = vld [vmem:[#allocation12 + $0x20] sm:$0xff]
    %v3275 = vld [vmem:[#allocation12 + $0x28] sm:$0xff]
    %v3276 = vld [vmem:[#allocation12 + $0x30] sm:$0xff]
    %v3277 = vld [vmem:[#allocation12 + $0x38] sm:$0xff]
    %v3278 = vld [vmem:[#allocation12 + $0x40] sm:$0xff]
    %v3279 = vld [vmem:[#allocation12 + $0x48] sm:$0xff]
    %v3280 = vld [vmem:[#allocation12 + $0x50] sm:$0xff]
    %v3281 = vld [vmem:[#allocation12 + $0x58] sm:$0xff]
    %v3282 = vld [vmem:[#allocation12 + $0x60] sm:$0xff]
    %v3283 = vld [vmem:[#allocation12 + $0x68] sm:$0xff]
    %v3284 = vld [vmem:[#allocation12 + $0x70] sm:$0xff]
    %v3285 = vld [vmem:[#allocation12 + $0x78] sm:$0xff]
    %v3286 = vld [vmem:[#allocation12 + $0x80] sm:$0xff]
    %v3287 = vld [vmem:[#allocation12 + $0x88] sm:$0xff]
    %v3288 = vld [vmem:[#allocation12 + $0x90] sm:$0xff]
    %v3289 = vld [vmem:[#allocation12 + $0x98] sm:$0xff]
    %v3290 = vld [vmem:[%s9] sm:$0xf]
    %v3292 = vlaneseq
    %v3293 = vshrl.u32 %v3292, 7
    %v3294 = vsub.s32 0, %v3293
    %v3295 = vrot.slane %v3290, %v3294
    %v3296 = vlaneseq
    %v3297 = vshrl.u32 %v3296, 7
    %v3298 = vsub.s32 1, %v3297
    %v3299 = vrot.slane %v3290, %v3298
    %v3300 = vlaneseq
    %v3301 = vshrl.u32 %v3300, 7
    %v3302 = vsub.s32 2, %v3301
    %v3303 = vrot.slane %v3290, %v3302
    %v3304 = vlaneseq
    %v3305 = vshrl.u32 %v3304, 7
    %v3306 = vsub.s32 3, %v3305
    %v3307 = vrot.slane %v3290, %v3306
    %v3313 = vsel %vm425, %v3269, 0
    %3315 = vmatprep.subr.mxu0 %v3271
    %3316 = vmatpush1.msra.mxu0 %v3270
    %3317 = vmatprep.subr.mxu0 %v3275
    %3318 = vmatpush1.msra.mxu0 %v3274
    %3319 = vmatprep.subr.mxu0 %v3279
    %3320 = vmatpush1.msra.mxu0 %v3278
    %3321 = vmatprep.subr.mxu0 %v3283
    %3322 = vmatpush1.msra.mxu0 %v3282
    %3323 = vmatprep.subr.mxu0 %v3287
    %3324 = vmatpush1.msra.mxu0 %v3286
    %3325 = vmatprep.subr.mxu0 0.0
    %3326 = vmatpush1.msra.mxu0 0.0
    %3327 = vmatprep.subr.mxu0 0.0
    %3328 = vmatpush1.msra.mxu0 0.0
    %3329 = vmatprep.subr.mxu0 0.0
    %3330 = vmatpush1.msra.mxu0 0.0
    %3331 = vmatprep.subr.mxu0 0.0
    %3332 = vmatpush1.msra.mxu0 0.0
    %3333 = vmatprep.subr.mxu0 0.0
    %3334 = vmatpush1.msra.mxu0 0.0
    %3335 = vmatprep.subr.mxu0 0.0
    %3336 = vmatpush1.msra.mxu0 0.0
    %3337 = vmatprep.subr.mxu0 0.0
    %3338 = vmatpush1.msra.mxu0 0.0
    %3339 = vmatprep.subr.mxu0 0.0
    %3340 = vmatpush1.msra.mxu0 0.0
    %3341 = vmatprep.subr.mxu0 0.0
    %3342 = vmatpush1.msra.mxu0 0.0
    %3343 = vmatprep.subr.mxu0 0.0
    %3344 = vmatpush1.msra.mxu0 0.0
    %3345 = vmatprep.subr.mxu0 0.0
    %3346 = vmatpush1.msra.mxu0 0.0
    %3347 = vmatprep.subr.mxu0 0.0
    %3348 = vmatpush1.msra.mxu0 0.0
    %3349 = vmatprep.subr.mxu0 0.0
    %3350 = vmatpush1.msra.mxu0 0.0
    %3351 = vmatprep.subr.mxu0 0.0
    %3352 = vmatpush1.msra.mxu0 0.0
    %3353 = vmatprep.subr.mxu0 0.0
    %3354 = vmatpush1.msra.mxu0 0.0
    %3355 = vmatprep.subr.mxu0 0.0
    %3356 = vmatpush1.msra.mxu0 0.0
    %3357 = vmatprep.subr.mxu0 0.0
    %3358 = vmatpush1.msra.mxu0 0.0
    %3359 = vmatprep.subr.mxu0 0.0
    %3360 = vmatpush1.msra.mxu0 0.0
    %3361 = vmatprep.subr.mxu0 0.0
    %3362 = vmatpush1.msra.mxu0 0.0
    %3363 = vmatprep.subr.mxu0 0.0
    %3364 = vmatpush1.msra.mxu0 0.0
    %3365 = vmatprep.subr.mxu0 0.0
    %3366 = vmatpush1.msra.mxu0 0.0
    %3367 = vmatprep.subr.mxu0 0.0
    %3368 = vmatpush1.msra.mxu0 0.0
    %3369 = vmatprep.subr.mxu0 0.0
    %3370 = vmatpush1.msra.mxu0 0.0
    %3371 = vmatprep.subr.mxu0 0.0
    %3372 = vmatpush1.msra.mxu0 0.0
    %3373 = vmatprep.subr.mxu0 0.0
    %3374 = vmatpush1.msra.mxu0 0.0
    %3375 = vmatprep.subr.mxu0 0.0
    %3376 = vmatpush1.msra.mxu0 0.0
    %3377 = vmatprep.subr.mxu0 0.0
    %3378 = vmatpush1.msra.mxu0 0.0
    %3379 = vmatprep.mubr.f32.mxu0 0.0
    %3380 = vmatmul.mubr.f32.gmra.mrb[0].mxu0 %v3313
    %v3381 = vpop.f32.mrb[0].mxu0
    %v3382 = vadd.f32 %v3295, %v3381
    %v3383 = vpop.f32.mrb[0].mxu0
    %v3384 = vadd.f32 %v3299, %v3383
    %3385 = vdwg.mxu0
    %3386 = vmatprep.subr.mxu0 %v3273
    %3387 = vmatpush1.msra.mxu0 %v3272
    %3388 = vmatprep.subr.mxu0 %v3277
    %3389 = vmatpush1.msra.mxu0 %v3276
    %3390 = vmatprep.subr.mxu0 %v3281
    %3391 = vmatpush1.msra.mxu0 %v3280
    %3392 = vmatprep.subr.mxu0 %v3285
    %3393 = vmatpush1.msra.mxu0 %v3284
    %3394 = vmatprep.subr.mxu0 %v3289
    %3395 = vmatpush1.msra.mxu0 %v3288
    %3396 = vmatprep.subr.mxu0 0.0
    %3397 = vmatpush1.msra.mxu0 0.0
    %3398 = vmatprep.subr.mxu0 0.0
    %3399 = vmatpush1.msra.mxu0 0.0
    %3400 = vmatprep.subr.mxu0 0.0
    %3401 = vmatpush1.msra.mxu0 0.0
    %3402 = vmatprep.subr.mxu0 0.0
    %3403 = vmatpush1.msra.mxu0 0.0
    %3404 = vmatprep.subr.mxu0 0.0
    %3405 = vmatpush1.msra.mxu0 0.0
    %3406 = vmatprep.subr.mxu0 0.0
    %3407 = vmatpush1.msra.mxu0 0.0
    %3408 = vmatprep.subr.mxu0 0.0
    %3409 = vmatpush1.msra.mxu0 0.0
    %3410 = vmatprep.subr.mxu0 0.0
    %3411 = vmatpush1.msra.mxu0 0.0
    %3412 = vmatprep.subr.mxu0 0.0
    %3413 = vmatpush1.msra.mxu0 0.0
    %3414 = vmatprep.subr.mxu0 0.0
    %3415 = vmatpush1.msra.mxu0 0.0
    %3416 = vmatprep.subr.mxu0 0.0
    %3417 = vmatpush1.msra.mxu0 0.0
    %3418 = vmatprep.subr.mxu0 0.0
    %3419 = vmatpush1.msra.mxu0 0.0
    %3420 = vmatprep.subr.mxu0 0.0
    %3421 = vmatpush1.msra.mxu0 0.0
    %3422 = vmatprep.subr.mxu0 0.0
    %3423 = vmatpush1.msra.mxu0 0.0
    %3424 = vmatprep.subr.mxu0 0.0
    %3425 = vmatpush1.msra.mxu0 0.0
    %3426 = vmatprep.subr.mxu0 0.0
    %3427 = vmatpush1.msra.mxu0 0.0
    %3428 = vmatprep.subr.mxu0 0.0
    %3429 = vmatpush1.msra.mxu0 0.0
    %3430 = vmatprep.subr.mxu0 0.0
    %3431 = vmatpush1.msra.mxu0 0.0
    %3432 = vmatprep.subr.mxu0 0.0
    %3433 = vmatpush1.msra.mxu0 0.0
    %3434 = vmatprep.subr.mxu0 0.0
    %3435 = vmatpush1.msra.mxu0 0.0
    %3436 = vmatprep.subr.mxu0 0.0
    %3437 = vmatpush1.msra.mxu0 0.0
    %3438 = vmatprep.subr.mxu0 0.0
    %3439 = vmatpush1.msra.mxu0 0.0
    %3440 = vmatprep.subr.mxu0 0.0
    %3441 = vmatpush1.msra.mxu0 0.0
    %3442 = vmatprep.subr.mxu0 0.0
    %3443 = vmatpush1.msra.mxu0 0.0
    %3444 = vmatprep.subr.mxu0 0.0
    %3445 = vmatpush1.msra.mxu0 0.0
    %3446 = vmatprep.subr.mxu0 0.0
    %3447 = vmatpush1.msra.mxu0 0.0
    %3448 = vmatprep.subr.mxu0 0.0
    %3449 = vmatpush1.msra.mxu0 0.0
    %3450 = vmatprep.mubr.f32.mxu0 0.0
    %3451 = vmatmul.mubr.f32.gmra.mrb[0].mxu0 %v3313
    %v3452 = vpop.f32.mrb[0].mxu0
    %v3453 = vadd.f32 %v3303, %v3452
    %v3454 = vpop.f32.mrb[0].mxu0
    %v3455 = vadd.f32 %v3307, %v3454
    %3456 = vdwg.mxu0
    %v3457 = vmul.f32 %v3382, 0.5
    %v3458 = vtanh.pop %v3457
    %v3459 = vmul.f32 %v3458, 0.5
    %v3460 = vadd.f32 %v3459, 0.5
    %v3461 = vmul.f32 %v3384, 0.5
    %v3462 = vtanh.pop %v3461
    %v3463 = vmul.f32 %v3462, 0.5
    %v3464 = vadd.f32 %v3463, 0.5
    %v3465 = vtanh.pop %v3453
    %v3466 = vmul.f32 %v3455, 0.5
    %v3467 = vtanh.pop %v3466
    %v3468 = vmul.f32 %v3467, 0.5
    %v3469 = vadd.f32 %v3468, 0.5
    %v3470 = vmul.f32 %v3464, %v2991
    %v3471 = vmul.f32 %v3460, %v3465
    %v3472 = vadd.f32 %v3470, %v3471
    %v3473 = vtanh.pop %v3472
    %v3474 = vmul.f32 %v3469, %v3473
    %v3475 = vld [vmem:[%s10] sm:$0x1]
    %v3477 = vlaneseq
    %v3478 = vshrl.u32 %v3477, 7
    %v3479 = vsub.s32 0, %v3478
    %v3480 = vrot.slane %v3475, %v3479
    %v3482 = vmul.f32 %v3474, %v3480
    %v3483 = vsel %vm171, %v3482, 0.0
    %3484 = vadd.xlane.f32.xlu0 %v3483
    %v3485 = vpop.xlane.xlu0 %3484
    %v3486 = vld [vmem:[#allocation2] sm:$0x1]
    %v3488 = vlaneseq
    %v3489 = vshrl.u32 %v3488, 7
    %v3490 = vsub.s32 0, %v3489
    %v3491 = vrot.slane %v3486, %v3490
    %v3493 = vadd.f32 %v3485, %v3491
    %s3494 = scalar_lea.vmem %s12, 48
    %3495 = vst.msk [vmem:[%s3494] sm:$0xff] %vm608, %v3493
    %s3496 = scalar_lea.vmem %s0, 56
    %v3497 = vld [vmem:[%s3496] sm:$0xff]
    %v3498 = vld [vmem:[#allocation11] sm:$0xf]
    %3500 = vset.pattern.permute.xlu0 0
    %3501 = vperm.xlu0 %3500, %v3497
    %v3502 = vpop.permute.xlu0 %3501
    %v3505 = vlaneseq
    %v3506 = vshrl.u32 %v3505, 7
    %v3507 = vsub.s32 0, %v3506
    %v3508 = vrot.slane %v3498, %v3507
    %v3509 = vlaneseq
    %v3510 = vshrl.u32 %v3509, 7
    %v3511 = vsub.s32 1, %v3510
    %v3512 = vrot.slane %v3498, %v3511
    %v3513 = vlaneseq
    %v3514 = vshrl.u32 %v3513, 7
    %v3515 = vsub.s32 2, %v3514
    %v3516 = vrot.slane %v3498, %v3515
    %v3517 = vlaneseq
    %v3518 = vshrl.u32 %v3517, 7
    %v3519 = vsub.s32 3, %v3518
    %v3520 = vrot.slane %v3498, %v3519
    %v3525 = vmul.f32 %v3502, %v3508
    %v3526 = vmul.f32 %v3502, %v3512
    %v3527 = vmul.f32 %v3502, %v3516
    %v3528 = vmul.f32 %v3502, %v3520
    %v3529 = vld [vmem:[%s6] sm:$0xff]
    %v3530 = vld [vmem:[%s6 + $0x8] sm:$0xff]
    %v3531 = vld [vmem:[%s6 + $0x10] sm:$0xff]
    %v3532 = vld [vmem:[%s6 + $0x18] sm:$0xff]
    %v3533 = vld [vmem:[%s6 + $0x20] sm:$0xff]
    %v3534 = vld [vmem:[%s6 + $0x28] sm:$0xff]
    %v3535 = vld [vmem:[%s6 + $0x30] sm:$0xff]
    %v3536 = vld [vmem:[%s6 + $0x38] sm:$0xff]
    %v3537 = vld [vmem:[%s6 + $0x40] sm:$0xf]
    %v3538 = vld [vmem:[%s6 + $0x48] sm:$0xf]
    %v3539 = vld [vmem:[%s6 + $0x50] sm:$0xf]
    %v3540 = vld [vmem:[%s6 + $0x58] sm:$0xf]
    %v3542 = vsel %vm171, %v3264, 0
    %v3545 = vsel %vm175, %v3537, 0
    %v3548 = vsel %vm175, %v3538, 0
    %v3551 = vsel %vm175, %v3539, 0
    %v3554 = vsel %vm175, %v3540, 0
    %3556 = vmatprep.subr.mxu0 %v3530
    %3557 = vmatpush1.msra.mxu0 %v3529
    %3558 = vmatprep.subr.mxu0 %v3534
    %3559 = vmatpush1.msra.mxu0 %v3533
    %3560 = vmatprep.subr.mxu0 %v3548
    %3561 = vmatpush1.msra.mxu0 %v3545
    %3562 = vmatprep.subr.mxu0 0.0
    %3563 = vmatpush1.msra.mxu0 0.0
    %3564 = vmatprep.subr.mxu0 0.0
    %3565 = vmatpush1.msra.mxu0 0.0
    %3566 = vmatprep.subr.mxu0 0.0
    %3567 = vmatpush1.msra.mxu0 0.0
    %3568 = vmatprep.subr.mxu0 0.0
    %3569 = vmatpush1.msra.mxu0 0.0
    %3570 = vmatprep.subr.mxu0 0.0
    %3571 = vmatpush1.msra.mxu0 0.0
    %3572 = vmatprep.subr.mxu0 0.0
    %3573 = vmatpush1.msra.mxu0 0.0
    %3574 = vmatprep.subr.mxu0 0.0
    %3575 = vmatpush1.msra.mxu0 0.0
    %3576 = vmatprep.subr.mxu0 0.0
    %3577 = vmatpush1.msra.mxu0 0.0
    %3578 = vmatprep.subr.mxu0 0.0
    %3579 = vmatpush1.msra.mxu0 0.0
    %3580 = vmatprep.subr.mxu0 0.0
    %3581 = vmatpush1.msra.mxu0 0.0
    %3582 = vmatprep.subr.mxu0 0.0
    %3583 = vmatpush1.msra.mxu0 0.0
    %3584 = vmatprep.subr.mxu0 0.0
    %3585 = vmatpush1.msra.mxu0 0.0
    %3586 = vmatprep.subr.mxu0 0.0
    %3587 = vmatpush1.msra.mxu0 0.0
    %3588 = vmatprep.subr.mxu0 0.0
    %3589 = vmatpush1.msra.mxu0 0.0
    %3590 = vmatprep.subr.mxu0 0.0
    %3591 = vmatpush1.msra.mxu0 0.0
    %3592 = vmatprep.subr.mxu0 0.0
    %3593 = vmatpush1.msra.mxu0 0.0
    %3594 = vmatprep.subr.mxu0 0.0
    %3595 = vmatpush1.msra.mxu0 0.0
    %3596 = vmatprep.subr.mxu0 0.0
    %3597 = vmatpush1.msra.mxu0 0.0
    %3598 = vmatprep.subr.mxu0 0.0
    %3599 = vmatpush1.msra.mxu0 0.0
    %3600 = vmatprep.subr.mxu0 0.0
    %3601 = vmatpush1.msra.mxu0 0.0
    %3602 = vmatprep.subr.mxu0 0.0
    %3603 = vmatpush1.msra.mxu0 0.0
    %3604 = vmatprep.subr.mxu0 0.0
    %3605 = vmatpush1.msra.mxu0 0.0
    %3606 = vmatprep.subr.mxu0 0.0
    %3607 = vmatpush1.msra.mxu0 0.0
    %3608 = vmatprep.subr.mxu0 0.0
    %3609 = vmatpush1.msra.mxu0 0.0
    %3610 = vmatprep.subr.mxu0 0.0
    %3611 = vmatpush1.msra.mxu0 0.0
    %3612 = vmatprep.subr.mxu0 0.0
    %3613 = vmatpush1.msra.mxu0 0.0
    %3614 = vmatprep.subr.mxu0 0.0
    %3615 = vmatpush1.msra.mxu0 0.0
    %3616 = vmatprep.subr.mxu0 0.0
    %3617 = vmatpush1.msra.mxu0 0.0
    %3618 = vmatprep.subr.mxu0 0.0
    %3619 = vmatpush1.msra.mxu0 0.0
    %3620 = vmatprep.mubr.f32.mxu0 0.0
    %3621 = vmatmul.mubr.f32.gmra.mrb[0].mxu0 %v3542
    %v3622 = vpop.f32.mrb[0].mxu0
    %v3623 = vadd.f32 0.0, %v3622
    %v3624 = vpop.f32.mrb[0].mxu0
    %v3625 = vadd.f32 0.0, %v3624
    %3626 = vdwg.mxu0
    %3627 = vmatprep.subr.mxu0 %v3532
    %3628 = vmatpush1.msra.mxu0 %v3531
    %3629 = vmatprep.subr.mxu0 %v3536
    %3630 = vmatpush1.msra.mxu0 %v3535
    %3631 = vmatprep.subr.mxu0 %v3554
    %3632 = vmatpush1.msra.mxu0 %v3551
    %3633 = vmatprep.subr.mxu0 0.0
    %3634 = vmatpush1.msra.mxu0 0.0
    %3635 = vmatprep.subr.mxu0 0.0
    %3636 = vmatpush1.msra.mxu0 0.0
    %3637 = vmatprep.subr.mxu0 0.0
    %3638 = vmatpush1.msra.mxu0 0.0
    %3639 = vmatprep.subr.mxu0 0.0
    %3640 = vmatpush1.msra.mxu0 0.0
    %3641 = vmatprep.subr.mxu0 0.0
    %3642 = vmatpush1.msra.mxu0 0.0
    %3643 = vmatprep.subr.mxu0 0.0
    %3644 = vmatpush1.msra.mxu0 0.0
    %3645 = vmatprep.subr.mxu0 0.0
    %3646 = vmatpush1.msra.mxu0 0.0
    %3647 = vmatprep.subr.mxu0 0.0
    %3648 = vmatpush1.msra.mxu0 0.0
    %3649 = vmatprep.subr.mxu0 0.0
    %3650 = vmatpush1.msra.mxu0 0.0
    %3651 = vmatprep.subr.mxu0 0.0
    %3652 = vmatpush1.msra.mxu0 0.0
    %3653 = vmatprep.subr.mxu0 0.0
    %3654 = vmatpush1.msra.mxu0 0.0
    %3655 = vmatprep.subr.mxu0 0.0
    %3656 = vmatpush1.msra.mxu0 0.0
    %3657 = vmatprep.subr.mxu0 0.0
    %3658 = vmatpush1.msra.mxu0 0.0
    %3659 = vmatprep.subr.mxu0 0.0
    %3660 = vmatpush1.msra.mxu0 0.0
    %3661 = vmatprep.subr.mxu0 0.0
    %3662 = vmatpush1.msra.mxu0 0.0
    %3663 = vmatprep.subr.mxu0 0.0
    %3664 = vmatpush1.msra.mxu0 0.0
    %3665 = vmatprep.subr.mxu0 0.0
    %3666 = vmatpush1.msra.mxu0 0.0
    %3667 = vmatprep.subr.mxu0 0.0
    %3668 = vmatpush1.msra.mxu0 0.0
    %3669 = vmatprep.subr.mxu0 0.0
    %3670 = vmatpush1.msra.mxu0 0.0
    %3671 = vmatprep.subr.mxu0 0.0
    %3672 = vmatpush1.msra.mxu0 0.0
    %3673 = vmatprep.subr.mxu0 0.0
    %3674 = vmatpush1.msra.mxu0 0.0
    %3675 = vmatprep.subr.mxu0 0.0
    %3676 = vmatpush1.msra.mxu0 0.0
    %3677 = vmatprep.subr.mxu0 0.0
    %3678 = vmatpush1.msra.mxu0 0.0
    %3679 = vmatprep.subr.mxu0 0.0
    %3680 = vmatpush1.msra.mxu0 0.0
    %3681 = vmatprep.subr.mxu0 0.0
    %3682 = vmatpush1.msra.mxu0 0.0
    %3683 = vmatprep.subr.mxu0 0.0
    %3684 = vmatpush1.msra.mxu0 0.0
    %3685 = vmatprep.subr.mxu0 0.0
    %3686 = vmatpush1.msra.mxu0 0.0
    %3687 = vmatprep.subr.mxu0 0.0
    %3688 = vmatpush1.msra.mxu0 0.0
    %3689 = vmatprep.subr.mxu0 0.0
    %3690 = vmatpush1.msra.mxu0 0.0
    %3691 = vmatprep.mubr.f32.mxu0 0.0
    %3692 = vmatmul.mubr.f32.gmra.mrb[0].mxu0 %v3542
    %v3693 = vpop.f32.mrb[0].mxu0
    %v3694 = vadd.f32 0.0, %v3693
    %v3695 = vpop.f32.mrb[0].mxu0
    %v3696 = vadd.f32 0.0, %v3695
    %3697 = vdwg.mxu0
    %v3698 = vadd.f32 %v3525, %v3623
    %v3699 = vadd.f32 %v3526, %v3625
    %v3700 = vadd.f32 %v3527, %v3694
    %v3701 = vadd.f32 %v3528, %v3696
    %v3702 = vld [vmem:[%s7] sm:$0xf]
    %v3704 = vlaneseq
    %v3705 = vshrl.u32 %v3704, 7
    %v3706 = vsub.s32 0, %v3705
    %v3707 = vrot.slane %v3702, %v3706
    %v3708 = vlaneseq
    %v3709 = vshrl.u32 %v3708, 7
    %v3710 = vsub.s32 1, %v3709
    %v3711 = vrot.slane %v3702, %v3710
    %v3712 = vlaneseq
    %v3713 = vshrl.u32 %v3712, 7
    %v3714 = vsub.s32 2, %v3713
    %v3715 = vrot.slane %v3702, %v3714
    %v3716 = vlaneseq
    %v3717 = vshrl.u32 %v3716, 7
    %v3718 = vsub.s32 3, %v3717
    %v3719 = vrot.slane %v3702, %v3718
    %v3724 = vadd.f32 %v3698, %v3707
    %v3725 = vadd.f32 %v3699, %v3711
    %v3726 = vadd.f32 %v3700, %v3715
    %v3727 = vadd.f32 %v3701, %v3719
    %v3728 = vmul.f32 %v3724, 0.5
    %v3729 = vtanh.pop %v3728
    %v3730 = vmul.f32 %v3729, 0.5
    %v3731 = vadd.f32 %v3730, 0.5
    %v3732 = vmul.f32 %v3725, 0.5
    %v3733 = vtanh.pop %v3732
    %v3734 = vmul.f32 %v3733, 0.5
    %v3735 = vadd.f32 %v3734, 0.5
    %v3736 = vtanh.pop %v3726
    %v3737 = vmul.f32 %v3727, 0.5
    %v3738 = vtanh.pop %v3737
    %v3739 = vmul.f32 %v3738, 0.5
    %v3740 = vadd.f32 %v3739, 0.5
    %v3741 = vmul.f32 %v3735, %v3262
    %v3742 = vmul.f32 %v3731, %v3736
    %v3743 = vadd.f32 %v3741, %v3742
    %v3744 = vtanh.pop %v3743
    %v3745 = vmul.f32 %v3740, %v3744
    %3747 = vrot.lane.b32.xlu0 %v3474, 20
    %v3748 = vpop.permute.xlu0 %3747
    %v3750 = vsel %vm171, %v3745, %v3748
    %v3751 = vld [vmem:[#allocation12] sm:$0xff]
    %v3752 = vld [vmem:[#allocation12 + $0x8] sm:$0xff]
    %v3753 = vld [vmem:[#allocation12 + $0x10] sm:$0xff]
    %v3754 = vld [vmem:[#allocation12 + $0x18] sm:$0xff]
    %v3755 = vld [vmem:[#allocation12 + $0x20] sm:$0xff]
    %v3756 = vld [vmem:[#allocation12 + $0x28] sm:$0xff]
    %v3757 = vld [vmem:[#allocation12 + $0x30] sm:$0xff]
    %v3758 = vld [vmem:[#allocation12 + $0x38] sm:$0xff]
    %v3759 = vld [vmem:[#allocation12 + $0x40] sm:$0xff]
    %v3760 = vld [vmem:[#allocation12 + $0x48] sm:$0xff]
    %v3761 = vld [vmem:[#allocation12 + $0x50] sm:$0xff]
    %v3762 = vld [vmem:[#allocation12 + $0x58] sm:$0xff]
    %v3763 = vld [vmem:[#allocation12 + $0x60] sm:$0xff]
    %v3764 = vld [vmem:[#allocation12 + $0x68] sm:$0xff]
    %v3765 = vld [vmem:[#allocation12 + $0x70] sm:$0xff]
    %v3766 = vld [vmem:[#allocation12 + $0x78] sm:$0xff]
    %v3767 = vld [vmem:[#allocation12 + $0x80] sm:$0xff]
    %v3768 = vld [vmem:[#allocation12 + $0x88] sm:$0xff]
    %v3769 = vld [vmem:[#allocation12 + $0x90] sm:$0xff]
    %v3770 = vld [vmem:[#allocation12 + $0x98] sm:$0xff]
    %v3771 = vld [vmem:[%s9] sm:$0xf]
    %v3773 = vlaneseq
    %v3774 = vshrl.u32 %v3773, 7
    %v3775 = vsub.s32 0, %v3774
    %v3776 = vrot.slane %v3771, %v3775
    %v3777 = vlaneseq
    %v3778 = vshrl.u32 %v3777, 7
    %v3779 = vsub.s32 1, %v3778
    %v3780 = vrot.slane %v3771, %v3779
    %v3781 = vlaneseq
    %v3782 = vshrl.u32 %v3781, 7
    %v3783 = vsub.s32 2, %v3782
    %v3784 = vrot.slane %v3771, %v3783
    %v3785 = vlaneseq
    %v3786 = vshrl.u32 %v3785, 7
    %v3787 = vsub.s32 3, %v3786
    %v3788 = vrot.slane %v3771, %v3787
    %v3794 = vsel %vm425, %v3750, 0
    %3796 = vmatprep.subr.mxu0 %v3752
    %3797 = vmatpush1.msra.mxu0 %v3751
    %3798 = vmatprep.subr.mxu0 %v3756
    %3799 = vmatpush1.msra.mxu0 %v3755
    %3800 = vmatprep.subr.mxu0 %v3760
    %3801 = vmatpush1.msra.mxu0 %v3759
    %3802 = vmatprep.subr.mxu0 %v3764
    %3803 = vmatpush1.msra.mxu0 %v3763
    %3804 = vmatprep.subr.mxu0 %v3768
    %3805 = vmatpush1.msra.mxu0 %v3767
    %3806 = vmatprep.subr.mxu0 0.0
    %3807 = vmatpush1.msra.mxu0 0.0
    %3808 = vmatprep.subr.mxu0 0.0
    %3809 = vmatpush1.msra.mxu0 0.0
    %3810 = vmatprep.subr.mxu0 0.0
    %3811 = vmatpush1.msra.mxu0 0.0
    %3812 = vmatprep.subr.mxu0 0.0
    %3813 = vmatpush1.msra.mxu0 0.0
    %3814 = vmatprep.subr.mxu0 0.0
    %3815 = vmatpush1.msra.mxu0 0.0
    %3816 = vmatprep.subr.mxu0 0.0
    %3817 = vmatpush1.msra.mxu0 0.0
    %3818 = vmatprep.subr.mxu0 0.0
    %3819 = vmatpush1.msra.mxu0 0.0
    %3820 = vmatprep.subr.mxu0 0.0
    %3821 = vmatpush1.msra.mxu0 0.0
    %3822 = vmatprep.subr.mxu0 0.0
    %3823 = vmatpush1.msra.mxu0 0.0
    %3824 = vmatprep.subr.mxu0 0.0
    %3825 = vmatpush1.msra.mxu0 0.0
    %3826 = vmatprep.subr.mxu0 0.0
    %3827 = vmatpush1.msra.mxu0 0.0
    %3828 = vmatprep.subr.mxu0 0.0
    %3829 = vmatpush1.msra.mxu0 0.0
    %3830 = vmatprep.subr.mxu0 0.0
    %3831 = vmatpush1.msra.mxu0 0.0
    %3832 = vmatprep.subr.mxu0 0.0
    %3833 = vmatpush1.msra.mxu0 0.0
    %3834 = vmatprep.subr.mxu0 0.0
    %3835 = vmatpush1.msra.mxu0 0.0
    %3836 = vmatprep.subr.mxu0 0.0
    %3837 = vmatpush1.msra.mxu0 0.0
    %3838 = vmatprep.subr.mxu0 0.0
    %3839 = vmatpush1.msra.mxu0 0.0
    %3840 = vmatprep.subr.mxu0 0.0
    %3841 = vmatpush1.msra.mxu0 0.0
    %3842 = vmatprep.subr.mxu0 0.0
    %3843 = vmatpush1.msra.mxu0 0.0
    %3844 = vmatprep.subr.mxu0 0.0
    %3845 = vmatpush1.msra.mxu0 0.0
    %3846 = vmatprep.subr.mxu0 0.0
    %3847 = vmatpush1.msra.mxu0 0.0
    %3848 = vmatprep.subr.mxu0 0.0
    %3849 = vmatpush1.msra.mxu0 0.0
    %3850 = vmatprep.subr.mxu0 0.0
    %3851 = vmatpush1.msra.mxu0 0.0
    %3852 = vmatprep.subr.mxu0 0.0
    %3853 = vmatpush1.msra.mxu0 0.0
    %3854 = vmatprep.subr.mxu0 0.0
    %3855 = vmatpush1.msra.mxu0 0.0
    %3856 = vmatprep.subr.mxu0 0.0
    %3857 = vmatpush1.msra.mxu0 0.0
    %3858 = vmatprep.subr.mxu0 0.0
    %3859 = vmatpush1.msra.mxu0 0.0
    %3860 = vmatprep.mubr.f32.mxu0 0.0
    %3861 = vmatmul.mubr.f32.gmra.mrb[0].mxu0 %v3794
    %v3862 = vpop.f32.mrb[0].mxu0
    %v3863 = vadd.f32 %v3776, %v3862
    %v3864 = vpop.f32.mrb[0].mxu0
    %v3865 = vadd.f32 %v3780, %v3864
    %3866 = vdwg.mxu0
    %3867 = vmatprep.subr.mxu0 %v3754
    %3868 = vmatpush1.msra.mxu0 %v3753
    %3869 = vmatprep.subr.mxu0 %v3758
    %3870 = vmatpush1.msra.mxu0 %v3757
    %3871 = vmatprep.subr.mxu0 %v3762
    %3872 = vmatpush1.msra.mxu0 %v3761
    %3873 = vmatprep.subr.mxu0 %v3766
    %3874 = vmatpush1.msra.mxu0 %v3765
    %3875 = vmatprep.subr.mxu0 %v3770
    %3876 = vmatpush1.msra.mxu0 %v3769
    %3877 = vmatprep.subr.mxu0 0.0
    %3878 = vmatpush1.msra.mxu0 0.0
    %3879 = vmatprep.subr.mxu0 0.0
    %3880 = vmatpush1.msra.mxu0 0.0
    %3881 = vmatprep.subr.mxu0 0.0
    %3882 = vmatpush1.msra.mxu0 0.0
    %3883 = vmatprep.subr.mxu0 0.0
    %3884 = vmatpush1.msra.mxu0 0.0
    %3885 = vmatprep.subr.mxu0 0.0
    %3886 = vmatpush1.msra.mxu0 0.0
    %3887 = vmatprep.subr.mxu0 0.0
    %3888 = vmatpush1.msra.mxu0 0.0
    %3889 = vmatprep.subr.mxu0 0.0
    %3890 = vmatpush1.msra.mxu0 0.0
    %3891 = vmatprep.subr.mxu0 0.0
    %3892 = vmatpush1.msra.mxu0 0.0
    %3893 = vmatprep.subr.mxu0 0.0
    %3894 = vmatpush1.msra.mxu0 0.0
    %3895 = vmatprep.subr.mxu0 0.0
    %3896 = vmatpush1.msra.mxu0 0.0
    %3897 = vmatprep.subr.mxu0 0.0
    %3898 = vmatpush1.msra.mxu0 0.0
    %3899 = vmatprep.subr.mxu0 0.0
    %3900 = vmatpush1.msra.mxu0 0.0
    %3901 = vmatprep.subr.mxu0 0.0
    %3902 = vmatpush1.msra.mxu0 0.0
    %3903 = vmatprep.subr.mxu0 0.0
    %3904 = vmatpush1.msra.mxu0 0.0
    %3905 = vmatprep.subr.mxu0 0.0
    %3906 = vmatpush1.msra.mxu0 0.0
    %3907 = vmatprep.subr.mxu0 0.0
    %3908 = vmatpush1.msra.mxu0 0.0
    %3909 = vmatprep.subr.mxu0 0.0
    %3910 = vmatpush1.msra.mxu0 0.0
    %3911 = vmatprep.subr.mxu0 0.0
    %3912 = vmatpush1.msra.mxu0 0.0
    %3913 = vmatprep.subr.mxu0 0.0
    %3914 = vmatpush1.msra.mxu0 0.0
    %3915 = vmatprep.subr.mxu0 0.0
    %3916 = vmatpush1.msra.mxu0 0.0
    %3917 = vmatprep.subr.mxu0 0.0
    %3918 = vmatpush1.msra.mxu0 0.0
    %3919 = vmatprep.subr.mxu0 0.0
    %3920 = vmatpush1.msra.mxu0 0.0
    %3921 = vmatprep.subr.mxu0 0.0
    %3922 = vmatpush1.msra.mxu0 0.0
    %3923 = vmatprep.subr.mxu0 0.0
    %3924 = vmatpush1.msra.mxu0 0.0
    %3925 = vmatprep.subr.mxu0 0.0
    %3926 = vmatpush1.msra.mxu0 0.0
    %3927 = vmatprep.subr.mxu0 0.0
    %3928 = vmatpush1.msra.mxu0 0.0
    %3929 = vmatprep.subr.mxu0 0.0
    %3930 = vmatpush1.msra.mxu0 0.0
    %3931 = vmatprep.mubr.f32.mxu0 0.0
    %3932 = vmatmul.mubr.f32.gmra.mrb[0].mxu0 %v3794
    %v3933 = vpop.f32.mrb[0].mxu0
    %v3934 = vadd.f32 %v3784, %v3933
    %v3935 = vpop.f32.mrb[0].mxu0
    %v3936 = vadd.f32 %v3788, %v3935
    %3937 = vdwg.mxu0
    %v3938 = vmul.f32 %v3863, 0.5
    %v3939 = vtanh.pop %v3938
    %v3940 = vmul.f32 %v3939, 0.5
    %v3941 = vadd.f32 %v3940, 0.5
    %v3942 = vmul.f32 %v3865, 0.5
    %v3943 = vtanh.pop %v3942
    %v3944 = vmul.f32 %v3943, 0.5
    %v3945 = vadd.f32 %v3944, 0.5
    %v3946 = vtanh.pop %v3934
    %v3947 = vmul.f32 %v3936, 0.5
    %v3948 = vtanh.pop %v3947
    %v3949 = vmul.f32 %v3948, 0.5
    %v3950 = vadd.f32 %v3949, 0.5
    %v3951 = vmul.f32 %v3945, %v3472
    %v3952 = vmul.f32 %v3941, %v3946
    %v3953 = vadd.f32 %v3951, %v3952
    %v3954 = vtanh.pop %v3953
    %v3955 = vmul.f32 %v3950, %v3954
    %v3956 = vld [vmem:[%s10] sm:$0x1]
    %v3958 = vlaneseq
    %v3959 = vshrl.u32 %v3958, 7
    %v3960 = vsub.s32 0, %v3959
    %v3961 = vrot.slane %v3956, %v3960
    %v3963 = vmul.f32 %v3955, %v3961
    %v3964 = vsel %vm171, %v3963, 0.0
    %3965 = vadd.xlane.f32.xlu0 %v3964
    %v3966 = vpop.xlane.xlu0 %3965
    %v3967 = vld [vmem:[#allocation2] sm:$0x1]
    %v3969 = vlaneseq
    %v3970 = vshrl.u32 %v3969, 7
    %v3971 = vsub.s32 0, %v3970
    %v3972 = vrot.slane %v3967, %v3971
    %v3974 = vadd.f32 %v3966, %v3972
    %s3975 = scalar_lea.vmem %s12, 56
    %3976 = vst.msk [vmem:[%s3975] sm:$0xff] %vm608, %v3974
    %3977 = vst.msk [vmem:[#allocation14] sm:$0xff] %vm171, %v3745
    %3978 = vst.msk [vmem:[#allocation15] sm:$0xff] %vm171, %v3743
    %3979 = vst.msk [vmem:[#allocation17] sm:$0xff] %vm171, %v3955
    %3980 = vst.msk [vmem:[#allocation18] sm:$0xff] %vm171, %v3953
    // Predicated region
    $region74: #{tpu_custom_call.1} parent=1 // pred_check
      _
    $region75: #{tpu_custom_call.1} parent=1 // pred_check_branch
      %3982 = sbr.rel (0) target = $region77
    $region76: #{tpu_custom_call.1} parent=1 // pred_region
      _
    $region77: #{tpu_custom_call.1} parent=1 // pred_fallthru
      _
    // Predicated region
    $region78: #{tpu_custom_call.1} parent=1 // pred_check
      _
    $region79: #{tpu_custom_call.1} parent=1 // pred_check_branch
      %3984 = sbr.rel (0) target = $region81
    $region80: #{tpu_custom_call.1} parent=1 // pred_region
      %s3986 = ssub.s32 128, 128
      %3987 = vsyncadd [#allocation5], %s3986
      %s3989 = sshll.u32 [#allocation14], 4
      %s3990 = int_to_ptr.vmem [resolvable:$true] %s3989
      %3992 = dma.vmem_to_hbm [thread:$0]  %s3990, 128, %s13, [#allocation5]
    $region81: #{tpu_custom_call.1} parent=1 // pred_fallthru
      _
    // Predicated region
    $region82: #{tpu_custom_call.1} parent=1 // pred_check
      _
    $region83: #{tpu_custom_call.1} parent=1 // pred_check_branch
      %3994 = sbr.rel (0) target = $region85
    $region84: #{tpu_custom_call.1} parent=1 // pred_region
      %s3996 = ssub.s32 128, 128
      %3997 = vsyncadd [#allocation16], %s3996
      %s3999 = sshll.u32 [#allocation15], 4
      %s4000 = int_to_ptr.vmem [resolvable:$true] %s3999
      %4002 = dma.vmem_to_hbm [thread:$0]  %s4000, 128, %s14, [#allocation16]
    $region85: #{tpu_custom_call.1} parent=1 // pred_fallthru
      _
    // Predicated region
    $region86: #{tpu_custom_call.1} parent=1 // pred_check
      _
    $region87: #{tpu_custom_call.1} parent=1 // pred_check_branch
      %4004 = sbr.rel (0) target = $region89
    $region88: #{tpu_custom_call.1} parent=1 // pred_region
      %s4006 = ssub.s32 128, 128
      %4007 = vsyncadd [#allocation16], %s4006
      %s4009 = sshll.u32 [#allocation17], 4
      %s4010 = int_to_ptr.vmem [resolvable:$true] %s4009
      %4012 = dma.vmem_to_hbm [thread:$0]  %s4010, 128, %s15, [#allocation16]
    $region89: #{tpu_custom_call.1} parent=1 // pred_fallthru
      _
    // Predicated region
    $region90: #{tpu_custom_call.1} parent=1 // pred_check
      _
    $region91: #{tpu_custom_call.1} parent=1 // pred_check_branch
      %4014 = sbr.rel (0) target = $region93
    $region92: #{tpu_custom_call.1} parent=1 // pred_region
      %s4016 = ssub.s32 128, 128
      %4017 = vsyncadd [#allocation19], %s4016
      %s4019 = sshll.u32 [#allocation18], 4
      %s4020 = int_to_ptr.vmem [resolvable:$true] %s4019
      %4022 = dma.vmem_to_hbm [thread:$0]  %s4020, 128, %s16, [#allocation19]
    $region93: #{tpu_custom_call.1} parent=1 // pred_fallthru
      _
    // Predicated region
    $region94: #{tpu_custom_call.1} parent=1 // pred_check
      _
    $region95: #{tpu_custom_call.1} parent=1 // pred_check_branch
      %4024 = sbr.rel (0) target = $region97
    $region96: #{tpu_custom_call.1} parent=1 // pred_region
      _
    $region97: #{tpu_custom_call.1} parent=1 // pred_fallthru
      _
    // Predicated region
    $region98: #{tpu_custom_call.1} parent=1 // pred_check
      _
    $region99: #{tpu_custom_call.1} parent=1 // pred_check_branch
      %4026 = sbr.rel (0) target = $region101
    $region100: #{tpu_custom_call.1} parent=1 // pred_region
      %4027 = dma.done [#allocation5], 128
    $region101: #{tpu_custom_call.1} parent=1 // pred_fallthru
      _
    // Predicated region
    $region102: #{tpu_custom_call.1} parent=1 // pred_check
      _
    $region103: #{tpu_custom_call.1} parent=1 // pred_check_branch
      %4029 = sbr.rel (0) target = $region105
    $region104: #{tpu_custom_call.1} parent=1 // pred_region
      %4030 = dma.done [#allocation16], 128
    $region105: #{tpu_custom_call.1} parent=1 // pred_fallthru
      _
    // Predicated region
    $region106: #{tpu_custom_call.1} parent=1 // pred_check
      _
    $region107: #{tpu_custom_call.1} parent=1 // pred_check_branch
      %4032 = sbr.rel (0) target = $region109
    $region108: #{tpu_custom_call.1} parent=1 // pred_region
      %4033 = dma.done [#allocation16], 128
    $region109: #{tpu_custom_call.1} parent=1 // pred_fallthru
      _
    // Predicated region
    $region110: #{tpu_custom_call.1} parent=1 // pred_check
      _
    $region111: #{tpu_custom_call.1} parent=1 // pred_check_branch
      %4035 = sbr.rel (0) target = $region113
    $region112: #{tpu_custom_call.1} parent=1 // pred_region
      %4036 = dma.done [#allocation19], 128
    $region113: #{tpu_custom_call.1} parent=1 // pred_fallthru
      _
    %4037 = vsyncpa [#allocation4], 1
    %4038 = vsyncpa [#allocation7], 1
    %4039 = vsyncpa [#allocation10], 1
    %4040 = vsyncpa [#allocation13], 1
    %4041 = vsyncpa [#allocation5], 1
    %4042 = vsyncpa [#allocation16], 1
    %4043 = vsyncpa [#allocation19], 1

</llo_original>
